<compile_context>
chip_gen: v7x
topology: tpu7x:2x2x1
jax: 0.10.0
libtpu: 0.0.40
codegen_flags: <defaults>
</compile_context>

<pallas_src>
import jax
import jax.numpy as jnp
from jax.experimental import pallas as pl
from jax.experimental.pallas import tpu as pltpu


# ------------------------------------------------------------------ kernel ---
def mlp_jet_kernel(x_ref,
                   w1_ref, b1_ref,
                   w2_ref, b2_ref,
                   w3_ref, b3_ref,
                   w4_ref, b4_ref,
                   w5_ref, b5_ref,
                   o_ref):
    # Layers 1-4: bf16 MXU matmuls with f32 accumulation; bias + ReLU in f32.
    h = x_ref[...]                                                 # (TB, 80) f32
    for w_ref, b_ref in ((w1_ref, b1_ref), (w2_ref, b2_ref),
                         (w3_ref, b3_ref), (w4_ref, b4_ref)):
        h = jnp.dot(h.astype(jnp.bfloat16), w_ref[...],
                    preferred_element_type=jnp.float32)
        h = jnp.maximum(h + b_ref[...], 0.0)
    # Layer 5 (64 -> 1, no activation): an N=1 MXU pass is 1/128 lane-utilized,
    # so do it on the VPU (broadcast multiply) + lane reduction instead.
    w5 = w5_ref[...].astype(jnp.float32)                           # (1, 64)
    out = jnp.sum(h * w5, axis=-1, keepdims=True) + b5_ref[...]    # (TB, 1)
    o_ref[...] = out.astype(o_ref.dtype)


# ----------------------------------------------------------------- wrapper ---
def mlp_jet_forward(x, params, *, tb=256):
    """x: (B, input_dim) float32.  params: list of (W_in_out [bf16], b_1_out [f32])."""
    B, D = x.shape
    n_tiles = pl.cdiv(B, tb)
    b_pad = n_tiles * tb
    x_p = jnp.pad(x, ((0, b_pad - B), (0, 0))) if b_pad != B else x

    # Flatten params.  The last-layer weight is passed as a (1, 64) row so the
    # kernel can use the VPU multiply + reduce path.
    flat = [x_p]
    n_layers = len(params)
    for idx, (w, b) in enumerate(params):
        w_k = w.T if idx == n_layers - 1 else w
        flat.extend([w_k, b])

    # Activation tile streams per grid step; weights/biases get a constant
    # index_map so Pallas keeps them resident in VMEM across the whole grid.
    in_specs = [pl.BlockSpec((tb, D), lambda i: (i, 0))]
    for arr in flat[1:]:
        in_specs.append(pl.BlockSpec(arr.shape, lambda i: (0, 0)))

    flops = 2 * b_pad * (D * 512 + 512 * 512 + 512 * 128 + 128 * 64 + 64)
    bytes_accessed = int(x_p.size * 4
                         + sum(int(a.size) * a.dtype.itemsize for a in flat[1:])
                         + b_pad * 4)

    out = pl.pallas_call(
        mlp_jet_kernel,
        out_shape=jax.ShapeDtypeStruct((b_pad, 1), jnp.float32),
        grid=(n_tiles,),
        in_specs=in_specs,
        out_specs=pl.BlockSpec((tb, 1), lambda i: (i, 0)),
        compiler_params=pltpu.CompilerParams(
            dimension_semantics=("parallel",),
            vmem_limit_bytes=32 * 1024 * 1024,
        ),
        cost_estimate=pl.CostEstimate(
            flops=flops, transcendentals=0, bytes_accessed=bytes_accessed),
    )(*flat)
    return out[:B]


# ----------------------------------------------------- parameter setup (JAX) ---
def spectral_normalize(w, n_iter=10):
    """Return w / sigma, sigma estimated by power iteration (torch spectral_norm
    forward semantics: weight divided by its largest singular value)."""
    # TODO(synk): torch.spectral_norm keeps a persistent random u and does one
    # power iteration per forward; here sigma is estimated once at init.
    out_dim, _ = w.shape
    u = jnp.ones((out_dim,), jnp.float32) / jnp.sqrt(out_dim)
    v = None
    for _ in range(n_iter):
        v = w.T @ u
        v = v / (jnp.linalg.norm(v) + 1e-12)
        u = w @ v
        u = u / (jnp.linalg.norm(u) + 1e-12)
    sigma = u @ (w @ v)
    return w / sigma


def init_params(key, dims):
    """PyTorch-Linear-style init (U(-1/sqrt(fan_in), 1/sqrt(fan_in))), spectral
    normalization in f32, then weights stored (in, out) in bf16 for the kernel."""
    params = []
    for d_in, d_out in zip(dims[:-1], dims[1:]):
        key, kw, kb = jax.random.split(key, 3)
        bound = 1.0 / jnp.sqrt(d_in)
        w = jax.random.uniform(kw, (d_out, d_in), jnp.float32, -bound, bound)
        b = jax.random.uniform(kb, (d_out,), jnp.float32, -bound, bound)
        w = spectral_normalize(w)
        params.append((w.T.astype(jnp.bfloat16),           # (in, out) bf16
                       b.reshape(1, d_out).astype(jnp.float32)))
    return params


# -------------------------------------------------------------- reference ----
def mlp_jet_ref(x, params):
    """Pure-JAX reference mirroring the kernel's numerics (bf16 matmul inputs,
    f32 accumulation, final layer as broadcast-multiply + sum)."""
    h = x
    n = len(params)
    for i, (w, b) in enumerate(params):
        if i < n - 1:
            h = jnp.dot(h.astype(jnp.bfloat16), w,
                        preferred_element_type=jnp.float32)
            h = jnp.maximum(h + b, 0.0)
        else:
            h = jnp.sum(h * w.T.astype(jnp.float32), axis=-1, keepdims=True) + b
    return h


# ------------------------------------------------------------------- main ----
if __name__ == "__main__":
    key = jax.random.PRNGKey(0)
    k_x, k_x2, k_p = jax.random.split(key, 3)

    input_dim = 80
    dims = [input_dim, 512, 512, 128, 64, 1]
    params = init_params(k_p, dims)

    # Small batch (single, mostly-padded tile).
    x_small = jax.random.normal(k_x, (8, input_dim), jnp.float32)
    out_small = jax.block_until_ready(mlp_jet_forward(x_small, params))
    ref_small = mlp_jet_ref(x_small, params)
    assert out_small.shape == (8, 1)
    assert jnp.allclose(out_small, ref_small, atol=1e-3, rtol=1e-3), \
        "small-batch mismatch vs reference"

    # Multi-tile batch with a ragged tail (exercises grid + padding path).
    x_big = jax.random.normal(k_x2, (333, input_dim), jnp.float32)
    out_big = jax.block_until_ready(mlp_jet_forward(x_big, params))
    ref_big = mlp_jet_ref(x_big, params)
    assert out_big.shape == (333, 1)
    assert jnp.allclose(out_big, ref_big, atol=1e-3, rtol=1e-3), \
        "multi-tile mismatch vs reference"

    print("KERNEL_OK")
</pallas_src>

<mosaic_0001>
module attributes {stable_mosaic.version = 11 : i64} {
  func.func @mlp_jet_kernel(%arg0: i32, %arg1: memref<256x80xf32, #tpu.memory_space<vmem>>, %arg2: memref<80x512xbf16, #tpu.memory_space<vmem>>, %arg3: memref<1x512xf32, #tpu.memory_space<vmem>>, %arg4: memref<512x512xbf16, #tpu.memory_space<vmem>>, %arg5: memref<1x512xf32, #tpu.memory_space<vmem>>, %arg6: memref<512x128xbf16, #tpu.memory_space<vmem>>, %arg7: memref<1x128xf32, #tpu.memory_space<vmem>>, %arg8: memref<128x64xbf16, #tpu.memory_space<vmem>>, %arg9: memref<1x64xf32, #tpu.memory_space<vmem>>, %arg10: memref<1x64xbf16, #tpu.memory_space<vmem>>, %arg11: memref<1x1xf32, #tpu.memory_space<vmem>>, %arg12: memref<256x1xf32, #tpu.memory_space<vmem>>) attributes {dimension_semantics = [#tpu.dimension_semantics<parallel>], iteration_bounds = array<i64: 1>, scalar_prefetch = 0 : i64, scratch_operands = 0 : i64, tpu.core_type = #tpu.core_type<tc>, window_params = [{transform_indices = @transform_0, window_bounds = array<i64: 256, 80>}, {pipeline_mode = #tpu.pipeline_mode<synchronous>, transform_indices = @transform_1, window_bounds = array<i64: 80, 512>}, {pipeline_mode = #tpu.pipeline_mode<synchronous>, transform_indices = @transform_2, window_bounds = array<i64: 1, 512>}, {pipeline_mode = #tpu.pipeline_mode<synchronous>, transform_indices = @transform_3, window_bounds = array<i64: 512, 512>}, {pipeline_mode = #tpu.pipeline_mode<synchronous>, transform_indices = @transform_4, window_bounds = array<i64: 1, 512>}, {pipeline_mode = #tpu.pipeline_mode<synchronous>, transform_indices = @transform_5, window_bounds = array<i64: 512, 128>}, {pipeline_mode = #tpu.pipeline_mode<synchronous>, transform_indices = @transform_6, window_bounds = array<i64: 1, 128>}, {pipeline_mode = #tpu.pipeline_mode<synchronous>, transform_indices = @transform_7, window_bounds = array<i64: 128, 64>}, {pipeline_mode = #tpu.pipeline_mode<synchronous>, transform_indices = @transform_8, window_bounds = array<i64: 1, 64>}, {pipeline_mode = #tpu.pipeline_mode<synchronous>, transform_indices = @transform_9, window_bounds = array<i64: 1, 64>}, {pipeline_mode = #tpu.pipeline_mode<synchronous>, transform_indices = @transform_10, window_bounds = array<i64: 1, 1>}, {transform_indices = @transform_11, window_bounds = array<i64: 256, 1>}]} {
    %c0 = arith.constant 0 : index
    %c0_0 = arith.constant 0 : index
    %0 = vector.load %arg1[%c0, %c0_0] : memref<256x80xf32, #tpu.memory_space<vmem>>, vector<256x80xf32>
    %1 = arith.truncf %0 : vector<256x80xf32> to vector<256x80xbf16>
    %c0_1 = arith.constant 0 : index
    %c0_2 = arith.constant 0 : index
    %2 = vector.load %arg2[%c0_1, %c0_2] : memref<80x512xbf16, #tpu.memory_space<vmem>>, vector<80x512xbf16>
    %cst = arith.constant dense<0.000000e+00> : vector<256x512xf32>
    %3 = tpu.matmul %1, %2, %cst {dimension_numbers = #tpu.dot_dimension_numbers<[1], [0], [0], [1], [0, 0, 1, 1], [], []>} : vector<256x80xbf16>, vector<80x512xbf16>, vector<256x512xf32> -> vector<256x512xf32>
    %c0_3 = arith.constant 0 : index
    %c0_4 = arith.constant 0 : index
    %4 = vector.load %arg3[%c0_3, %c0_4] : memref<1x512xf32, #tpu.memory_space<vmem>>, vector<1x512xf32>
    %5 = vector.broadcast %4 : vector<1x512xf32> to vector<256x512xf32>
    %6 = arith.addf %3, %5 : vector<256x512xf32>
    %cst_5 = arith.constant 0.000000e+00 : f32
    %7 = vector.broadcast %cst_5 : f32 to vector<256x512xf32>
    %8 = arith.maximumf %6, %7 : vector<256x512xf32>
    %9 = arith.truncf %8 : vector<256x512xf32> to vector<256x512xbf16>
    %c0_6 = arith.constant 0 : index
    %c0_7 = arith.constant 0 : index
    %10 = vector.load %arg4[%c0_6, %c0_7] : memref<512x512xbf16, #tpu.memory_space<vmem>>, vector<512x512xbf16>
    %cst_8 = arith.constant dense<0.000000e+00> : vector<256x512xf32>
    %11 = tpu.matmul %9, %10, %cst_8 {dimension_numbers = #tpu.dot_dimension_numbers<[1], [0], [0], [1], [0, 0, 1, 1], [], []>} : vector<256x512xbf16>, vector<512x512xbf16>, vector<256x512xf32> -> vector<256x512xf32>
    %c0_9 = arith.constant 0 : index
    %c0_10 = arith.constant 0 : index
    %12 = vector.load %arg5[%c0_9, %c0_10] : memref<1x512xf32, #tpu.memory_space<vmem>>, vector<1x512xf32>
    %13 = vector.broadcast %12 : vector<1x512xf32> to vector<256x512xf32>
    %14 = arith.addf %11, %13 : vector<256x512xf32>
    %cst_11 = arith.constant 0.000000e+00 : f32
    %15 = vector.broadcast %cst_11 : f32 to vector<256x512xf32>
    %16 = arith.maximumf %14, %15 : vector<256x512xf32>
    %17 = arith.truncf %16 : vector<256x512xf32> to vector<256x512xbf16>
    %c0_12 = arith.constant 0 : index
    %c0_13 = arith.constant 0 : index
    %18 = vector.load %arg6[%c0_12, %c0_13] : memref<512x128xbf16, #tpu.memory_space<vmem>>, vector<512x128xbf16>
    %cst_14 = arith.constant dense<0.000000e+00> : vector<256x128xf32>
    %19 = tpu.matmul %17, %18, %cst_14 {dimension_numbers = #tpu.dot_dimension_numbers<[1], [0], [0], [1], [0, 0, 1, 1], [], []>} : vector<256x512xbf16>, vector<512x128xbf16>, vector<256x128xf32> -> vector<256x128xf32>
    %c0_15 = arith.constant 0 : index
    %c0_16 = arith.constant 0 : index
    %20 = vector.load %arg7[%c0_15, %c0_16] : memref<1x128xf32, #tpu.memory_space<vmem>>, vector<1x128xf32>
    %21 = vector.broadcast %20 : vector<1x128xf32> to vector<256x128xf32>
    %22 = arith.addf %19, %21 : vector<256x128xf32>
    %cst_17 = arith.constant 0.000000e+00 : f32
    %23 = vector.broadcast %cst_17 : f32 to vector<256x128xf32>
    %24 = arith.maximumf %22, %23 : vector<256x128xf32>
    %25 = arith.truncf %24 : vector<256x128xf32> to vector<256x128xbf16>
    %c0_18 = arith.constant 0 : index
    %c0_19 = arith.constant 0 : index
    %26 = vector.load %arg8[%c0_18, %c0_19] : memref<128x64xbf16, #tpu.memory_space<vmem>>, vector<128x64xbf16>
    %cst_20 = arith.constant dense<0.000000e+00> : vector<256x64xf32>
    %27 = tpu.matmul %25, %26, %cst_20 {dimension_numbers = #tpu.dot_dimension_numbers<[1], [0], [0], [1], [0, 0, 1, 1], [], []>} : vector<256x128xbf16>, vector<128x64xbf16>, vector<256x64xf32> -> vector<256x64xf32>
    %c0_21 = arith.constant 0 : index
    %c0_22 = arith.constant 0 : index
    %28 = vector.load %arg9[%c0_21, %c0_22] : memref<1x64xf32, #tpu.memory_space<vmem>>, vector<1x64xf32>
    %29 = vector.broadcast %28 : vector<1x64xf32> to vector<256x64xf32>
    %30 = arith.addf %27, %29 : vector<256x64xf32>
    %cst_23 = arith.constant 0.000000e+00 : f32
    %31 = vector.broadcast %cst_23 : f32 to vector<256x64xf32>
    %32 = arith.maximumf %30, %31 : vector<256x64xf32>
    %c0_24 = arith.constant 0 : index
    %c0_25 = arith.constant 0 : index
    %33 = vector.load %arg10[%c0_24, %c0_25] : memref<1x64xbf16, #tpu.memory_space<vmem>>, vector<1x64xbf16>
    %34 = arith.extf %33 : vector<1x64xbf16> to vector<1x64xf32>
    %35 = vector.broadcast %34 : vector<1x64xf32> to vector<256x64xf32>
    %36 = arith.mulf %32, %35 : vector<256x64xf32>
    %cst_26 = arith.constant dense<0.000000e+00> : vector<256xf32>
    %37 = vector.multi_reduction <add>, %36, %cst_26 [1] : vector<256x64xf32> to vector<256xf32>
    %38 = vector.shape_cast %37 : vector<256xf32> to vector<256x1xf32>
    %c0_27 = arith.constant 0 : index
    %c0_28 = arith.constant 0 : index
    %39 = vector.load %arg11[%c0_27, %c0_28] : memref<1x1xf32, #tpu.memory_space<vmem>>, vector<1x1xf32>
    %40 = vector.broadcast %39 : vector<1x1xf32> to vector<256x1xf32>
    %41 = arith.addf %38, %40 : vector<256x1xf32>
    %c0_29 = arith.constant 0 : index
    %c0_30 = arith.constant 0 : index
    %42 = vector.load %arg12[%c0_29, %c0_30] : memref<256x1xf32, #tpu.memory_space<vmem>>, vector<256x1xf32>
    tpu.vector_store %arg12[%c0_29, %c0_30], %41 {strides = array<i32>} : memref<256x1xf32, #tpu.memory_space<vmem>>, vector<256x1xf32>,
    return
  }
  func.func @transform_0(%arg0: i32) -> (i32, i32) {
    %c0_i32 = arith.constant 0 : i32
    %c0_i32_0 = arith.constant 0 : i32
    return %arg0, %c0_i32 : i32, i32
  }
  func.func @transform_1(%arg0: i32) -> (i32, i32) {
    %c0_i32 = arith.constant 0 : i32
    %c0_i32_0 = arith.constant 0 : i32
    %c0_i32_1 = arith.constant 0 : i32
    return %c0_i32, %c0_i32_0 : i32, i32
  }
  func.func @transform_2(%arg0: i32) -> (i32, i32) {
    %c0_i32 = arith.constant 0 : i32
    %c0_i32_0 = arith.constant 0 : i32
    %c0_i32_1 = arith.constant 0 : i32
    return %c0_i32, %c0_i32_0 : i32, i32
  }
  func.func @transform_3(%arg0: i32) -> (i32, i32) {
    %c0_i32 = arith.constant 0 : i32
    %c0_i32_0 = arith.constant 0 : i32
    %c0_i32_1 = arith.constant 0 : i32
    return %c0_i32, %c0_i32_0 : i32, i32
  }
  func.func @transform_4(%arg0: i32) -> (i32, i32) {
    %c0_i32 = arith.constant 0 : i32
    %c0_i32_0 = arith.constant 0 : i32
    %c0_i32_1 = arith.constant 0 : i32
    return %c0_i32, %c0_i32_0 : i32, i32
  }
  func.func @transform_5(%arg0: i32) -> (i32, i32) {
    %c0_i32 = arith.constant 0 : i32
    %c0_i32_0 = arith.constant 0 : i32
    %c0_i32_1 = arith.constant 0 : i32
    return %c0_i32, %c0_i32_0 : i32, i32
  }
  func.func @transform_6(%arg0: i32) -> (i32, i32) {
    %c0_i32 = arith.constant 0 : i32
    %c0_i32_0 = arith.constant 0 : i32
    %c0_i32_1 = arith.constant 0 : i32
    return %c0_i32, %c0_i32_0 : i32, i32
  }
  func.func @transform_7(%arg0: i32) -> (i32, i32) {
    %c0_i32 = arith.constant 0 : i32
    %c0_i32_0 = arith.constant 0 : i32
    %c0_i32_1 = arith.constant 0 : i32
    return %c0_i32, %c0_i32_0 : i32, i32
  }
  func.func @transform_8(%arg0: i32) -> (i32, i32) {
    %c0_i32 = arith.constant 0 : i32
    %c0_i32_0 = arith.constant 0 : i32
    %c0_i32_1 = arith.constant 0 : i32
    return %c0_i32, %c0_i32_0 : i32, i32
  }
  func.func @transform_9(%arg0: i32) -> (i32, i32) {
    %c0_i32 = arith.constant 0 : i32
    %c0_i32_0 = arith.constant 0 : i32
    %c0_i32_1 = arith.constant 0 : i32
    return %c0_i32, %c0_i32_0 : i32, i32
  }
  func.func @transform_10(%arg0: i32) -> (i32, i32) {
    %c0_i32 = arith.constant 0 : i32
    %c0_i32_0 = arith.constant 0 : i32
    %c0_i32_1 = arith.constant 0 : i32
    return %c0_i32, %c0_i32_0 : i32, i32
  }
  func.func @transform_11(%arg0: i32) -> (i32, i32) {
    %c0_i32 = arith.constant 0 : i32
    %c0_i32_0 = arith.constant 0 : i32
    return %arg0, %c0_i32 : i32, i32
  }
}

</mosaic_0001>

<llo_original>
// kernel: tpu_custom_call.1
$region0: #{tpu_custom_call.1}
  #allocation0 [shape = 'u32[]', space=smem, size = 0x4, offset = 0x4, fixed_abs, tag = 'smem constant byte address 0x4 - core index']
  #allocation1 [shape = 'u32[144,128]{1,0:T(1,128)}', space=vmem, size = 0x12000, scoped, tag = 'internal scratch']
  #allocation2 [shape = 'f32[1,1]{1,0:T(1,128)S(1)}', space=vmem, size = 0x200, scoped, tag = 'scoped memory for tpu_custom_call.1']
  %s0 = inlined_call_operand.vmem [shape: f32[256,80], index: 0, kind: input, shape index: {}]
  %s1 = inlined_call_operand.vmem [shape: bf16[80,512], index: 1, kind: input, shape index: {}]
  %s2 = inlined_call_operand.vmem [shape: f32[1,512], index: 2, kind: input, shape index: {}]
  %s3 = inlined_call_operand.hbm [shape: bf16[512,512], index: 3, kind: input, shape index: {}]
  %s4 = inlined_call_operand.vmem [shape: f32[1,512], index: 4, kind: input, shape index: {}]
  %s5 = inlined_call_operand.vmem [shape: bf16[512,128], index: 5, kind: input, shape index: {}]
  %s6 = inlined_call_operand.vmem [shape: f32[1,128], index: 6, kind: input, shape index: {}]
  %s7 = inlined_call_operand.vmem [shape: bf16[128,64], index: 7, kind: input, shape index: {}]
  %s8 = inlined_call_operand.vmem [shape: f32[1,64], index: 8, kind: input, shape index: {}]
  %s9 = inlined_call_operand.vmem [shape: bf16[1,64], index: 9, kind: input, shape index: {}]
  %s10 = inlined_call_operand.<no memory space> [shape: f32[1,1], index: 10, kind: input, shape index: {}]
  %s11 = inlined_call_operand.vmem [shape: f32[256,1], index: 11, kind: output, shape index: {}]
  %s12 = sld [smem:[#allocation0]]
  $region58: #{tpu_custom_call.1} parent=0
    _
  %s14 = ssub.s32 1, %s12
  %s15 = scalar_select 0, %s14, %s12
  %v16 = vstv %s10
  %17 = vst [vmem:[#allocation2] sm:$0x1] %v16
  $region1: #{tpu_custom_call.1} parent=0
    #allocation3 [shape = 'u8[524288]{0}', space=vmem, size = 0x80000, scoped, tag = 'input window, operand 3, single buffered']
    #allocation4 [shape = 's32[1]{0}', space=sflag, size = 0x4, scoped, tag = 'scoped memory for tpu_custom_call.1']
    %18 = vsyncpa [#allocation4], 0
    // Predicated region
    $region2: #{tpu_custom_call.1} parent=1 // pred_check
      _
    $region3: #{tpu_custom_call.1} parent=1 // pred_check_branch
      %20 = sbr.rel (0) target = $region5
    $region4: #{tpu_custom_call.1} parent=1 // pred_region
      _
    $region5: #{tpu_custom_call.1} parent=1 // pred_fallthru
      _
    // Predicated region
    $region6: #{tpu_custom_call.1} parent=1 // pred_check
      _
    $region7: #{tpu_custom_call.1} parent=1 // pred_check_branch
      %22 = sbr.rel (0) target = $region9
    $region8: #{tpu_custom_call.1} parent=1 // pred_region
      _
    $region9: #{tpu_custom_call.1} parent=1 // pred_fallthru
      _
    // Predicated region
    $region10: #{tpu_custom_call.1} parent=1 // pred_check
      _
    $region11: #{tpu_custom_call.1} parent=1 // pred_check_branch
      %24 = sbr.rel (0) target = $region13
    $region12: #{tpu_custom_call.1} parent=1 // pred_region
      _
    $region13: #{tpu_custom_call.1} parent=1 // pred_fallthru
      _
    // Predicated region
    $region14: #{tpu_custom_call.1} parent=1 // pred_check
      _
    $region15: #{tpu_custom_call.1} parent=1 // pred_check_branch
      %26 = sbr.rel (0) target = $region17
    $region16: #{tpu_custom_call.1} parent=1 // pred_region
      %s28 = ssub.s32 16384, 16384
      %29 = vsyncadd [#allocation4], %s28
      %s30 = sshll.u32 [#allocation3], 4
      %s31 = int_to_ptr.vmem [resolvable:$true] %s30
      %36 = dma.hbm_to_vmem [thread:$0]  %s3, 16384, %s31, [#allocation4], 256, 256, 16
    $region17: #{tpu_custom_call.1} parent=1 // pred_fallthru
      _
    // Predicated region
    $region18: #{tpu_custom_call.1} parent=1 // pred_check
      _
    $region19: #{tpu_custom_call.1} parent=1 // pred_check_branch
      %38 = sbr.rel (0) target = $region21
    $region20: #{tpu_custom_call.1} parent=1 // pred_region
      _
    $region21: #{tpu_custom_call.1} parent=1 // pred_fallthru
      _
    // Predicated region
    $region22: #{tpu_custom_call.1} parent=1 // pred_check
      _
    $region23: #{tpu_custom_call.1} parent=1 // pred_check_branch
      %40 = sbr.rel (0) target = $region25
    $region24: #{tpu_custom_call.1} parent=1 // pred_region
      _
    $region25: #{tpu_custom_call.1} parent=1 // pred_fallthru
      _
    // Predicated region
    $region26: #{tpu_custom_call.1} parent=1 // pred_check
      _
    $region27: #{tpu_custom_call.1} parent=1 // pred_check_branch
      %42 = sbr.rel (0) target = $region29
    $region28: #{tpu_custom_call.1} parent=1 // pred_region
      _
    $region29: #{tpu_custom_call.1} parent=1 // pred_fallthru
      _
    // Predicated region
    $region30: #{tpu_custom_call.1} parent=1 // pred_check
      _
    $region31: #{tpu_custom_call.1} parent=1 // pred_check_branch
      %44 = sbr.rel (0) target = $region33
    $region32: #{tpu_custom_call.1} parent=1 // pred_region
      _
    $region33: #{tpu_custom_call.1} parent=1 // pred_fallthru
      _
    // Predicated region
    $region34: #{tpu_custom_call.1} parent=1 // pred_check
      _
    $region35: #{tpu_custom_call.1} parent=1 // pred_check_branch
      %46 = sbr.rel (0) target = $region37
    $region36: #{tpu_custom_call.1} parent=1 // pred_region
      _
    $region37: #{tpu_custom_call.1} parent=1 // pred_fallthru
      _
    // Predicated region
    $region38: #{tpu_custom_call.1} parent=1 // pred_check
      _
    $region39: #{tpu_custom_call.1} parent=1 // pred_check_branch
      %48 = sbr.rel (0) target = $region41
    $region40: #{tpu_custom_call.1} parent=1 // pred_region
      _
    $region41: #{tpu_custom_call.1} parent=1 // pred_fallthru
      _
    // Predicated region
    $region42: #{tpu_custom_call.1} parent=1 // pred_check
      _
    $region43: #{tpu_custom_call.1} parent=1 // pred_check_branch
      %50 = sbr.rel (0) target = $region45
    $region44: #{tpu_custom_call.1} parent=1 // pred_region
      _
    $region45: #{tpu_custom_call.1} parent=1 // pred_fallthru
      _
    // Predicated region
    $region46: #{tpu_custom_call.1} parent=1 // pred_check
      _
    $region47: #{tpu_custom_call.1} parent=1 // pred_check_branch
      %52 = sbr.rel (0) target = $region49
    $region48: #{tpu_custom_call.1} parent=1 // pred_region
      %53 = dma.done [#allocation4], 16384
    $region49: #{tpu_custom_call.1} parent=1 // pred_fallthru
      _
    %v55 = vld [vmem:[%s0] sm:$0xff]
    %v56 = vld [vmem:[%s0 + $0x8] sm:$0xff]
    %v57 = vld [vmem:[%s0 + $0x10] sm:$0xff]
    %v58 = vld [vmem:[%s0 + $0x18] sm:$0xff]
    %v59 = vld [vmem:[%s0 + $0x20] sm:$0xff]
    %v60 = vld [vmem:[%s0 + $0x28] sm:$0xff]
    %v61 = vld [vmem:[%s0 + $0x30] sm:$0xff]
    %v62 = vld [vmem:[%s0 + $0x38] sm:$0xff]
    %v63 = vld [vmem:[%s0 + $0x40] sm:$0xff]
    %v64 = vld [vmem:[%s0 + $0x48] sm:$0xff]
    %v65 = vld [vmem:[%s0 + $0x50] sm:$0xff]
    %v66 = vld [vmem:[%s0 + $0x58] sm:$0xff]
    %v67 = vld [vmem:[%s0 + $0x60] sm:$0xff]
    %v68 = vld [vmem:[%s0 + $0x68] sm:$0xff]
    %v69 = vld [vmem:[%s0 + $0x70] sm:$0xff]
    %v70 = vld [vmem:[%s0 + $0x78] sm:$0xff]
    %v71 = vld [vmem:[%s0 + $0x80] sm:$0xff]
    %v72 = vld [vmem:[%s0 + $0x88] sm:$0xff]
    %v73 = vld [vmem:[%s0 + $0x90] sm:$0xff]
    %v74 = vld [vmem:[%s0 + $0x98] sm:$0xff]
    %v75 = vld [vmem:[%s0 + $0xa0] sm:$0xff]
    %v76 = vld [vmem:[%s0 + $0xa8] sm:$0xff]
    %v77 = vld [vmem:[%s0 + $0xb0] sm:$0xff]
    %v78 = vld [vmem:[%s0 + $0xb8] sm:$0xff]
    %v79 = vld [vmem:[%s0 + $0xc0] sm:$0xff]
    %v80 = vld [vmem:[%s0 + $0xc8] sm:$0xff]
    %v81 = vld [vmem:[%s0 + $0xd0] sm:$0xff]
    %v82 = vld [vmem:[%s0 + $0xd8] sm:$0xff]
    %v83 = vld [vmem:[%s0 + $0xe0] sm:$0xff]
    %v84 = vld [vmem:[%s0 + $0xe8] sm:$0xff]
    %v85 = vld [vmem:[%s0 + $0xf0] sm:$0xff]
    %v86 = vld [vmem:[%s0 + $0xf8] sm:$0xff]
    %v87 = vpack.c.bf16 %v56, %v55
    %v88 = vpack.c.bf16 %v58, %v57
    %v89 = vpack.c.bf16 %v60, %v59
    %v90 = vpack.c.bf16 %v62, %v61
    %v91 = vpack.c.bf16 %v64, %v63
    %v92 = vpack.c.bf16 %v66, %v65
    %v93 = vpack.c.bf16 %v68, %v67
    %v94 = vpack.c.bf16 %v70, %v69
    %v95 = vpack.c.bf16 %v72, %v71
    %v96 = vpack.c.bf16 %v74, %v73
    %v97 = vpack.c.bf16 %v76, %v75
    %v98 = vpack.c.bf16 %v78, %v77
    %v99 = vpack.c.bf16 %v80, %v79
    %v100 = vpack.c.bf16 %v82, %v81
    %v101 = vpack.c.bf16 %v84, %v83
    %v102 = vpack.c.bf16 %v86, %v85
    %v103 = vld [vmem:[%s1] sm:$0xff]
    %v104 = vld [vmem:[%s1 + $0x8] sm:$0xff]
    %v105 = vld [vmem:[%s1 + $0x10] sm:$0xff]
    %v106 = vld [vmem:[%s1 + $0x18] sm:$0xff]
    %v107 = vld [vmem:[%s1 + $0x20] sm:$0xff]
    %v108 = vld [vmem:[%s1 + $0x28] sm:$0xff]
    %v109 = vld [vmem:[%s1 + $0x30] sm:$0xff]
    %v110 = vld [vmem:[%s1 + $0x38] sm:$0xff]
    %v111 = vld [vmem:[%s1 + $0x40] sm:$0xff]
    %v112 = vld [vmem:[%s1 + $0x48] sm:$0xff]
    %v113 = vld [vmem:[%s1 + $0x50] sm:$0xff]
    %v114 = vld [vmem:[%s1 + $0x58] sm:$0xff]
    %v115 = vld [vmem:[%s1 + $0x60] sm:$0xff]
    %v116 = vld [vmem:[%s1 + $0x68] sm:$0xff]
    %v117 = vld [vmem:[%s1 + $0x70] sm:$0xff]
    %v118 = vld [vmem:[%s1 + $0x78] sm:$0xff]
    %v119 = vld [vmem:[%s1 + $0x80] sm:$0xff]
    %v120 = vld [vmem:[%s1 + $0x88] sm:$0xff]
    %v121 = vld [vmem:[%s1 + $0x90] sm:$0xff]
    %v122 = vld [vmem:[%s1 + $0x98] sm:$0xff]
    %v123 = vld [vmem:[%s2] sm:$0xf]
    %v125 = vlaneseq
    %v126 = vshrl.u32 %v125, 7
    %v127 = vsub.s32 0, %v126
    %v128 = vrot.slane %v123, %v127
    %v129 = vlaneseq
    %v130 = vshrl.u32 %v129, 7
    %v131 = vsub.s32 1, %v130
    %v132 = vrot.slane %v123, %v131
    %v133 = vlaneseq
    %v134 = vshrl.u32 %v133, 7
    %v135 = vsub.s32 2, %v134
    %v136 = vrot.slane %v123, %v135
    %v137 = vlaneseq
    %v138 = vshrl.u32 %v137, 7
    %v139 = vsub.s32 3, %v138
    %v140 = vrot.slane %v123, %v139
    %v165 = vunpack.c.l.b16 %v103
    %v166 = vunpack.c.h.b16 %v103
    %v167 = vunpack.c.l.b16 %v104
    %v168 = vunpack.c.h.b16 %v104
    %v169 = vunpack.c.l.b16 %v105
    %v170 = vunpack.c.h.b16 %v105
    %v171 = vunpack.c.l.b16 %v106
    %v172 = vunpack.c.h.b16 %v106
    %v173 = vunpack.c.l.b16 %v107
    %v174 = vunpack.c.h.b16 %v107
    %v175 = vunpack.c.l.b16 %v108
    %v176 = vunpack.c.h.b16 %v108
    %v177 = vunpack.c.l.b16 %v109
    %v178 = vunpack.c.h.b16 %v109
    %v179 = vunpack.c.l.b16 %v110
    %v180 = vunpack.c.h.b16 %v110
    %v181 = vunpack.c.l.b16 %v111
    %v182 = vunpack.c.h.b16 %v111
    %v183 = vunpack.c.l.b16 %v112
    %v184 = vunpack.c.h.b16 %v112
    %v185 = vunpack.c.l.b16 %v113
    %v186 = vunpack.c.h.b16 %v113
    %v187 = vunpack.c.l.b16 %v114
    %v188 = vunpack.c.h.b16 %v114
    %v189 = vunpack.c.l.b16 %v115
    %v190 = vunpack.c.h.b16 %v115
    %v191 = vunpack.c.l.b16 %v116
    %v192 = vunpack.c.h.b16 %v116
    %v193 = vunpack.c.l.b16 %v117
    %v194 = vunpack.c.h.b16 %v117
    %v195 = vunpack.c.l.b16 %v118
    %v196 = vunpack.c.h.b16 %v118
    %v197 = vunpack.c.l.b16 %v119
    %v198 = vunpack.c.h.b16 %v119
    %v199 = vunpack.c.l.b16 %v120
    %v200 = vunpack.c.h.b16 %v120
    %v201 = vunpack.c.l.b16 %v121
    %v202 = vunpack.c.h.b16 %v121
    %v203 = vunpack.c.l.b16 %v122
    %v204 = vunpack.c.h.b16 %v122
    %v205 = vpack.c.b16 %v169, %v165
    %v206 = vpack.c.b16 %v170, %v166
    %v207 = vpack.c.b16 %v171, %v167
    %v208 = vpack.c.b16 %v172, %v168
    %v209 = vpack.c.b16 %v177, %v173
    %v210 = vpack.c.b16 %v178, %v174
    %v211 = vpack.c.b16 %v179, %v175
    %v212 = vpack.c.b16 %v180, %v176
    %v213 = vpack.c.b16 %v185, %v181
    %v214 = vpack.c.b16 %v186, %v182
    %v215 = vpack.c.b16 %v187, %v183
    %v216 = vpack.c.b16 %v188, %v184
    %v217 = vpack.c.b16 %v193, %v189
    %v218 = vpack.c.b16 %v194, %v190
    %v219 = vpack.c.b16 %v195, %v191
    %v220 = vpack.c.b16 %v196, %v192
    %v221 = vpack.c.b16 %v201, %v197
    %v222 = vpack.c.b16 %v202, %v198
    %v223 = vpack.c.b16 %v203, %v199
    %v224 = vpack.c.b16 %v204, %v200
    %vm245 = vcmask 654336
    %v247 = vsel %vm245, %v87, 0
    %v250 = vsel %vm245, %v88, 0
    %v253 = vsel %vm245, %v89, 0
    %v256 = vsel %vm245, %v90, 0
    %v259 = vsel %vm245, %v91, 0
    %v262 = vsel %vm245, %v92, 0
    %v265 = vsel %vm245, %v93, 0
    %v268 = vsel %vm245, %v94, 0
    %v271 = vsel %vm245, %v95, 0
    %v274 = vsel %vm245, %v96, 0
    %v277 = vsel %vm245, %v97, 0
    %v280 = vsel %vm245, %v98, 0
    %v283 = vsel %vm245, %v99, 0
    %v286 = vsel %vm245, %v100, 0
    %v289 = vsel %vm245, %v101, 0
    %v292 = vsel %vm245, %v102, 0
    %294 = vmatprep.subr.bf16.mxu0 %v206
    %295 = vmatpush1.bf16.msra.mxu0 %v205
    %296 = vmatprep.subr.bf16.mxu0 %v210
    %297 = vmatpush1.bf16.msra.mxu0 %v209
    %298 = vmatprep.subr.bf16.mxu0 %v214
    %299 = vmatpush1.bf16.msra.mxu0 %v213
    %300 = vmatprep.subr.bf16.mxu0 %v218
    %301 = vmatpush1.bf16.msra.mxu0 %v217
    %302 = vmatprep.subr.bf16.mxu0 %v222
    %303 = vmatpush1.bf16.msra.mxu0 %v221
    %304 = vmatprep.subr.bf16.mxu0 0
    %305 = vmatpush1.bf16.msra.mxu0 0
    %306 = vmatprep.subr.bf16.mxu0 0
    %307 = vmatpush1.bf16.msra.mxu0 0
    %308 = vmatprep.subr.bf16.mxu0 0
    %309 = vmatpush1.bf16.msra.mxu0 0
    %310 = vmatprep.subr.bf16.mxu0 0
    %311 = vmatpush1.bf16.msra.mxu0 0
    %312 = vmatprep.subr.bf16.mxu0 0
    %313 = vmatpush1.bf16.msra.mxu0 0
    %314 = vmatprep.subr.bf16.mxu0 0
    %315 = vmatpush1.bf16.msra.mxu0 0
    %316 = vmatprep.subr.bf16.mxu0 0
    %317 = vmatpush1.bf16.msra.mxu0 0
    %318 = vmatprep.subr.bf16.mxu0 0
    %319 = vmatpush1.bf16.msra.mxu0 0
    %320 = vmatprep.subr.bf16.mxu0 0
    %321 = vmatpush1.bf16.msra.mxu0 0
    %322 = vmatprep.subr.bf16.mxu0 0
    %323 = vmatpush1.bf16.msra.mxu0 0
    %324 = vmatprep.subr.bf16.mxu0 0
    %325 = vmatpush1.bf16.msra.mxu0 0
    %326 = vmatprep.mubr.bf16.mxu0 0
    %327 = vmatmul.mubr.bf16.gmra.mrb[0].mxu0 %v247
    %v328 = vpop.f32.mrb[0].mxu0
    %v329 = vadd.f32 %v128, %v328
    %v330 = vpop.f32.mrb[0].mxu0
    %v331 = vadd.f32 %v132, %v330
    %v332 = vpop.f32.mrb[0].mxu0
    %v333 = vadd.f32 %v128, %v332
    %v334 = vpop.f32.mrb[0].mxu0
    %v335 = vadd.f32 %v132, %v334
    %336 = vmatprep.mubr.bf16.mxu0 0
    %337 = vmatmul.mubr.bf16.gmra.mrb[0].mxu0 %v250
    %v338 = vpop.f32.mrb[0].mxu0
    %v339 = vadd.f32 %v128, %v338
    %v340 = vpop.f32.mrb[0].mxu0
    %v341 = vadd.f32 %v132, %v340
    %v342 = vpop.f32.mrb[0].mxu0
    %v343 = vadd.f32 %v128, %v342
    %v344 = vpop.f32.mrb[0].mxu0
    %v345 = vadd.f32 %v132, %v344
    %346 = vmatprep.mubr.bf16.mxu0 0
    %347 = vmatmul.mubr.bf16.gmra.mrb[0].mxu0 %v253
    %v348 = vpop.f32.mrb[0].mxu0
    %v349 = vadd.f32 %v128, %v348
    %v350 = vpop.f32.mrb[0].mxu0
    %v351 = vadd.f32 %v132, %v350
    %v352 = vpop.f32.mrb[0].mxu0
    %v353 = vadd.f32 %v128, %v352
    %v354 = vpop.f32.mrb[0].mxu0
    %v355 = vadd.f32 %v132, %v354
    %356 = vmatprep.mubr.bf16.mxu0 0
    %357 = vmatmul.mubr.bf16.gmra.mrb[0].mxu0 %v256
    %v358 = vpop.f32.mrb[0].mxu0
    %v359 = vadd.f32 %v128, %v358
    %v360 = vpop.f32.mrb[0].mxu0
    %v361 = vadd.f32 %v132, %v360
    %v362 = vpop.f32.mrb[0].mxu0
    %v363 = vadd.f32 %v128, %v362
    %v364 = vpop.f32.mrb[0].mxu0
    %v365 = vadd.f32 %v132, %v364
    %366 = vmatprep.mubr.bf16.mxu0 0
    %367 = vmatmul.mubr.bf16.gmra.mrb[0].mxu0 %v259
    %v368 = vpop.f32.mrb[0].mxu0
    %v369 = vadd.f32 %v128, %v368
    %v370 = vpop.f32.mrb[0].mxu0
    %v371 = vadd.f32 %v132, %v370
    %v372 = vpop.f32.mrb[0].mxu0
    %v373 = vadd.f32 %v128, %v372
    %v374 = vpop.f32.mrb[0].mxu0
    %v375 = vadd.f32 %v132, %v374
    %376 = vmatprep.mubr.bf16.mxu0 0
    %377 = vmatmul.mubr.bf16.gmra.mrb[0].mxu0 %v262
    %v378 = vpop.f32.mrb[0].mxu0
    %v379 = vadd.f32 %v128, %v378
    %v380 = vpop.f32.mrb[0].mxu0
    %v381 = vadd.f32 %v132, %v380
    %v382 = vpop.f32.mrb[0].mxu0
    %v383 = vadd.f32 %v128, %v382
    %v384 = vpop.f32.mrb[0].mxu0
    %v385 = vadd.f32 %v132, %v384
    %386 = vmatprep.mubr.bf16.mxu0 0
    %387 = vmatmul.mubr.bf16.gmra.mrb[0].mxu0 %v265
    %v388 = vpop.f32.mrb[0].mxu0
    %v389 = vadd.f32 %v128, %v388
    %v390 = vpop.f32.mrb[0].mxu0
    %v391 = vadd.f32 %v132, %v390
    %v392 = vpop.f32.mrb[0].mxu0
    %v393 = vadd.f32 %v128, %v392
    %v394 = vpop.f32.mrb[0].mxu0
    %v395 = vadd.f32 %v132, %v394
    %396 = vmatprep.mubr.bf16.mxu0 0
    %397 = vmatmul.mubr.bf16.gmra.mrb[0].mxu0 %v268
    %v398 = vpop.f32.mrb[0].mxu0
    %v399 = vadd.f32 %v128, %v398
    %v400 = vpop.f32.mrb[0].mxu0
    %v401 = vadd.f32 %v132, %v400
    %v402 = vpop.f32.mrb[0].mxu0
    %v403 = vadd.f32 %v128, %v402
    %v404 = vpop.f32.mrb[0].mxu0
    %v405 = vadd.f32 %v132, %v404
    %406 = vmatprep.mubr.bf16.mxu0 0
    %407 = vmatmul.mubr.bf16.gmra.mrb[0].mxu0 %v271
    %v408 = vpop.f32.mrb[0].mxu0
    %v409 = vadd.f32 %v128, %v408
    %v410 = vpop.f32.mrb[0].mxu0
    %v411 = vadd.f32 %v132, %v410
    %v412 = vpop.f32.mrb[0].mxu0
    %v413 = vadd.f32 %v128, %v412
    %v414 = vpop.f32.mrb[0].mxu0
    %v415 = vadd.f32 %v132, %v414
    %416 = vmatprep.mubr.bf16.mxu0 0
    %417 = vmatmul.mubr.bf16.gmra.mrb[0].mxu0 %v274
    %v418 = vpop.f32.mrb[0].mxu0
    %v419 = vadd.f32 %v128, %v418
    %v420 = vpop.f32.mrb[0].mxu0
    %v421 = vadd.f32 %v132, %v420
    %v422 = vpop.f32.mrb[0].mxu0
    %v423 = vadd.f32 %v128, %v422
    %v424 = vpop.f32.mrb[0].mxu0
    %v425 = vadd.f32 %v132, %v424
    %426 = vmatprep.mubr.bf16.mxu0 0
    %427 = vmatmul.mubr.bf16.gmra.mrb[0].mxu0 %v277
    %v428 = vpop.f32.mrb[0].mxu0
    %v429 = vadd.f32 %v128, %v428
    %v430 = vpop.f32.mrb[0].mxu0
    %v431 = vadd.f32 %v132, %v430
    %v432 = vpop.f32.mrb[0].mxu0
    %v433 = vadd.f32 %v128, %v432
    %v434 = vpop.f32.mrb[0].mxu0
    %v435 = vadd.f32 %v132, %v434
    %436 = vmatprep.mubr.bf16.mxu0 0
    %437 = vmatmul.mubr.bf16.gmra.mrb[0].mxu0 %v280
    %v438 = vpop.f32.mrb[0].mxu0
    %v439 = vadd.f32 %v128, %v438
    %v440 = vpop.f32.mrb[0].mxu0
    %v441 = vadd.f32 %v132, %v440
    %v442 = vpop.f32.mrb[0].mxu0
    %v443 = vadd.f32 %v128, %v442
    %v444 = vpop.f32.mrb[0].mxu0
    %v445 = vadd.f32 %v132, %v444
    %446 = vmatprep.mubr.bf16.mxu0 0
    %447 = vmatmul.mubr.bf16.gmra.mrb[0].mxu0 %v283
    %v448 = vpop.f32.mrb[0].mxu0
    %v449 = vadd.f32 %v128, %v448
    %v450 = vpop.f32.mrb[0].mxu0
    %v451 = vadd.f32 %v132, %v450
    %v452 = vpop.f32.mrb[0].mxu0
    %v453 = vadd.f32 %v128, %v452
    %v454 = vpop.f32.mrb[0].mxu0
    %v455 = vadd.f32 %v132, %v454
    %456 = vmatprep.mubr.bf16.mxu0 0
    %457 = vmatmul.mubr.bf16.gmra.mrb[0].mxu0 %v286
    %v458 = vpop.f32.mrb[0].mxu0
    %v459 = vadd.f32 %v128, %v458
    %v460 = vpop.f32.mrb[0].mxu0
    %v461 = vadd.f32 %v132, %v460
    %v462 = vpop.f32.mrb[0].mxu0
    %v463 = vadd.f32 %v128, %v462
    %v464 = vpop.f32.mrb[0].mxu0
    %v465 = vadd.f32 %v132, %v464
    %466 = vmatprep.mubr.bf16.mxu0 0
    %467 = vmatmul.mubr.bf16.gmra.mrb[0].mxu0 %v289
    %v468 = vpop.f32.mrb[0].mxu0
    %v469 = vadd.f32 %v128, %v468
    %v470 = vpop.f32.mrb[0].mxu0
    %v471 = vadd.f32 %v132, %v470
    %v472 = vpop.f32.mrb[0].mxu0
    %v473 = vadd.f32 %v128, %v472
    %v474 = vpop.f32.mrb[0].mxu0
    %v475 = vadd.f32 %v132, %v474
    %476 = vmatprep.mubr.bf16.mxu0 0
    %477 = vmatmul.mubr.bf16.gmra.mrb[0].mxu0 %v292
    %v478 = vpop.f32.mrb[0].mxu0
    %v479 = vadd.f32 %v128, %v478
    %v480 = vpop.f32.mrb[0].mxu0
    %v481 = vadd.f32 %v132, %v480
    %v482 = vpop.f32.mrb[0].mxu0
    %v483 = vadd.f32 %v128, %v482
    %v484 = vpop.f32.mrb[0].mxu0
    %v485 = vadd.f32 %v132, %v484
    %486 = vdwg.mxu0
    %487 = vmatprep.subr.bf16.mxu0 %v208
    %488 = vmatpush1.bf16.msra.mxu0 %v207
    %489 = vmatprep.subr.bf16.mxu0 %v212
    %490 = vmatpush1.bf16.msra.mxu0 %v211
    %491 = vmatprep.subr.bf16.mxu0 %v216
    %492 = vmatpush1.bf16.msra.mxu0 %v215
    %493 = vmatprep.subr.bf16.mxu0 %v220
    %494 = vmatpush1.bf16.msra.mxu0 %v219
    %495 = vmatprep.subr.bf16.mxu0 %v224
    %496 = vmatpush1.bf16.msra.mxu0 %v223
    %497 = vmatprep.subr.bf16.mxu0 0
    %498 = vmatpush1.bf16.msra.mxu0 0
    %499 = vmatprep.subr.bf16.mxu0 0
    %500 = vmatpush1.bf16.msra.mxu0 0
    %501 = vmatprep.subr.bf16.mxu0 0
    %502 = vmatpush1.bf16.msra.mxu0 0
    %503 = vmatprep.subr.bf16.mxu0 0
    %504 = vmatpush1.bf16.msra.mxu0 0
    %505 = vmatprep.subr.bf16.mxu0 0
    %506 = vmatpush1.bf16.msra.mxu0 0
    %507 = vmatprep.subr.bf16.mxu0 0
    %508 = vmatpush1.bf16.msra.mxu0 0
    %509 = vmatprep.subr.bf16.mxu0 0
    %510 = vmatpush1.bf16.msra.mxu0 0
    %511 = vmatprep.subr.bf16.mxu0 0
    %512 = vmatpush1.bf16.msra.mxu0 0
    %513 = vmatprep.subr.bf16.mxu0 0
    %514 = vmatpush1.bf16.msra.mxu0 0
    %515 = vmatprep.subr.bf16.mxu0 0
    %516 = vmatpush1.bf16.msra.mxu0 0
    %517 = vmatprep.subr.bf16.mxu0 0
    %518 = vmatpush1.bf16.msra.mxu0 0
    %519 = vmatprep.mubr.bf16.mxu0 0
    %520 = vmatmul.mubr.bf16.gmra.mrb[0].mxu0 %v247
    %v521 = vpop.f32.mrb[0].mxu0
    %v522 = vadd.f32 %v136, %v521
    %v523 = vpop.f32.mrb[0].mxu0
    %v524 = vadd.f32 %v140, %v523
    %v525 = vpop.f32.mrb[0].mxu0
    %v526 = vadd.f32 %v136, %v525
    %v527 = vpop.f32.mrb[0].mxu0
    %v528 = vadd.f32 %v140, %v527
    %529 = vmatprep.mubr.bf16.mxu0 0
    %530 = vmatmul.mubr.bf16.gmra.mrb[0].mxu0 %v250
    %v531 = vpop.f32.mrb[0].mxu0
    %v532 = vadd.f32 %v136, %v531
    %v533 = vpop.f32.mrb[0].mxu0
    %v534 = vadd.f32 %v140, %v533
    %v535 = vpop.f32.mrb[0].mxu0
    %v536 = vadd.f32 %v136, %v535
    %v537 = vpop.f32.mrb[0].mxu0
    %v538 = vadd.f32 %v140, %v537
    %539 = vmatprep.mubr.bf16.mxu0 0
    %540 = vmatmul.mubr.bf16.gmra.mrb[0].mxu0 %v253
    %v541 = vpop.f32.mrb[0].mxu0
    %v542 = vadd.f32 %v136, %v541
    %v543 = vpop.f32.mrb[0].mxu0
    %v544 = vadd.f32 %v140, %v543
    %v545 = vpop.f32.mrb[0].mxu0
    %v546 = vadd.f32 %v136, %v545
    %v547 = vpop.f32.mrb[0].mxu0
    %v548 = vadd.f32 %v140, %v547
    %549 = vmatprep.mubr.bf16.mxu0 0
    %550 = vmatmul.mubr.bf16.gmra.mrb[0].mxu0 %v256
    %v551 = vpop.f32.mrb[0].mxu0
    %v552 = vadd.f32 %v136, %v551
    %v553 = vpop.f32.mrb[0].mxu0
    %v554 = vadd.f32 %v140, %v553
    %v555 = vpop.f32.mrb[0].mxu0
    %v556 = vadd.f32 %v136, %v555
    %v557 = vpop.f32.mrb[0].mxu0
    %v558 = vadd.f32 %v140, %v557
    %559 = vmatprep.mubr.bf16.mxu0 0
    %560 = vmatmul.mubr.bf16.gmra.mrb[0].mxu0 %v259
    %v561 = vpop.f32.mrb[0].mxu0
    %v562 = vadd.f32 %v136, %v561
    %v563 = vpop.f32.mrb[0].mxu0
    %v564 = vadd.f32 %v140, %v563
    %v565 = vpop.f32.mrb[0].mxu0
    %v566 = vadd.f32 %v136, %v565
    %v567 = vpop.f32.mrb[0].mxu0
    %v568 = vadd.f32 %v140, %v567
    %569 = vmatprep.mubr.bf16.mxu0 0
    %570 = vmatmul.mubr.bf16.gmra.mrb[0].mxu0 %v262
    %v571 = vpop.f32.mrb[0].mxu0
    %v572 = vadd.f32 %v136, %v571
    %v573 = vpop.f32.mrb[0].mxu0
    %v574 = vadd.f32 %v140, %v573
    %v575 = vpop.f32.mrb[0].mxu0
    %v576 = vadd.f32 %v136, %v575
    %v577 = vpop.f32.mrb[0].mxu0
    %v578 = vadd.f32 %v140, %v577
    %579 = vmatprep.mubr.bf16.mxu0 0
    %580 = vmatmul.mubr.bf16.gmra.mrb[0].mxu0 %v265
    %v581 = vpop.f32.mrb[0].mxu0
    %v582 = vadd.f32 %v136, %v581
    %v583 = vpop.f32.mrb[0].mxu0
    %v584 = vadd.f32 %v140, %v583
    %v585 = vpop.f32.mrb[0].mxu0
    %v586 = vadd.f32 %v136, %v585
    %v587 = vpop.f32.mrb[0].mxu0
    %v588 = vadd.f32 %v140, %v587
    %589 = vmatprep.mubr.bf16.mxu0 0
    %590 = vmatmul.mubr.bf16.gmra.mrb[0].mxu0 %v268
    %v591 = vpop.f32.mrb[0].mxu0
    %v592 = vadd.f32 %v136, %v591
    %v593 = vpop.f32.mrb[0].mxu0
    %v594 = vadd.f32 %v140, %v593
    %v595 = vpop.f32.mrb[0].mxu0
    %v596 = vadd.f32 %v136, %v595
    %v597 = vpop.f32.mrb[0].mxu0
    %v598 = vadd.f32 %v140, %v597
    %599 = vmatprep.mubr.bf16.mxu0 0
    %600 = vmatmul.mubr.bf16.gmra.mrb[0].mxu0 %v271
    %v601 = vpop.f32.mrb[0].mxu0
    %v602 = vadd.f32 %v136, %v601
    %v603 = vpop.f32.mrb[0].mxu0
    %v604 = vadd.f32 %v140, %v603
    %v605 = vpop.f32.mrb[0].mxu0
    %v606 = vadd.f32 %v136, %v605
    %v607 = vpop.f32.mrb[0].mxu0
    %v608 = vadd.f32 %v140, %v607
    %609 = vmatprep.mubr.bf16.mxu0 0
    %610 = vmatmul.mubr.bf16.gmra.mrb[0].mxu0 %v274
    %v611 = vpop.f32.mrb[0].mxu0
    %v612 = vadd.f32 %v136, %v611
    %v613 = vpop.f32.mrb[0].mxu0
    %v614 = vadd.f32 %v140, %v613
    %v615 = vpop.f32.mrb[0].mxu0
    %v616 = vadd.f32 %v136, %v615
    %v617 = vpop.f32.mrb[0].mxu0
    %v618 = vadd.f32 %v140, %v617
    %619 = vmatprep.mubr.bf16.mxu0 0
    %620 = vmatmul.mubr.bf16.gmra.mrb[0].mxu0 %v277
    %v621 = vpop.f32.mrb[0].mxu0
    %v622 = vadd.f32 %v136, %v621
    %v623 = vpop.f32.mrb[0].mxu0
    %v624 = vadd.f32 %v140, %v623
    %v625 = vpop.f32.mrb[0].mxu0
    %v626 = vadd.f32 %v136, %v625
    %v627 = vpop.f32.mrb[0].mxu0
    %v628 = vadd.f32 %v140, %v627
    %629 = vmatprep.mubr.bf16.mxu0 0
    %630 = vmatmul.mubr.bf16.gmra.mrb[0].mxu0 %v280
    %v631 = vpop.f32.mrb[0].mxu0
    %v632 = vadd.f32 %v136, %v631
    %v633 = vpop.f32.mrb[0].mxu0
    %v634 = vadd.f32 %v140, %v633
    %v635 = vpop.f32.mrb[0].mxu0
    %v636 = vadd.f32 %v136, %v635
    %v637 = vpop.f32.mrb[0].mxu0
    %v638 = vadd.f32 %v140, %v637
    %639 = vmatprep.mubr.bf16.mxu0 0
    %640 = vmatmul.mubr.bf16.gmra.mrb[0].mxu0 %v283
    %v641 = vpop.f32.mrb[0].mxu0
    %v642 = vadd.f32 %v136, %v641
    %v643 = vpop.f32.mrb[0].mxu0
    %v644 = vadd.f32 %v140, %v643
    %v645 = vpop.f32.mrb[0].mxu0
    %v646 = vadd.f32 %v136, %v645
    %v647 = vpop.f32.mrb[0].mxu0
    %v648 = vadd.f32 %v140, %v647
    %649 = vmatprep.mubr.bf16.mxu0 0
    %650 = vmatmul.mubr.bf16.gmra.mrb[0].mxu0 %v286
    %v651 = vpop.f32.mrb[0].mxu0
    %v652 = vadd.f32 %v136, %v651
    %v653 = vpop.f32.mrb[0].mxu0
    %v654 = vadd.f32 %v140, %v653
    %v655 = vpop.f32.mrb[0].mxu0
    %v656 = vadd.f32 %v136, %v655
    %v657 = vpop.f32.mrb[0].mxu0
    %v658 = vadd.f32 %v140, %v657
    %659 = vmatprep.mubr.bf16.mxu0 0
    %660 = vmatmul.mubr.bf16.gmra.mrb[0].mxu0 %v289
    %v661 = vpop.f32.mrb[0].mxu0
    %v662 = vadd.f32 %v136, %v661
    %v663 = vpop.f32.mrb[0].mxu0
    %v664 = vadd.f32 %v140, %v663
    %v665 = vpop.f32.mrb[0].mxu0
    %v666 = vadd.f32 %v136, %v665
    %v667 = vpop.f32.mrb[0].mxu0
    %v668 = vadd.f32 %v140, %v667
    %669 = vmatprep.mubr.bf16.mxu0 0
    %670 = vmatmul.mubr.bf16.gmra.mrb[0].mxu0 %v292
    %v671 = vpop.f32.mrb[0].mxu0
    %v672 = vadd.f32 %v136, %v671
    %v673 = vpop.f32.mrb[0].mxu0
    %v674 = vadd.f32 %v140, %v673
    %v675 = vpop.f32.mrb[0].mxu0
    %v676 = vadd.f32 %v136, %v675
    %v677 = vpop.f32.mrb[0].mxu0
    %v678 = vadd.f32 %v140, %v677
    %679 = vdwg.mxu0
    %v680 = vmax.f32 %v329, 0.0
    %v681 = vmax.f32 %v331, 0.0
    %v682 = vmax.f32 %v522, 0.0
    %v683 = vmax.f32 %v524, 0.0
    %v684 = vmax.f32 %v333, 0.0
    %v685 = vmax.f32 %v335, 0.0
    %v686 = vmax.f32 %v526, 0.0
    %v687 = vmax.f32 %v528, 0.0
    %v688 = vmax.f32 %v339, 0.0
    %v689 = vmax.f32 %v341, 0.0
    %v690 = vmax.f32 %v532, 0.0
    %v691 = vmax.f32 %v534, 0.0
    %v692 = vmax.f32 %v343, 0.0
    %v693 = vmax.f32 %v345, 0.0
    %v694 = vmax.f32 %v536, 0.0
    %v695 = vmax.f32 %v538, 0.0
    %v696 = vmax.f32 %v349, 0.0
    %v697 = vmax.f32 %v351, 0.0
    %v698 = vmax.f32 %v542, 0.0
    %v699 = vmax.f32 %v544, 0.0
    %v700 = vmax.f32 %v353, 0.0
    %v701 = vmax.f32 %v355, 0.0
    %v702 = vmax.f32 %v546, 0.0
    %v703 = vmax.f32 %v548, 0.0
    %v704 = vmax.f32 %v359, 0.0
    %v705 = vmax.f32 %v361, 0.0
    %v706 = vmax.f32 %v552, 0.0
    %v707 = vmax.f32 %v554, 0.0
    %v708 = vmax.f32 %v363, 0.0
    %v709 = vmax.f32 %v365, 0.0
    %v710 = vmax.f32 %v556, 0.0
    %v711 = vmax.f32 %v558, 0.0
    %v712 = vmax.f32 %v369, 0.0
    %v713 = vmax.f32 %v371, 0.0
    %v714 = vmax.f32 %v562, 0.0
    %v715 = vmax.f32 %v564, 0.0
    %v716 = vmax.f32 %v373, 0.0
    %v717 = vmax.f32 %v375, 0.0
    %v718 = vmax.f32 %v566, 0.0
    %v719 = vmax.f32 %v568, 0.0
    %v720 = vmax.f32 %v379, 0.0
    %v721 = vmax.f32 %v381, 0.0
    %v722 = vmax.f32 %v572, 0.0
    %v723 = vmax.f32 %v574, 0.0
    %v724 = vmax.f32 %v383, 0.0
    %v725 = vmax.f32 %v385, 0.0
    %v726 = vmax.f32 %v576, 0.0
    %v727 = vmax.f32 %v578, 0.0
    %v728 = vmax.f32 %v389, 0.0
    %v729 = vmax.f32 %v391, 0.0
    %v730 = vmax.f32 %v582, 0.0
    %v731 = vmax.f32 %v584, 0.0
    %v732 = vmax.f32 %v393, 0.0
    %v733 = vmax.f32 %v395, 0.0
    %v734 = vmax.f32 %v586, 0.0
    %v735 = vmax.f32 %v588, 0.0
    %v736 = vmax.f32 %v399, 0.0
    %v737 = vmax.f32 %v401, 0.0
    %v738 = vmax.f32 %v592, 0.0
    %v739 = vmax.f32 %v594, 0.0
    %v740 = vmax.f32 %v403, 0.0
    %v741 = vmax.f32 %v405, 0.0
    %v742 = vmax.f32 %v596, 0.0
    %v743 = vmax.f32 %v598, 0.0
    %v744 = vmax.f32 %v409, 0.0
    %v745 = vmax.f32 %v411, 0.0
    %v746 = vmax.f32 %v602, 0.0
    %v747 = vmax.f32 %v604, 0.0
    %v748 = vmax.f32 %v413, 0.0
    %v749 = vmax.f32 %v415, 0.0
    %v750 = vmax.f32 %v606, 0.0
    %v751 = vmax.f32 %v608, 0.0
    %v752 = vmax.f32 %v419, 0.0
    %v753 = vmax.f32 %v421, 0.0
    %v754 = vmax.f32 %v612, 0.0
    %v755 = vmax.f32 %v614, 0.0
    %v756 = vmax.f32 %v423, 0.0
    %v757 = vmax.f32 %v425, 0.0
    %v758 = vmax.f32 %v616, 0.0
    %v759 = vmax.f32 %v618, 0.0
    %v760 = vmax.f32 %v429, 0.0
    %v761 = vmax.f32 %v431, 0.0
    %v762 = vmax.f32 %v622, 0.0
    %v763 = vmax.f32 %v624, 0.0
    %v764 = vmax.f32 %v433, 0.0
    %v765 = vmax.f32 %v435, 0.0
    %v766 = vmax.f32 %v626, 0.0
    %v767 = vmax.f32 %v628, 0.0
    %v768 = vmax.f32 %v439, 0.0
    %v769 = vmax.f32 %v441, 0.0
    %v770 = vmax.f32 %v632, 0.0
    %v771 = vmax.f32 %v634, 0.0
    %v772 = vmax.f32 %v443, 0.0
    %v773 = vmax.f32 %v445, 0.0
    %v774 = vmax.f32 %v636, 0.0
    %v775 = vmax.f32 %v638, 0.0
    %v776 = vmax.f32 %v449, 0.0
    %v777 = vmax.f32 %v451, 0.0
    %v778 = vmax.f32 %v642, 0.0
    %v779 = vmax.f32 %v644, 0.0
    %v780 = vmax.f32 %v453, 0.0
    %v781 = vmax.f32 %v455, 0.0
    %v782 = vmax.f32 %v646, 0.0
    %v783 = vmax.f32 %v648, 0.0
    %v784 = vmax.f32 %v459, 0.0
    %v785 = vmax.f32 %v461, 0.0
    %v786 = vmax.f32 %v652, 0.0
    %v787 = vmax.f32 %v654, 0.0
    %v788 = vmax.f32 %v463, 0.0
    %v789 = vmax.f32 %v465, 0.0
    %v790 = vmax.f32 %v656, 0.0
    %v791 = vmax.f32 %v658, 0.0
    %v792 = vmax.f32 %v469, 0.0
    %v793 = vmax.f32 %v471, 0.0
    %v794 = vmax.f32 %v662, 0.0
    %v795 = vmax.f32 %v664, 0.0
    %v796 = vmax.f32 %v473, 0.0
    %v797 = vmax.f32 %v475, 0.0
    %v798 = vmax.f32 %v666, 0.0
    %v799 = vmax.f32 %v668, 0.0
    %v800 = vmax.f32 %v479, 0.0
    %v801 = vmax.f32 %v481, 0.0
    %v802 = vmax.f32 %v672, 0.0
    %v803 = vmax.f32 %v674, 0.0
    %v804 = vmax.f32 %v483, 0.0
    %v805 = vmax.f32 %v485, 0.0
    %v806 = vmax.f32 %v676, 0.0
    %v807 = vmax.f32 %v678, 0.0
    %v808 = vpack.c.bf16 %v684, %v680
    %v809 = vpack.c.bf16 %v685, %v681
    %v810 = vpack.c.bf16 %v686, %v682
    %v811 = vpack.c.bf16 %v687, %v683
    %v812 = vpack.c.bf16 %v692, %v688
    %v813 = vpack.c.bf16 %v693, %v689
    %v814 = vpack.c.bf16 %v694, %v690
    %v815 = vpack.c.bf16 %v695, %v691
    %v816 = vpack.c.bf16 %v700, %v696
    %v817 = vpack.c.bf16 %v701, %v697
    %v818 = vpack.c.bf16 %v702, %v698
    %v819 = vpack.c.bf16 %v703, %v699
    %v820 = vpack.c.bf16 %v708, %v704
    %v821 = vpack.c.bf16 %v709, %v705
    %v822 = vpack.c.bf16 %v710, %v706
    %v823 = vpack.c.bf16 %v711, %v707
    %v824 = vpack.c.bf16 %v716, %v712
    %v825 = vpack.c.bf16 %v717, %v713
    %v826 = vpack.c.bf16 %v718, %v714
    %v827 = vpack.c.bf16 %v719, %v715
    %v828 = vpack.c.bf16 %v724, %v720
    %v829 = vpack.c.bf16 %v725, %v721
    %v830 = vpack.c.bf16 %v726, %v722
    %v831 = vpack.c.bf16 %v727, %v723
    %v832 = vpack.c.bf16 %v732, %v728
    %v833 = vpack.c.bf16 %v733, %v729
    %v834 = vpack.c.bf16 %v734, %v730
    %v835 = vpack.c.bf16 %v735, %v731
    %v836 = vpack.c.bf16 %v740, %v736
    %v837 = vpack.c.bf16 %v741, %v737
    %v838 = vpack.c.bf16 %v742, %v738
    %v839 = vpack.c.bf16 %v743, %v739
    %v840 = vpack.c.bf16 %v748, %v744
    %v841 = vpack.c.bf16 %v749, %v745
    %v842 = vpack.c.bf16 %v750, %v746
    %v843 = vpack.c.bf16 %v751, %v747
    %v844 = vpack.c.bf16 %v756, %v752
    %v845 = vpack.c.bf16 %v757, %v753
    %v846 = vpack.c.bf16 %v758, %v754
    %v847 = vpack.c.bf16 %v759, %v755
    %v848 = vpack.c.bf16 %v764, %v760
    %v849 = vpack.c.bf16 %v765, %v761
    %v850 = vpack.c.bf16 %v766, %v762
    %v851 = vpack.c.bf16 %v767, %v763
    %v852 = vpack.c.bf16 %v772, %v768
    %v853 = vpack.c.bf16 %v773, %v769
    %v854 = vpack.c.bf16 %v774, %v770
    %v855 = vpack.c.bf16 %v775, %v771
    %v856 = vpack.c.bf16 %v780, %v776
    %v857 = vpack.c.bf16 %v781, %v777
    %v858 = vpack.c.bf16 %v782, %v778
    %v859 = vpack.c.bf16 %v783, %v779
    %v860 = vpack.c.bf16 %v788, %v784
    %v861 = vpack.c.bf16 %v789, %v785
    %v862 = vpack.c.bf16 %v790, %v786
    %v863 = vpack.c.bf16 %v791, %v787
    %v864 = vpack.c.bf16 %v796, %v792
    %v865 = vpack.c.bf16 %v797, %v793
    %v866 = vpack.c.bf16 %v798, %v794
    %v867 = vpack.c.bf16 %v799, %v795
    %v868 = vpack.c.bf16 %v804, %v800
    %v869 = vpack.c.bf16 %v805, %v801
    %v870 = vpack.c.bf16 %v806, %v802
    %v871 = vpack.c.bf16 %v807, %v803
    %v872 = vld [vmem:[#allocation3] sm:$0xff]
    %v873 = vld [vmem:[#allocation3 + $0x8] sm:$0xff]
    %v874 = vld [vmem:[#allocation3 + $0x10] sm:$0xff]
    %v875 = vld [vmem:[#allocation3 + $0x18] sm:$0xff]
    %v876 = vld [vmem:[#allocation3 + $0x20] sm:$0xff]
    %v877 = vld [vmem:[#allocation3 + $0x28] sm:$0xff]
    %v878 = vld [vmem:[#allocation3 + $0x30] sm:$0xff]
    %v879 = vld [vmem:[#allocation3 + $0x38] sm:$0xff]
    %v880 = vld [vmem:[#allocation3 + $0x40] sm:$0xff]
    %v881 = vld [vmem:[#allocation3 + $0x48] sm:$0xff]
    %v882 = vld [vmem:[#allocation3 + $0x50] sm:$0xff]
    %v883 = vld [vmem:[#allocation3 + $0x58] sm:$0xff]
    %v884 = vld [vmem:[#allocation3 + $0x60] sm:$0xff]
    %v885 = vld [vmem:[#allocation3 + $0x68] sm:$0xff]
    %v886 = vld [vmem:[#allocation3 + $0x70] sm:$0xff]
    %v887 = vld [vmem:[#allocation3 + $0x78] sm:$0xff]
    %v888 = vld [vmem:[#allocation3 + $0x80] sm:$0xff]
    %v889 = vld [vmem:[#allocation3 + $0x88] sm:$0xff]
    %v890 = vld [vmem:[#allocation3 + $0x90] sm:$0xff]
    %v891 = vld [vmem:[#allocation3 + $0x98] sm:$0xff]
    %v892 = vld [vmem:[#allocation3 + $0xa0] sm:$0xff]
    %v893 = vld [vmem:[#allocation3 + $0xa8] sm:$0xff]
    %v894 = vld [vmem:[#allocation3 + $0xb0] sm:$0xff]
    %v895 = vld [vmem:[#allocation3 + $0xb8] sm:$0xff]
    %v896 = vld [vmem:[#allocation3 + $0xc0] sm:$0xff]
    %v897 = vld [vmem:[#allocation3 + $0xc8] sm:$0xff]
    %v898 = vld [vmem:[#allocation3 + $0xd0] sm:$0xff]
    %v899 = vld [vmem:[#allocation3 + $0xd8] sm:$0xff]
    %v900 = vld [vmem:[#allocation3 + $0xe0] sm:$0xff]
    %v901 = vld [vmem:[#allocation3 + $0xe8] sm:$0xff]
    %v902 = vld [vmem:[#allocation3 + $0xf0] sm:$0xff]
    %v903 = vld [vmem:[#allocation3 + $0xf8] sm:$0xff]
    %v904 = vld [vmem:[#allocation3 + $0x100] sm:$0xff]
    %v905 = vld [vmem:[#allocation3 + $0x108] sm:$0xff]
    %v906 = vld [vmem:[#allocation3 + $0x110] sm:$0xff]
    %v907 = vld [vmem:[#allocation3 + $0x118] sm:$0xff]
    %v908 = vld [vmem:[#allocation3 + $0x120] sm:$0xff]
    %v909 = vld [vmem:[#allocation3 + $0x128] sm:$0xff]
    %v910 = vld [vmem:[#allocation3 + $0x130] sm:$0xff]
    %v911 = vld [vmem:[#allocation3 + $0x138] sm:$0xff]
    %v912 = vld [vmem:[#allocation3 + $0x140] sm:$0xff]
    %v913 = vld [vmem:[#allocation3 + $0x148] sm:$0xff]
    %v914 = vld [vmem:[#allocation3 + $0x150] sm:$0xff]
    %v915 = vld [vmem:[#allocation3 + $0x158] sm:$0xff]
    %v916 = vld [vmem:[#allocation3 + $0x160] sm:$0xff]
    %v917 = vld [vmem:[#allocation3 + $0x168] sm:$0xff]
    %v918 = vld [vmem:[#allocation3 + $0x170] sm:$0xff]
    %v919 = vld [vmem:[#allocation3 + $0x178] sm:$0xff]
    %v920 = vld [vmem:[#allocation3 + $0x180] sm:$0xff]
    %v921 = vld [vmem:[#allocation3 + $0x188] sm:$0xff]
    %v922 = vld [vmem:[#allocation3 + $0x190] sm:$0xff]
    %v923 = vld [vmem:[#allocation3 + $0x198] sm:$0xff]
    %v924 = vld [vmem:[#allocation3 + $0x1a0] sm:$0xff]
    %v925 = vld [vmem:[#allocation3 + $0x1a8] sm:$0xff]
    %v926 = vld [vmem:[#allocation3 + $0x1b0] sm:$0xff]
    %v927 = vld [vmem:[#allocation3 + $0x1b8] sm:$0xff]
    %v928 = vld [vmem:[#allocation3 + $0x1c0] sm:$0xff]
    %v929 = vld [vmem:[#allocation3 + $0x1c8] sm:$0xff]
    %v930 = vld [vmem:[#allocation3 + $0x1d0] sm:$0xff]
    %v931 = vld [vmem:[#allocation3 + $0x1d8] sm:$0xff]
    %v932 = vld [vmem:[#allocation3 + $0x1e0] sm:$0xff]
    %v933 = vld [vmem:[#allocation3 + $0x1e8] sm:$0xff]
    %v934 = vld [vmem:[#allocation3 + $0x1f0] sm:$0xff]
    %v935 = vld [vmem:[#allocation3 + $0x1f8] sm:$0xff]
    %v936 = vld [vmem:[#allocation3 + $0x200] sm:$0xff]
    %v937 = vld [vmem:[#allocation3 + $0x208] sm:$0xff]
    %v938 = vld [vmem:[#allocation3 + $0x210] sm:$0xff]
    %v939 = vld [vmem:[#allocation3 + $0x218] sm:$0xff]
    %v940 = vld [vmem:[#allocation3 + $0x220] sm:$0xff]
    %v941 = vld [vmem:[#allocation3 + $0x228] sm:$0xff]
    %v942 = vld [vmem:[#allocation3 + $0x230] sm:$0xff]
    %v943 = vld [vmem:[#allocation3 + $0x238] sm:$0xff]
    %v944 = vld [vmem:[#allocation3 + $0x240] sm:$0xff]
    %v945 = vld [vmem:[#allocation3 + $0x248] sm:$0xff]
    %v946 = vld [vmem:[#allocation3 + $0x250] sm:$0xff]
    %v947 = vld [vmem:[#allocation3 + $0x258] sm:$0xff]
    %v948 = vld [vmem:[#allocation3 + $0x260] sm:$0xff]
    %v949 = vld [vmem:[#allocation3 + $0x268] sm:$0xff]
    %v950 = vld [vmem:[#allocation3 + $0x270] sm:$0xff]
    %v951 = vld [vmem:[#allocation3 + $0x278] sm:$0xff]
    %v952 = vld [vmem:[#allocation3 + $0x280] sm:$0xff]
    %v953 = vld [vmem:[#allocation3 + $0x288] sm:$0xff]
    %v954 = vld [vmem:[#allocation3 + $0x290] sm:$0xff]
    %v955 = vld [vmem:[#allocation3 + $0x298] sm:$0xff]
    %v956 = vld [vmem:[#allocation3 + $0x2a0] sm:$0xff]
    %v957 = vld [vmem:[#allocation3 + $0x2a8] sm:$0xff]
    %v958 = vld [vmem:[#allocation3 + $0x2b0] sm:$0xff]
    %v959 = vld [vmem:[#allocation3 + $0x2b8] sm:$0xff]
    %v960 = vld [vmem:[#allocation3 + $0x2c0] sm:$0xff]
    %v961 = vld [vmem:[#allocation3 + $0x2c8] sm:$0xff]
    %v962 = vld [vmem:[#allocation3 + $0x2d0] sm:$0xff]
    %v963 = vld [vmem:[#allocation3 + $0x2d8] sm:$0xff]
    %v964 = vld [vmem:[#allocation3 + $0x2e0] sm:$0xff]
    %v965 = vld [vmem:[#allocation3 + $0x2e8] sm:$0xff]
    %v966 = vld [vmem:[#allocation3 + $0x2f0] sm:$0xff]
    %v967 = vld [vmem:[#allocation3 + $0x2f8] sm:$0xff]
    %v968 = vld [vmem:[#allocation3 + $0x300] sm:$0xff]
    %v969 = vld [vmem:[#allocation3 + $0x308] sm:$0xff]
    %v970 = vld [vmem:[#allocation3 + $0x310] sm:$0xff]
    %v971 = vld [vmem:[#allocation3 + $0x318] sm:$0xff]
    %v972 = vld [vmem:[#allocation3 + $0x320] sm:$0xff]
    %v973 = vld [vmem:[#allocation3 + $0x328] sm:$0xff]
    %v974 = vld [vmem:[#allocation3 + $0x330] sm:$0xff]
    %v975 = vld [vmem:[#allocation3 + $0x338] sm:$0xff]
    %v976 = vld [vmem:[#allocation3 + $0x340] sm:$0xff]
    %v977 = vld [vmem:[#allocation3 + $0x348] sm:$0xff]
    %v978 = vld [vmem:[#allocation3 + $0x350] sm:$0xff]
    %v979 = vld [vmem:[#allocation3 + $0x358] sm:$0xff]
    %v980 = vld [vmem:[#allocation3 + $0x360] sm:$0xff]
    %v981 = vld [vmem:[#allocation3 + $0x368] sm:$0xff]
    %v982 = vld [vmem:[#allocation3 + $0x370] sm:$0xff]
    %v983 = vld [vmem:[#allocation3 + $0x378] sm:$0xff]
    %v984 = vld [vmem:[#allocation3 + $0x380] sm:$0xff]
    %v985 = vld [vmem:[#allocation3 + $0x388] sm:$0xff]
    %v986 = vld [vmem:[#allocation3 + $0x390] sm:$0xff]
    %v987 = vld [vmem:[#allocation3 + $0x398] sm:$0xff]
    %v988 = vld [vmem:[#allocation3 + $0x3a0] sm:$0xff]
    %v989 = vld [vmem:[#allocation3 + $0x3a8] sm:$0xff]
    %v990 = vld [vmem:[#allocation3 + $0x3b0] sm:$0xff]
    %v991 = vld [vmem:[#allocation3 + $0x3b8] sm:$0xff]
    %v992 = vld [vmem:[#allocation3 + $0x3c0] sm:$0xff]
    %v993 = vld [vmem:[#allocation3 + $0x3c8] sm:$0xff]
    %v994 = vld [vmem:[#allocation3 + $0x3d0] sm:$0xff]
    %v995 = vld [vmem:[#allocation3 + $0x3d8] sm:$0xff]
    %v996 = vld [vmem:[#allocation3 + $0x3e0] sm:$0xff]
    %v997 = vld [vmem:[#allocation3 + $0x3e8] sm:$0xff]
    %v998 = vld [vmem:[#allocation3 + $0x3f0] sm:$0xff]
    %v999 = vld [vmem:[#allocation3 + $0x3f8] sm:$0xff]
    %v1000 = vld [vmem:[%s4] sm:$0xf]
    %v1002 = vlaneseq
    %v1003 = vshrl.u32 %v1002, 7
    %v1004 = vsub.s32 0, %v1003
    %v1005 = vrot.slane %v1000, %v1004
    %v1006 = vlaneseq
    %v1007 = vshrl.u32 %v1006, 7
    %v1008 = vsub.s32 1, %v1007
    %v1009 = vrot.slane %v1000, %v1008
    %v1010 = vlaneseq
    %v1011 = vshrl.u32 %v1010, 7
    %v1012 = vsub.s32 2, %v1011
    %v1013 = vrot.slane %v1000, %v1012
    %v1014 = vlaneseq
    %v1015 = vshrl.u32 %v1014, 7
    %v1016 = vsub.s32 3, %v1015
    %v1017 = vrot.slane %v1000, %v1016
    %v1150 = vunpack.c.l.b16 %v872
    %v1151 = vunpack.c.h.b16 %v872
    %v1152 = vunpack.c.l.b16 %v873
    %v1153 = vunpack.c.h.b16 %v873
    %v1154 = vunpack.c.l.b16 %v874
    %v1155 = vunpack.c.h.b16 %v874
    %v1156 = vunpack.c.l.b16 %v875
    %v1157 = vunpack.c.h.b16 %v875
    %v1158 = vunpack.c.l.b16 %v876
    %v1159 = vunpack.c.h.b16 %v876
    %v1160 = vunpack.c.l.b16 %v877
    %v1161 = vunpack.c.h.b16 %v877
    %v1162 = vunpack.c.l.b16 %v878
    %v1163 = vunpack.c.h.b16 %v878
    %v1164 = vunpack.c.l.b16 %v879
    %v1165 = vunpack.c.h.b16 %v879
    %v1166 = vunpack.c.l.b16 %v880
    %v1167 = vunpack.c.h.b16 %v880
    %v1168 = vunpack.c.l.b16 %v881
    %v1169 = vunpack.c.h.b16 %v881
    %v1170 = vunpack.c.l.b16 %v882
    %v1171 = vunpack.c.h.b16 %v882
    %v1172 = vunpack.c.l.b16 %v883
    %v1173 = vunpack.c.h.b16 %v883
    %v1174 = vunpack.c.l.b16 %v884
    %v1175 = vunpack.c.h.b16 %v884
    %v1176 = vunpack.c.l.b16 %v885
    %v1177 = vunpack.c.h.b16 %v885
    %v1178 = vunpack.c.l.b16 %v886
    %v1179 = vunpack.c.h.b16 %v886
    %v1180 = vunpack.c.l.b16 %v887
    %v1181 = vunpack.c.h.b16 %v887
    %v1182 = vunpack.c.l.b16 %v888
    %v1183 = vunpack.c.h.b16 %v888
    %v1184 = vunpack.c.l.b16 %v889
    %v1185 = vunpack.c.h.b16 %v889
    %v1186 = vunpack.c.l.b16 %v890
    %v1187 = vunpack.c.h.b16 %v890
    %v1188 = vunpack.c.l.b16 %v891
    %v1189 = vunpack.c.h.b16 %v891
    %v1190 = vunpack.c.l.b16 %v892
    %v1191 = vunpack.c.h.b16 %v892
    %v1192 = vunpack.c.l.b16 %v893
    %v1193 = vunpack.c.h.b16 %v893
    %v1194 = vunpack.c.l.b16 %v894
    %v1195 = vunpack.c.h.b16 %v894
    %v1196 = vunpack.c.l.b16 %v895
    %v1197 = vunpack.c.h.b16 %v895
    %v1198 = vunpack.c.l.b16 %v896
    %v1199 = vunpack.c.h.b16 %v896
    %v1200 = vunpack.c.l.b16 %v897
    %v1201 = vunpack.c.h.b16 %v897
    %v1202 = vunpack.c.l.b16 %v898
    %v1203 = vunpack.c.h.b16 %v898
    %v1204 = vunpack.c.l.b16 %v899
    %v1205 = vunpack.c.h.b16 %v899
    %v1206 = vunpack.c.l.b16 %v900
    %v1207 = vunpack.c.h.b16 %v900
    %v1208 = vunpack.c.l.b16 %v901
    %v1209 = vunpack.c.h.b16 %v901
    %v1210 = vunpack.c.l.b16 %v902
    %v1211 = vunpack.c.h.b16 %v902
    %v1212 = vunpack.c.l.b16 %v903
    %v1213 = vunpack.c.h.b16 %v903
    %v1214 = vunpack.c.l.b16 %v904
    %v1215 = vunpack.c.h.b16 %v904
    %v1216 = vunpack.c.l.b16 %v905
    %v1217 = vunpack.c.h.b16 %v905
    %v1218 = vunpack.c.l.b16 %v906
    %v1219 = vunpack.c.h.b16 %v906
    %v1220 = vunpack.c.l.b16 %v907
    %v1221 = vunpack.c.h.b16 %v907
    %v1222 = vunpack.c.l.b16 %v908
    %v1223 = vunpack.c.h.b16 %v908
    %v1224 = vunpack.c.l.b16 %v909
    %v1225 = vunpack.c.h.b16 %v909
    %v1226 = vunpack.c.l.b16 %v910
    %v1227 = vunpack.c.h.b16 %v910
    %v1228 = vunpack.c.l.b16 %v911
    %v1229 = vunpack.c.h.b16 %v911
    %v1230 = vunpack.c.l.b16 %v912
    %v1231 = vunpack.c.h.b16 %v912
    %v1232 = vunpack.c.l.b16 %v913
    %v1233 = vunpack.c.h.b16 %v913
    %v1234 = vunpack.c.l.b16 %v914
    %v1235 = vunpack.c.h.b16 %v914
    %v1236 = vunpack.c.l.b16 %v915
    %v1237 = vunpack.c.h.b16 %v915
    %v1238 = vunpack.c.l.b16 %v916
    %v1239 = vunpack.c.h.b16 %v916
    %v1240 = vunpack.c.l.b16 %v917
    %v1241 = vunpack.c.h.b16 %v917
    %v1242 = vunpack.c.l.b16 %v918
    %v1243 = vunpack.c.h.b16 %v918
    %v1244 = vunpack.c.l.b16 %v919
    %v1245 = vunpack.c.h.b16 %v919
    %v1246 = vunpack.c.l.b16 %v920
    %v1247 = vunpack.c.h.b16 %v920
    %v1248 = vunpack.c.l.b16 %v921
    %v1249 = vunpack.c.h.b16 %v921
    %v1250 = vunpack.c.l.b16 %v922
    %v1251 = vunpack.c.h.b16 %v922
    %v1252 = vunpack.c.l.b16 %v923
    %v1253 = vunpack.c.h.b16 %v923
    %v1254 = vunpack.c.l.b16 %v924
    %v1255 = vunpack.c.h.b16 %v924
    %v1256 = vunpack.c.l.b16 %v925
    %v1257 = vunpack.c.h.b16 %v925
    %v1258 = vunpack.c.l.b16 %v926
    %v1259 = vunpack.c.h.b16 %v926
    %v1260 = vunpack.c.l.b16 %v927
    %v1261 = vunpack.c.h.b16 %v927
    %v1262 = vunpack.c.l.b16 %v928
    %v1263 = vunpack.c.h.b16 %v928
    %v1264 = vunpack.c.l.b16 %v929
    %v1265 = vunpack.c.h.b16 %v929
    %v1266 = vunpack.c.l.b16 %v930
    %v1267 = vunpack.c.h.b16 %v930
    %v1268 = vunpack.c.l.b16 %v931
    %v1269 = vunpack.c.h.b16 %v931
    %v1270 = vunpack.c.l.b16 %v932
    %v1271 = vunpack.c.h.b16 %v932
    %v1272 = vunpack.c.l.b16 %v933
    %v1273 = vunpack.c.h.b16 %v933
    %v1274 = vunpack.c.l.b16 %v934
    %v1275 = vunpack.c.h.b16 %v934
    %v1276 = vunpack.c.l.b16 %v935
    %v1277 = vunpack.c.h.b16 %v935
    %v1278 = vunpack.c.l.b16 %v936
    %v1279 = vunpack.c.h.b16 %v936
    %v1280 = vunpack.c.l.b16 %v937
    %v1281 = vunpack.c.h.b16 %v937
    %v1282 = vunpack.c.l.b16 %v938
    %v1283 = vunpack.c.h.b16 %v938
    %v1284 = vunpack.c.l.b16 %v939
    %v1285 = vunpack.c.h.b16 %v939
    %v1286 = vunpack.c.l.b16 %v940
    %v1287 = vunpack.c.h.b16 %v940
    %v1288 = vunpack.c.l.b16 %v941
    %v1289 = vunpack.c.h.b16 %v941
    %v1290 = vunpack.c.l.b16 %v942
    %v1291 = vunpack.c.h.b16 %v942
    %v1292 = vunpack.c.l.b16 %v943
    %v1293 = vunpack.c.h.b16 %v943
    %v1294 = vunpack.c.l.b16 %v944
    %v1295 = vunpack.c.h.b16 %v944
    %v1296 = vunpack.c.l.b16 %v945
    %v1297 = vunpack.c.h.b16 %v945
    %v1298 = vunpack.c.l.b16 %v946
    %v1299 = vunpack.c.h.b16 %v946
    %v1300 = vunpack.c.l.b16 %v947
    %v1301 = vunpack.c.h.b16 %v947
    %v1302 = vunpack.c.l.b16 %v948
    %v1303 = vunpack.c.h.b16 %v948
    %v1304 = vunpack.c.l.b16 %v949
    %v1305 = vunpack.c.h.b16 %v949
    %v1306 = vunpack.c.l.b16 %v950
    %v1307 = vunpack.c.h.b16 %v950
    %v1308 = vunpack.c.l.b16 %v951
    %v1309 = vunpack.c.h.b16 %v951
    %v1310 = vunpack.c.l.b16 %v952
    %v1311 = vunpack.c.h.b16 %v952
    %v1312 = vunpack.c.l.b16 %v953
    %v1313 = vunpack.c.h.b16 %v953
    %v1314 = vunpack.c.l.b16 %v954
    %v1315 = vunpack.c.h.b16 %v954
    %v1316 = vunpack.c.l.b16 %v955
    %v1317 = vunpack.c.h.b16 %v955
    %v1318 = vunpack.c.l.b16 %v956
    %v1319 = vunpack.c.h.b16 %v956
    %v1320 = vunpack.c.l.b16 %v957
    %v1321 = vunpack.c.h.b16 %v957
    %v1322 = vunpack.c.l.b16 %v958
    %v1323 = vunpack.c.h.b16 %v958
    %v1324 = vunpack.c.l.b16 %v959
    %v1325 = vunpack.c.h.b16 %v959
    %v1326 = vunpack.c.l.b16 %v960
    %v1327 = vunpack.c.h.b16 %v960
    %v1328 = vunpack.c.l.b16 %v961
    %v1329 = vunpack.c.h.b16 %v961
    %v1330 = vunpack.c.l.b16 %v962
    %v1331 = vunpack.c.h.b16 %v962
    %v1332 = vunpack.c.l.b16 %v963
    %v1333 = vunpack.c.h.b16 %v963
    %v1334 = vunpack.c.l.b16 %v964
    %v1335 = vunpack.c.h.b16 %v964
    %v1336 = vunpack.c.l.b16 %v965
    %v1337 = vunpack.c.h.b16 %v965
    %v1338 = vunpack.c.l.b16 %v966
    %v1339 = vunpack.c.h.b16 %v966
    %v1340 = vunpack.c.l.b16 %v967
    %v1341 = vunpack.c.h.b16 %v967
    %v1342 = vunpack.c.l.b16 %v968
    %v1343 = vunpack.c.h.b16 %v968
    %v1344 = vunpack.c.l.b16 %v969
    %v1345 = vunpack.c.h.b16 %v969
    %v1346 = vunpack.c.l.b16 %v970
    %v1347 = vunpack.c.h.b16 %v970
    %v1348 = vunpack.c.l.b16 %v971
    %v1349 = vunpack.c.h.b16 %v971
    %v1350 = vunpack.c.l.b16 %v972
    %v1351 = vunpack.c.h.b16 %v972
    %v1352 = vunpack.c.l.b16 %v973
    %v1353 = vunpack.c.h.b16 %v973
    %v1354 = vunpack.c.l.b16 %v974
    %v1355 = vunpack.c.h.b16 %v974
    %v1356 = vunpack.c.l.b16 %v975
    %v1357 = vunpack.c.h.b16 %v975
    %v1358 = vunpack.c.l.b16 %v976
    %v1359 = vunpack.c.h.b16 %v976
    %v1360 = vunpack.c.l.b16 %v977
    %v1361 = vunpack.c.h.b16 %v977
    %v1362 = vunpack.c.l.b16 %v978
    %v1363 = vunpack.c.h.b16 %v978
    %v1364 = vunpack.c.l.b16 %v979
    %v1365 = vunpack.c.h.b16 %v979
    %v1366 = vunpack.c.l.b16 %v980
    %v1367 = vunpack.c.h.b16 %v980
    %v1368 = vunpack.c.l.b16 %v981
    %v1369 = vunpack.c.h.b16 %v981
    %v1370 = vunpack.c.l.b16 %v982
    %v1371 = vunpack.c.h.b16 %v982
    %v1372 = vunpack.c.l.b16 %v983
    %v1373 = vunpack.c.h.b16 %v983
    %v1374 = vunpack.c.l.b16 %v984
    %v1375 = vunpack.c.h.b16 %v984
    %v1376 = vunpack.c.l.b16 %v985
    %v1377 = vunpack.c.h.b16 %v985
    %v1378 = vunpack.c.l.b16 %v986
    %v1379 = vunpack.c.h.b16 %v986
    %v1380 = vunpack.c.l.b16 %v987
    %v1381 = vunpack.c.h.b16 %v987
    %v1382 = vunpack.c.l.b16 %v988
    %v1383 = vunpack.c.h.b16 %v988
    %v1384 = vunpack.c.l.b16 %v989
    %v1385 = vunpack.c.h.b16 %v989
    %v1386 = vunpack.c.l.b16 %v990
    %v1387 = vunpack.c.h.b16 %v990
    %v1388 = vunpack.c.l.b16 %v991
    %v1389 = vunpack.c.h.b16 %v991
    %v1390 = vunpack.c.l.b16 %v992
    %v1391 = vunpack.c.h.b16 %v992
    %v1392 = vunpack.c.l.b16 %v993
    %v1393 = vunpack.c.h.b16 %v993
    %v1394 = vunpack.c.l.b16 %v994
    %v1395 = vunpack.c.h.b16 %v994
    %v1396 = vunpack.c.l.b16 %v995
    %v1397 = vunpack.c.h.b16 %v995
    %v1398 = vunpack.c.l.b16 %v996
    %v1399 = vunpack.c.h.b16 %v996
    %v1400 = vunpack.c.l.b16 %v997
    %v1401 = vunpack.c.h.b16 %v997
    %v1402 = vunpack.c.l.b16 %v998
    %v1403 = vunpack.c.h.b16 %v998
    %v1404 = vunpack.c.l.b16 %v999
    %v1405 = vunpack.c.h.b16 %v999
    %v1406 = vpack.c.b16 %v1154, %v1150
    %v1407 = vpack.c.b16 %v1155, %v1151
    %v1408 = vpack.c.b16 %v1156, %v1152
    %v1409 = vpack.c.b16 %v1157, %v1153
    %v1410 = vpack.c.b16 %v1162, %v1158
    %v1411 = vpack.c.b16 %v1163, %v1159
    %v1412 = vpack.c.b16 %v1164, %v1160
    %v1413 = vpack.c.b16 %v1165, %v1161
    %v1414 = vpack.c.b16 %v1170, %v1166
    %v1415 = vpack.c.b16 %v1171, %v1167
    %v1416 = vpack.c.b16 %v1172, %v1168
    %v1417 = vpack.c.b16 %v1173, %v1169
    %v1418 = vpack.c.b16 %v1178, %v1174
    %v1419 = vpack.c.b16 %v1179, %v1175
    %v1420 = vpack.c.b16 %v1180, %v1176
    %v1421 = vpack.c.b16 %v1181, %v1177
    %v1422 = vpack.c.b16 %v1186, %v1182
    %v1423 = vpack.c.b16 %v1187, %v1183
    %v1424 = vpack.c.b16 %v1188, %v1184
    %v1425 = vpack.c.b16 %v1189, %v1185
    %v1426 = vpack.c.b16 %v1194, %v1190
    %v1427 = vpack.c.b16 %v1195, %v1191
    %v1428 = vpack.c.b16 %v1196, %v1192
    %v1429 = vpack.c.b16 %v1197, %v1193
    %v1430 = vpack.c.b16 %v1202, %v1198
    %v1431 = vpack.c.b16 %v1203, %v1199
    %v1432 = vpack.c.b16 %v1204, %v1200
    %v1433 = vpack.c.b16 %v1205, %v1201
    %v1434 = vpack.c.b16 %v1210, %v1206
    %v1435 = vpack.c.b16 %v1211, %v1207
    %v1436 = vpack.c.b16 %v1212, %v1208
    %v1437 = vpack.c.b16 %v1213, %v1209
    %v1438 = vpack.c.b16 %v1218, %v1214
    %v1439 = vpack.c.b16 %v1219, %v1215
    %v1440 = vpack.c.b16 %v1220, %v1216
    %v1441 = vpack.c.b16 %v1221, %v1217
    %v1442 = vpack.c.b16 %v1226, %v1222
    %v1443 = vpack.c.b16 %v1227, %v1223
    %v1444 = vpack.c.b16 %v1228, %v1224
    %v1445 = vpack.c.b16 %v1229, %v1225
    %v1446 = vpack.c.b16 %v1234, %v1230
    %v1447 = vpack.c.b16 %v1235, %v1231
    %v1448 = vpack.c.b16 %v1236, %v1232
    %v1449 = vpack.c.b16 %v1237, %v1233
    %v1450 = vpack.c.b16 %v1242, %v1238
    %v1451 = vpack.c.b16 %v1243, %v1239
    %v1452 = vpack.c.b16 %v1244, %v1240
    %v1453 = vpack.c.b16 %v1245, %v1241
    %v1454 = vpack.c.b16 %v1250, %v1246
    %v1455 = vpack.c.b16 %v1251, %v1247
    %v1456 = vpack.c.b16 %v1252, %v1248
    %v1457 = vpack.c.b16 %v1253, %v1249
    %v1458 = vpack.c.b16 %v1258, %v1254
    %v1459 = vpack.c.b16 %v1259, %v1255
    %v1460 = vpack.c.b16 %v1260, %v1256
    %v1461 = vpack.c.b16 %v1261, %v1257
    %v1462 = vpack.c.b16 %v1266, %v1262
    %v1463 = vpack.c.b16 %v1267, %v1263
    %v1464 = vpack.c.b16 %v1268, %v1264
    %v1465 = vpack.c.b16 %v1269, %v1265
    %v1466 = vpack.c.b16 %v1274, %v1270
    %v1467 = vpack.c.b16 %v1275, %v1271
    %v1468 = vpack.c.b16 %v1276, %v1272
    %v1469 = vpack.c.b16 %v1277, %v1273
    %v1470 = vpack.c.b16 %v1282, %v1278
    %v1471 = vpack.c.b16 %v1283, %v1279
    %v1472 = vpack.c.b16 %v1284, %v1280
    %v1473 = vpack.c.b16 %v1285, %v1281
    %v1474 = vpack.c.b16 %v1290, %v1286
    %v1475 = vpack.c.b16 %v1291, %v1287
    %v1476 = vpack.c.b16 %v1292, %v1288
    %v1477 = vpack.c.b16 %v1293, %v1289
    %v1478 = vpack.c.b16 %v1298, %v1294
    %v1479 = vpack.c.b16 %v1299, %v1295
    %v1480 = vpack.c.b16 %v1300, %v1296
    %v1481 = vpack.c.b16 %v1301, %v1297
    %v1482 = vpack.c.b16 %v1306, %v1302
    %v1483 = vpack.c.b16 %v1307, %v1303
    %v1484 = vpack.c.b16 %v1308, %v1304
    %v1485 = vpack.c.b16 %v1309, %v1305
    %v1486 = vpack.c.b16 %v1314, %v1310
    %v1487 = vpack.c.b16 %v1315, %v1311
    %v1488 = vpack.c.b16 %v1316, %v1312
    %v1489 = vpack.c.b16 %v1317, %v1313
    %v1490 = vpack.c.b16 %v1322, %v1318
    %v1491 = vpack.c.b16 %v1323, %v1319
    %v1492 = vpack.c.b16 %v1324, %v1320
    %v1493 = vpack.c.b16 %v1325, %v1321
    %v1494 = vpack.c.b16 %v1330, %v1326
    %v1495 = vpack.c.b16 %v1331, %v1327
    %v1496 = vpack.c.b16 %v1332, %v1328
    %v1497 = vpack.c.b16 %v1333, %v1329
    %v1498 = vpack.c.b16 %v1338, %v1334
    %v1499 = vpack.c.b16 %v1339, %v1335
    %v1500 = vpack.c.b16 %v1340, %v1336
    %v1501 = vpack.c.b16 %v1341, %v1337
    %v1502 = vpack.c.b16 %v1346, %v1342
    %v1503 = vpack.c.b16 %v1347, %v1343
    %v1504 = vpack.c.b16 %v1348, %v1344
    %v1505 = vpack.c.b16 %v1349, %v1345
    %v1506 = vpack.c.b16 %v1354, %v1350
    %v1507 = vpack.c.b16 %v1355, %v1351
    %v1508 = vpack.c.b16 %v1356, %v1352
    %v1509 = vpack.c.b16 %v1357, %v1353
    %v1510 = vpack.c.b16 %v1362, %v1358
    %v1511 = vpack.c.b16 %v1363, %v1359
    %v1512 = vpack.c.b16 %v1364, %v1360
    %v1513 = vpack.c.b16 %v1365, %v1361
    %v1514 = vpack.c.b16 %v1370, %v1366
    %v1515 = vpack.c.b16 %v1371, %v1367
    %v1516 = vpack.c.b16 %v1372, %v1368
    %v1517 = vpack.c.b16 %v1373, %v1369
    %v1518 = vpack.c.b16 %v1378, %v1374
    %v1519 = vpack.c.b16 %v1379, %v1375
    %v1520 = vpack.c.b16 %v1380, %v1376
    %v1521 = vpack.c.b16 %v1381, %v1377
    %v1522 = vpack.c.b16 %v1386, %v1382
    %v1523 = vpack.c.b16 %v1387, %v1383
    %v1524 = vpack.c.b16 %v1388, %v1384
    %v1525 = vpack.c.b16 %v1389, %v1385
    %v1526 = vpack.c.b16 %v1394, %v1390
    %v1527 = vpack.c.b16 %v1395, %v1391
    %v1528 = vpack.c.b16 %v1396, %v1392
    %v1529 = vpack.c.b16 %v1397, %v1393
    %v1530 = vpack.c.b16 %v1402, %v1398
    %v1531 = vpack.c.b16 %v1403, %v1399
    %v1532 = vpack.c.b16 %v1404, %v1400
    %v1533 = vpack.c.b16 %v1405, %v1401
    %1662 = vmatprep.subr.bf16.mxu0 %v1407
    %1663 = vmatpush1.bf16.msra.mxu0 %v1406
    %1664 = vmatprep.subr.bf16.mxu0 %v1411
    %1665 = vmatpush1.bf16.msra.mxu0 %v1410
    %1666 = vmatprep.subr.bf16.mxu0 %v1415
    %1667 = vmatpush1.bf16.msra.mxu0 %v1414
    %1668 = vmatprep.subr.bf16.mxu0 %v1419
    %1669 = vmatpush1.bf16.msra.mxu0 %v1418
    %1670 = vmatprep.subr.bf16.mxu0 %v1423
    %1671 = vmatpush1.bf16.msra.mxu0 %v1422
    %1672 = vmatprep.subr.bf16.mxu0 %v1427
    %1673 = vmatpush1.bf16.msra.mxu0 %v1426
    %1674 = vmatprep.subr.bf16.mxu0 %v1431
    %1675 = vmatpush1.bf16.msra.mxu0 %v1430
    %1676 = vmatprep.subr.bf16.mxu0 %v1435
    %1677 = vmatpush1.bf16.msra.mxu0 %v1434
    %1678 = vmatprep.subr.bf16.mxu0 %v1439
    %1679 = vmatpush1.bf16.msra.mxu0 %v1438
    %1680 = vmatprep.subr.bf16.mxu0 %v1443
    %1681 = vmatpush1.bf16.msra.mxu0 %v1442
    %1682 = vmatprep.subr.bf16.mxu0 %v1447
    %1683 = vmatpush1.bf16.msra.mxu0 %v1446
    %1684 = vmatprep.subr.bf16.mxu0 %v1451
    %1685 = vmatpush1.bf16.msra.mxu0 %v1450
    %1686 = vmatprep.subr.bf16.mxu0 %v1455
    %1687 = vmatpush1.bf16.msra.mxu0 %v1454
    %1688 = vmatprep.subr.bf16.mxu0 %v1459
    %1689 = vmatpush1.bf16.msra.mxu0 %v1458
    %1690 = vmatprep.subr.bf16.mxu0 %v1463
    %1691 = vmatpush1.bf16.msra.mxu0 %v1462
    %1692 = vmatprep.subr.bf16.mxu0 %v1467
    %1693 = vmatpush1.bf16.msra.mxu0 %v1466
    %1694 = vmatprep.mubr.bf16.mxu0 %v809
    %1695 = vmatmul.mubr.bf16.gmra.mrb[0].mxu0 %v808
    %v1696 = vpop.f32.mrb[0].mxu0
    %v1697 = vadd.f32 %v1005, %v1696
    %v1698 = vpop.f32.mrb[0].mxu0
    %v1699 = vadd.f32 %v1009, %v1698
    %v1700 = vpop.f32.mrb[0].mxu0
    %v1701 = vadd.f32 %v1005, %v1700
    %v1702 = vpop.f32.mrb[0].mxu0
    %v1703 = vadd.f32 %v1009, %v1702
    %1704 = vmatprep.mubr.bf16.mxu0 %v813
    %1705 = vmatmul.mubr.bf16.gmra.mrb[0].mxu0 %v812
    %v1706 = vpop.f32.mrb[0].mxu0
    %v1707 = vadd.f32 %v1005, %v1706
    %v1708 = vpop.f32.mrb[0].mxu0
    %v1709 = vadd.f32 %v1009, %v1708
    %v1710 = vpop.f32.mrb[0].mxu0
    %v1711 = vadd.f32 %v1005, %v1710
    %v1712 = vpop.f32.mrb[0].mxu0
    %v1713 = vadd.f32 %v1009, %v1712
    %1714 = vmatprep.mubr.bf16.mxu0 %v817
    %1715 = vmatmul.mubr.bf16.gmra.mrb[0].mxu0 %v816
    %v1716 = vpop.f32.mrb[0].mxu0
    %v1717 = vadd.f32 %v1005, %v1716
    %v1718 = vpop.f32.mrb[0].mxu0
    %v1719 = vadd.f32 %v1009, %v1718
    %v1720 = vpop.f32.mrb[0].mxu0
    %v1721 = vadd.f32 %v1005, %v1720
    %v1722 = vpop.f32.mrb[0].mxu0
    %v1723 = vadd.f32 %v1009, %v1722
    %1724 = vmatprep.mubr.bf16.mxu0 %v821
    %1725 = vmatmul.mubr.bf16.gmra.mrb[0].mxu0 %v820
    %v1726 = vpop.f32.mrb[0].mxu0
    %v1727 = vadd.f32 %v1005, %v1726
    %v1728 = vpop.f32.mrb[0].mxu0
    %v1729 = vadd.f32 %v1009, %v1728
    %v1730 = vpop.f32.mrb[0].mxu0
    %v1731 = vadd.f32 %v1005, %v1730
    %v1732 = vpop.f32.mrb[0].mxu0
    %v1733 = vadd.f32 %v1009, %v1732
    %1734 = vmatprep.mubr.bf16.mxu0 %v825
    %1735 = vmatmul.mubr.bf16.gmra.mrb[0].mxu0 %v824
    %v1736 = vpop.f32.mrb[0].mxu0
    %v1737 = vadd.f32 %v1005, %v1736
    %v1738 = vpop.f32.mrb[0].mxu0
    %v1739 = vadd.f32 %v1009, %v1738
    %v1740 = vpop.f32.mrb[0].mxu0
    %v1741 = vadd.f32 %v1005, %v1740
    %v1742 = vpop.f32.mrb[0].mxu0
    %v1743 = vadd.f32 %v1009, %v1742
    %1744 = vmatprep.mubr.bf16.mxu0 %v829
    %1745 = vmatmul.mubr.bf16.gmra.mrb[0].mxu0 %v828
    %v1746 = vpop.f32.mrb[0].mxu0
    %v1747 = vadd.f32 %v1005, %v1746
    %v1748 = vpop.f32.mrb[0].mxu0
    %v1749 = vadd.f32 %v1009, %v1748
    %v1750 = vpop.f32.mrb[0].mxu0
    %v1751 = vadd.f32 %v1005, %v1750
    %v1752 = vpop.f32.mrb[0].mxu0
    %v1753 = vadd.f32 %v1009, %v1752
    %1754 = vmatprep.mubr.bf16.mxu0 %v833
    %1755 = vmatmul.mubr.bf16.gmra.mrb[0].mxu0 %v832
    %v1756 = vpop.f32.mrb[0].mxu0
    %v1757 = vadd.f32 %v1005, %v1756
    %v1758 = vpop.f32.mrb[0].mxu0
    %v1759 = vadd.f32 %v1009, %v1758
    %v1760 = vpop.f32.mrb[0].mxu0
    %v1761 = vadd.f32 %v1005, %v1760
    %v1762 = vpop.f32.mrb[0].mxu0
    %v1763 = vadd.f32 %v1009, %v1762
    %1764 = vmatprep.mubr.bf16.mxu0 %v837
    %1765 = vmatmul.mubr.bf16.gmra.mrb[0].mxu0 %v836
    %v1766 = vpop.f32.mrb[0].mxu0
    %v1767 = vadd.f32 %v1005, %v1766
    %v1768 = vpop.f32.mrb[0].mxu0
    %v1769 = vadd.f32 %v1009, %v1768
    %v1770 = vpop.f32.mrb[0].mxu0
    %v1771 = vadd.f32 %v1005, %v1770
    %v1772 = vpop.f32.mrb[0].mxu0
    %v1773 = vadd.f32 %v1009, %v1772
    %1774 = vmatprep.mubr.bf16.mxu0 %v841
    %1775 = vmatmul.mubr.bf16.gmra.mrb[0].mxu0 %v840
    %v1776 = vpop.f32.mrb[0].mxu0
    %v1777 = vadd.f32 %v1005, %v1776
    %v1778 = vpop.f32.mrb[0].mxu0
    %v1779 = vadd.f32 %v1009, %v1778
    %v1780 = vpop.f32.mrb[0].mxu0
    %v1781 = vadd.f32 %v1005, %v1780
    %v1782 = vpop.f32.mrb[0].mxu0
    %v1783 = vadd.f32 %v1009, %v1782
    %1784 = vmatprep.mubr.bf16.mxu0 %v845
    %1785 = vmatmul.mubr.bf16.gmra.mrb[0].mxu0 %v844
    %v1786 = vpop.f32.mrb[0].mxu0
    %v1787 = vadd.f32 %v1005, %v1786
    %v1788 = vpop.f32.mrb[0].mxu0
    %v1789 = vadd.f32 %v1009, %v1788
    %v1790 = vpop.f32.mrb[0].mxu0
    %v1791 = vadd.f32 %v1005, %v1790
    %v1792 = vpop.f32.mrb[0].mxu0
    %v1793 = vadd.f32 %v1009, %v1792
    %1794 = vmatprep.mubr.bf16.mxu0 %v849
    %1795 = vmatmul.mubr.bf16.gmra.mrb[0].mxu0 %v848
    %v1796 = vpop.f32.mrb[0].mxu0
    %v1797 = vadd.f32 %v1005, %v1796
    %v1798 = vpop.f32.mrb[0].mxu0
    %v1799 = vadd.f32 %v1009, %v1798
    %v1800 = vpop.f32.mrb[0].mxu0
    %v1801 = vadd.f32 %v1005, %v1800
    %v1802 = vpop.f32.mrb[0].mxu0
    %v1803 = vadd.f32 %v1009, %v1802
    %1804 = vmatprep.mubr.bf16.mxu0 %v853
    %1805 = vmatmul.mubr.bf16.gmra.mrb[0].mxu0 %v852
    %v1806 = vpop.f32.mrb[0].mxu0
    %v1807 = vadd.f32 %v1005, %v1806
    %v1808 = vpop.f32.mrb[0].mxu0
    %v1809 = vadd.f32 %v1009, %v1808
    %v1810 = vpop.f32.mrb[0].mxu0
    %v1811 = vadd.f32 %v1005, %v1810
    %v1812 = vpop.f32.mrb[0].mxu0
    %v1813 = vadd.f32 %v1009, %v1812
    %1814 = vmatprep.mubr.bf16.mxu0 %v857
    %1815 = vmatmul.mubr.bf16.gmra.mrb[0].mxu0 %v856
    %v1816 = vpop.f32.mrb[0].mxu0
    %v1817 = vadd.f32 %v1005, %v1816
    %v1818 = vpop.f32.mrb[0].mxu0
    %v1819 = vadd.f32 %v1009, %v1818
    %v1820 = vpop.f32.mrb[0].mxu0
    %v1821 = vadd.f32 %v1005, %v1820
    %v1822 = vpop.f32.mrb[0].mxu0
    %v1823 = vadd.f32 %v1009, %v1822
    %1824 = vmatprep.mubr.bf16.mxu0 %v861
    %1825 = vmatmul.mubr.bf16.gmra.mrb[0].mxu0 %v860
    %v1826 = vpop.f32.mrb[0].mxu0
    %v1827 = vadd.f32 %v1005, %v1826
    %v1828 = vpop.f32.mrb[0].mxu0
    %v1829 = vadd.f32 %v1009, %v1828
    %v1830 = vpop.f32.mrb[0].mxu0
    %v1831 = vadd.f32 %v1005, %v1830
    %v1832 = vpop.f32.mrb[0].mxu0
    %v1833 = vadd.f32 %v1009, %v1832
    %1834 = vmatprep.mubr.bf16.mxu0 %v865
    %1835 = vmatmul.mubr.bf16.gmra.mrb[0].mxu0 %v864
    %v1836 = vpop.f32.mrb[0].mxu0
    %v1837 = vadd.f32 %v1005, %v1836
    %v1838 = vpop.f32.mrb[0].mxu0
    %v1839 = vadd.f32 %v1009, %v1838
    %v1840 = vpop.f32.mrb[0].mxu0
    %v1841 = vadd.f32 %v1005, %v1840
    %v1842 = vpop.f32.mrb[0].mxu0
    %v1843 = vadd.f32 %v1009, %v1842
    %1844 = vmatprep.mubr.bf16.mxu0 %v869
    %1845 = vmatmul.mubr.bf16.gmra.mrb[0].mxu0 %v868
    %v1846 = vpop.f32.mrb[0].mxu0
    %v1847 = vadd.f32 %v1005, %v1846
    %v1848 = vpop.f32.mrb[0].mxu0
    %v1849 = vadd.f32 %v1009, %v1848
    %v1850 = vpop.f32.mrb[0].mxu0
    %v1851 = vadd.f32 %v1005, %v1850
    %v1852 = vpop.f32.mrb[0].mxu0
    %v1853 = vadd.f32 %v1009, %v1852
    %1854 = vdwg.mxu0
    %1855 = vmatprep.subr.bf16.mxu0 %v1471
    %1856 = vmatpush1.bf16.msra.mxu0 %v1470
    %1857 = vmatprep.subr.bf16.mxu0 %v1475
    %1858 = vmatpush1.bf16.msra.mxu0 %v1474
    %1859 = vmatprep.subr.bf16.mxu0 %v1479
    %1860 = vmatpush1.bf16.msra.mxu0 %v1478
    %1861 = vmatprep.subr.bf16.mxu0 %v1483
    %1862 = vmatpush1.bf16.msra.mxu0 %v1482
    %1863 = vmatprep.subr.bf16.mxu0 %v1487
    %1864 = vmatpush1.bf16.msra.mxu0 %v1486
    %1865 = vmatprep.subr.bf16.mxu0 %v1491
    %1866 = vmatpush1.bf16.msra.mxu0 %v1490
    %1867 = vmatprep.subr.bf16.mxu0 %v1495
    %1868 = vmatpush1.bf16.msra.mxu0 %v1494
    %1869 = vmatprep.subr.bf16.mxu0 %v1499
    %1870 = vmatpush1.bf16.msra.mxu0 %v1498
    %1871 = vmatprep.subr.bf16.mxu0 %v1503
    %1872 = vmatpush1.bf16.msra.mxu0 %v1502
    %1873 = vmatprep.subr.bf16.mxu0 %v1507
    %1874 = vmatpush1.bf16.msra.mxu0 %v1506
    %1875 = vmatprep.subr.bf16.mxu0 %v1511
    %1876 = vmatpush1.bf16.msra.mxu0 %v1510
    %1877 = vmatprep.subr.bf16.mxu0 %v1515
    %1878 = vmatpush1.bf16.msra.mxu0 %v1514
    %1879 = vmatprep.subr.bf16.mxu0 %v1519
    %1880 = vmatpush1.bf16.msra.mxu0 %v1518
    %1881 = vmatprep.subr.bf16.mxu0 %v1523
    %1882 = vmatpush1.bf16.msra.mxu0 %v1522
    %1883 = vmatprep.subr.bf16.mxu0 %v1527
    %1884 = vmatpush1.bf16.msra.mxu0 %v1526
    %1885 = vmatprep.subr.bf16.mxu0 %v1531
    %1886 = vmatpush1.bf16.msra.mxu0 %v1530
    %1887 = vmatprep.mubr.bf16.mxu0 %v811
    %1888 = vmatmul.mubr.bf16.gmra.mrb[0].mxu0 %v810
    %v1889 = vpop.f32.mrb[0].mxu0
    %v1890 = vadd.f32 %v1697, %v1889
    %v1891 = vpop.f32.mrb[0].mxu0
    %v1892 = vadd.f32 %v1699, %v1891
    %v1893 = vpop.f32.mrb[0].mxu0
    %v1894 = vadd.f32 %v1701, %v1893
    %v1895 = vpop.f32.mrb[0].mxu0
    %v1896 = vadd.f32 %v1703, %v1895
    %1897 = vmatprep.mubr.bf16.mxu0 %v815
    %1898 = vmatmul.mubr.bf16.gmra.mrb[0].mxu0 %v814
    %v1899 = vpop.f32.mrb[0].mxu0
    %v1900 = vadd.f32 %v1707, %v1899
    %v1901 = vpop.f32.mrb[0].mxu0
    %v1902 = vadd.f32 %v1709, %v1901
    %v1903 = vpop.f32.mrb[0].mxu0
    %v1904 = vadd.f32 %v1711, %v1903
    %v1905 = vpop.f32.mrb[0].mxu0
    %v1906 = vadd.f32 %v1713, %v1905
    %1907 = vmatprep.mubr.bf16.mxu0 %v819
    %1908 = vmatmul.mubr.bf16.gmra.mrb[0].mxu0 %v818
    %v1909 = vpop.f32.mrb[0].mxu0
    %v1910 = vadd.f32 %v1717, %v1909
    %v1911 = vpop.f32.mrb[0].mxu0
    %v1912 = vadd.f32 %v1719, %v1911
    %v1913 = vpop.f32.mrb[0].mxu0
    %v1914 = vadd.f32 %v1721, %v1913
    %v1915 = vpop.f32.mrb[0].mxu0
    %v1916 = vadd.f32 %v1723, %v1915
    %1917 = vmatprep.mubr.bf16.mxu0 %v823
    %1918 = vmatmul.mubr.bf16.gmra.mrb[0].mxu0 %v822
    %v1919 = vpop.f32.mrb[0].mxu0
    %v1920 = vadd.f32 %v1727, %v1919
    %v1921 = vpop.f32.mrb[0].mxu0
    %v1922 = vadd.f32 %v1729, %v1921
    %v1923 = vpop.f32.mrb[0].mxu0
    %v1924 = vadd.f32 %v1731, %v1923
    %v1925 = vpop.f32.mrb[0].mxu0
    %v1926 = vadd.f32 %v1733, %v1925
    %1927 = vmatprep.mubr.bf16.mxu0 %v827
    %1928 = vmatmul.mubr.bf16.gmra.mrb[0].mxu0 %v826
    %v1929 = vpop.f32.mrb[0].mxu0
    %v1930 = vadd.f32 %v1737, %v1929
    %v1931 = vpop.f32.mrb[0].mxu0
    %v1932 = vadd.f32 %v1739, %v1931
    %v1933 = vpop.f32.mrb[0].mxu0
    %v1934 = vadd.f32 %v1741, %v1933
    %v1935 = vpop.f32.mrb[0].mxu0
    %v1936 = vadd.f32 %v1743, %v1935
    %1937 = vmatprep.mubr.bf16.mxu0 %v831
    %1938 = vmatmul.mubr.bf16.gmra.mrb[0].mxu0 %v830
    %v1939 = vpop.f32.mrb[0].mxu0
    %v1940 = vadd.f32 %v1747, %v1939
    %v1941 = vpop.f32.mrb[0].mxu0
    %v1942 = vadd.f32 %v1749, %v1941
    %v1943 = vpop.f32.mrb[0].mxu0
    %v1944 = vadd.f32 %v1751, %v1943
    %v1945 = vpop.f32.mrb[0].mxu0
    %v1946 = vadd.f32 %v1753, %v1945
    %1947 = vmatprep.mubr.bf16.mxu0 %v835
    %1948 = vmatmul.mubr.bf16.gmra.mrb[0].mxu0 %v834
    %v1949 = vpop.f32.mrb[0].mxu0
    %v1950 = vadd.f32 %v1757, %v1949
    %v1951 = vpop.f32.mrb[0].mxu0
    %v1952 = vadd.f32 %v1759, %v1951
    %v1953 = vpop.f32.mrb[0].mxu0
    %v1954 = vadd.f32 %v1761, %v1953
    %v1955 = vpop.f32.mrb[0].mxu0
    %v1956 = vadd.f32 %v1763, %v1955
    %1957 = vmatprep.mubr.bf16.mxu0 %v839
    %1958 = vmatmul.mubr.bf16.gmra.mrb[0].mxu0 %v838
    %v1959 = vpop.f32.mrb[0].mxu0
    %v1960 = vadd.f32 %v1767, %v1959
    %v1961 = vpop.f32.mrb[0].mxu0
    %v1962 = vadd.f32 %v1769, %v1961
    %v1963 = vpop.f32.mrb[0].mxu0
    %v1964 = vadd.f32 %v1771, %v1963
    %v1965 = vpop.f32.mrb[0].mxu0
    %v1966 = vadd.f32 %v1773, %v1965
    %1967 = vmatprep.mubr.bf16.mxu0 %v843
    %1968 = vmatmul.mubr.bf16.gmra.mrb[0].mxu0 %v842
    %v1969 = vpop.f32.mrb[0].mxu0
    %v1970 = vadd.f32 %v1777, %v1969
    %v1971 = vpop.f32.mrb[0].mxu0
    %v1972 = vadd.f32 %v1779, %v1971
    %v1973 = vpop.f32.mrb[0].mxu0
    %v1974 = vadd.f32 %v1781, %v1973
    %v1975 = vpop.f32.mrb[0].mxu0
    %v1976 = vadd.f32 %v1783, %v1975
    %1977 = vmatprep.mubr.bf16.mxu0 %v847
    %1978 = vmatmul.mubr.bf16.gmra.mrb[0].mxu0 %v846
    %v1979 = vpop.f32.mrb[0].mxu0
    %v1980 = vadd.f32 %v1787, %v1979
    %v1981 = vpop.f32.mrb[0].mxu0
    %v1982 = vadd.f32 %v1789, %v1981
    %v1983 = vpop.f32.mrb[0].mxu0
    %v1984 = vadd.f32 %v1791, %v1983
    %v1985 = vpop.f32.mrb[0].mxu0
    %v1986 = vadd.f32 %v1793, %v1985
    %1987 = vmatprep.mubr.bf16.mxu0 %v851
    %1988 = vmatmul.mubr.bf16.gmra.mrb[0].mxu0 %v850
    %v1989 = vpop.f32.mrb[0].mxu0
    %v1990 = vadd.f32 %v1797, %v1989
    %v1991 = vpop.f32.mrb[0].mxu0
    %v1992 = vadd.f32 %v1799, %v1991
    %v1993 = vpop.f32.mrb[0].mxu0
    %v1994 = vadd.f32 %v1801, %v1993
    %v1995 = vpop.f32.mrb[0].mxu0
    %v1996 = vadd.f32 %v1803, %v1995
    %1997 = vmatprep.mubr.bf16.mxu0 %v855
    %1998 = vmatmul.mubr.bf16.gmra.mrb[0].mxu0 %v854
    %v1999 = vpop.f32.mrb[0].mxu0
    %v2000 = vadd.f32 %v1807, %v1999
    %v2001 = vpop.f32.mrb[0].mxu0
    %v2002 = vadd.f32 %v1809, %v2001
    %v2003 = vpop.f32.mrb[0].mxu0
    %v2004 = vadd.f32 %v1811, %v2003
    %v2005 = vpop.f32.mrb[0].mxu0
    %v2006 = vadd.f32 %v1813, %v2005
    %2007 = vmatprep.mubr.bf16.mxu0 %v859
    %2008 = vmatmul.mubr.bf16.gmra.mrb[0].mxu0 %v858
    %v2009 = vpop.f32.mrb[0].mxu0
    %v2010 = vadd.f32 %v1817, %v2009
    %v2011 = vpop.f32.mrb[0].mxu0
    %v2012 = vadd.f32 %v1819, %v2011
    %v2013 = vpop.f32.mrb[0].mxu0
    %v2014 = vadd.f32 %v1821, %v2013
    %v2015 = vpop.f32.mrb[0].mxu0
    %v2016 = vadd.f32 %v1823, %v2015
    %2017 = vmatprep.mubr.bf16.mxu0 %v863
    %2018 = vmatmul.mubr.bf16.gmra.mrb[0].mxu0 %v862
    %v2019 = vpop.f32.mrb[0].mxu0
    %v2020 = vadd.f32 %v1827, %v2019
    %v2021 = vpop.f32.mrb[0].mxu0
    %v2022 = vadd.f32 %v1829, %v2021
    %v2023 = vpop.f32.mrb[0].mxu0
    %v2024 = vadd.f32 %v1831, %v2023
    %v2025 = vpop.f32.mrb[0].mxu0
    %v2026 = vadd.f32 %v1833, %v2025
    %2027 = vmatprep.mubr.bf16.mxu0 %v867
    %2028 = vmatmul.mubr.bf16.gmra.mrb[0].mxu0 %v866
    %v2029 = vpop.f32.mrb[0].mxu0
    %v2030 = vadd.f32 %v1837, %v2029
    %v2031 = vpop.f32.mrb[0].mxu0
    %v2032 = vadd.f32 %v1839, %v2031
    %v2033 = vpop.f32.mrb[0].mxu0
    %v2034 = vadd.f32 %v1841, %v2033
    %v2035 = vpop.f32.mrb[0].mxu0
    %v2036 = vadd.f32 %v1843, %v2035
    %2037 = vmatprep.mubr.bf16.mxu0 %v871
    %2038 = vmatmul.mubr.bf16.gmra.mrb[0].mxu0 %v870
    %v2039 = vpop.f32.mrb[0].mxu0
    %v2040 = vadd.f32 %v1847, %v2039
    %v2041 = vpop.f32.mrb[0].mxu0
    %v2042 = vadd.f32 %v1849, %v2041
    %v2043 = vpop.f32.mrb[0].mxu0
    %v2044 = vadd.f32 %v1851, %v2043
    %v2045 = vpop.f32.mrb[0].mxu0
    %v2046 = vadd.f32 %v1853, %v2045
    %2047 = vdwg.mxu0
    %2048 = vmatprep.subr.bf16.mxu0 %v1409
    %2049 = vmatpush1.bf16.msra.mxu0 %v1408
    %2050 = vmatprep.subr.bf16.mxu0 %v1413
    %2051 = vmatpush1.bf16.msra.mxu0 %v1412
    %2052 = vmatprep.subr.bf16.mxu0 %v1417
    %2053 = vmatpush1.bf16.msra.mxu0 %v1416
    %2054 = vmatprep.subr.bf16.mxu0 %v1421
    %2055 = vmatpush1.bf16.msra.mxu0 %v1420
    %2056 = vmatprep.subr.bf16.mxu0 %v1425
    %2057 = vmatpush1.bf16.msra.mxu0 %v1424
    %2058 = vmatprep.subr.bf16.mxu0 %v1429
    %2059 = vmatpush1.bf16.msra.mxu0 %v1428
    %2060 = vmatprep.subr.bf16.mxu0 %v1433
    %2061 = vmatpush1.bf16.msra.mxu0 %v1432
    %2062 = vmatprep.subr.bf16.mxu0 %v1437
    %2063 = vmatpush1.bf16.msra.mxu0 %v1436
    %2064 = vmatprep.subr.bf16.mxu0 %v1441
    %2065 = vmatpush1.bf16.msra.mxu0 %v1440
    %2066 = vmatprep.subr.bf16.mxu0 %v1445
    %2067 = vmatpush1.bf16.msra.mxu0 %v1444
    %2068 = vmatprep.subr.bf16.mxu0 %v1449
    %2069 = vmatpush1.bf16.msra.mxu0 %v1448
    %2070 = vmatprep.subr.bf16.mxu0 %v1453
    %2071 = vmatpush1.bf16.msra.mxu0 %v1452
    %2072 = vmatprep.subr.bf16.mxu0 %v1457
    %2073 = vmatpush1.bf16.msra.mxu0 %v1456
    %2074 = vmatprep.subr.bf16.mxu0 %v1461
    %2075 = vmatpush1.bf16.msra.mxu0 %v1460
    %2076 = vmatprep.subr.bf16.mxu0 %v1465
    %2077 = vmatpush1.bf16.msra.mxu0 %v1464
    %2078 = vmatprep.subr.bf16.mxu0 %v1469
    %2079 = vmatpush1.bf16.msra.mxu0 %v1468
    %2080 = vmatprep.mubr.bf16.mxu0 %v809
    %2081 = vmatmul.mubr.bf16.gmra.mrb[0].mxu0 %v808
    %v2082 = vpop.f32.mrb[0].mxu0
    %v2083 = vadd.f32 %v1013, %v2082
    %v2084 = vpop.f32.mrb[0].mxu0
    %v2085 = vadd.f32 %v1017, %v2084
    %v2086 = vpop.f32.mrb[0].mxu0
    %v2087 = vadd.f32 %v1013, %v2086
    %v2088 = vpop.f32.mrb[0].mxu0
    %v2089 = vadd.f32 %v1017, %v2088
    %2090 = vmatprep.mubr.bf16.mxu0 %v813
    %2091 = vmatmul.mubr.bf16.gmra.mrb[0].mxu0 %v812
    %v2092 = vpop.f32.mrb[0].mxu0
    %v2093 = vadd.f32 %v1013, %v2092
    %v2094 = vpop.f32.mrb[0].mxu0
    %v2095 = vadd.f32 %v1017, %v2094
    %v2096 = vpop.f32.mrb[0].mxu0
    %v2097 = vadd.f32 %v1013, %v2096
    %v2098 = vpop.f32.mrb[0].mxu0
    %v2099 = vadd.f32 %v1017, %v2098
    %2100 = vmatprep.mubr.bf16.mxu0 %v817
    %2101 = vmatmul.mubr.bf16.gmra.mrb[0].mxu0 %v816
    %v2102 = vpop.f32.mrb[0].mxu0
    %v2103 = vadd.f32 %v1013, %v2102
    %v2104 = vpop.f32.mrb[0].mxu0
    %v2105 = vadd.f32 %v1017, %v2104
    %v2106 = vpop.f32.mrb[0].mxu0
    %v2107 = vadd.f32 %v1013, %v2106
    %v2108 = vpop.f32.mrb[0].mxu0
    %v2109 = vadd.f32 %v1017, %v2108
    %2110 = vmatprep.mubr.bf16.mxu0 %v821
    %2111 = vmatmul.mubr.bf16.gmra.mrb[0].mxu0 %v820
    %v2112 = vpop.f32.mrb[0].mxu0
    %v2113 = vadd.f32 %v1013, %v2112
    %v2114 = vpop.f32.mrb[0].mxu0
    %v2115 = vadd.f32 %v1017, %v2114
    %v2116 = vpop.f32.mrb[0].mxu0
    %v2117 = vadd.f32 %v1013, %v2116
    %v2118 = vpop.f32.mrb[0].mxu0
    %v2119 = vadd.f32 %v1017, %v2118
    %2120 = vmatprep.mubr.bf16.mxu0 %v825
    %2121 = vmatmul.mubr.bf16.gmra.mrb[0].mxu0 %v824
    %v2122 = vpop.f32.mrb[0].mxu0
    %v2123 = vadd.f32 %v1013, %v2122
    %v2124 = vpop.f32.mrb[0].mxu0
    %v2125 = vadd.f32 %v1017, %v2124
    %v2126 = vpop.f32.mrb[0].mxu0
    %v2127 = vadd.f32 %v1013, %v2126
    %v2128 = vpop.f32.mrb[0].mxu0
    %v2129 = vadd.f32 %v1017, %v2128
    %2130 = vmatprep.mubr.bf16.mxu0 %v829
    %2131 = vmatmul.mubr.bf16.gmra.mrb[0].mxu0 %v828
    %v2132 = vpop.f32.mrb[0].mxu0
    %v2133 = vadd.f32 %v1013, %v2132
    %v2134 = vpop.f32.mrb[0].mxu0
    %v2135 = vadd.f32 %v1017, %v2134
    %v2136 = vpop.f32.mrb[0].mxu0
    %v2137 = vadd.f32 %v1013, %v2136
    %v2138 = vpop.f32.mrb[0].mxu0
    %v2139 = vadd.f32 %v1017, %v2138
    %2140 = vmatprep.mubr.bf16.mxu0 %v833
    %2141 = vmatmul.mubr.bf16.gmra.mrb[0].mxu0 %v832
    %v2142 = vpop.f32.mrb[0].mxu0
    %v2143 = vadd.f32 %v1013, %v2142
    %v2144 = vpop.f32.mrb[0].mxu0
    %v2145 = vadd.f32 %v1017, %v2144
    %v2146 = vpop.f32.mrb[0].mxu0
    %v2147 = vadd.f32 %v1013, %v2146
    %v2148 = vpop.f32.mrb[0].mxu0
    %v2149 = vadd.f32 %v1017, %v2148
    %2150 = vmatprep.mubr.bf16.mxu0 %v837
    %2151 = vmatmul.mubr.bf16.gmra.mrb[0].mxu0 %v836
    %v2152 = vpop.f32.mrb[0].mxu0
    %v2153 = vadd.f32 %v1013, %v2152
    %v2154 = vpop.f32.mrb[0].mxu0
    %v2155 = vadd.f32 %v1017, %v2154
    %v2156 = vpop.f32.mrb[0].mxu0
    %v2157 = vadd.f32 %v1013, %v2156
    %v2158 = vpop.f32.mrb[0].mxu0
    %v2159 = vadd.f32 %v1017, %v2158
    %2160 = vmatprep.mubr.bf16.mxu0 %v841
    %2161 = vmatmul.mubr.bf16.gmra.mrb[0].mxu0 %v840
    %v2162 = vpop.f32.mrb[0].mxu0
    %v2163 = vadd.f32 %v1013, %v2162
    %v2164 = vpop.f32.mrb[0].mxu0
    %v2165 = vadd.f32 %v1017, %v2164
    %v2166 = vpop.f32.mrb[0].mxu0
    %v2167 = vadd.f32 %v1013, %v2166
    %v2168 = vpop.f32.mrb[0].mxu0
    %v2169 = vadd.f32 %v1017, %v2168
    %2170 = vmatprep.mubr.bf16.mxu0 %v845
    %2171 = vmatmul.mubr.bf16.gmra.mrb[0].mxu0 %v844
    %v2172 = vpop.f32.mrb[0].mxu0
    %v2173 = vadd.f32 %v1013, %v2172
    %v2174 = vpop.f32.mrb[0].mxu0
    %v2175 = vadd.f32 %v1017, %v2174
    %v2176 = vpop.f32.mrb[0].mxu0
    %v2177 = vadd.f32 %v1013, %v2176
    %v2178 = vpop.f32.mrb[0].mxu0
    %v2179 = vadd.f32 %v1017, %v2178
    %2180 = vmatprep.mubr.bf16.mxu0 %v849
    %2181 = vmatmul.mubr.bf16.gmra.mrb[0].mxu0 %v848
    %v2182 = vpop.f32.mrb[0].mxu0
    %v2183 = vadd.f32 %v1013, %v2182
    %v2184 = vpop.f32.mrb[0].mxu0
    %v2185 = vadd.f32 %v1017, %v2184
    %v2186 = vpop.f32.mrb[0].mxu0
    %v2187 = vadd.f32 %v1013, %v2186
    %v2188 = vpop.f32.mrb[0].mxu0
    %v2189 = vadd.f32 %v1017, %v2188
    %2190 = vmatprep.mubr.bf16.mxu0 %v853
    %2191 = vmatmul.mubr.bf16.gmra.mrb[0].mxu0 %v852
    %v2192 = vpop.f32.mrb[0].mxu0
    %v2193 = vadd.f32 %v1013, %v2192
    %v2194 = vpop.f32.mrb[0].mxu0
    %v2195 = vadd.f32 %v1017, %v2194
    %v2196 = vpop.f32.mrb[0].mxu0
    %v2197 = vadd.f32 %v1013, %v2196
    %v2198 = vpop.f32.mrb[0].mxu0
    %v2199 = vadd.f32 %v1017, %v2198
    %2200 = vmatprep.mubr.bf16.mxu0 %v857
    %2201 = vmatmul.mubr.bf16.gmra.mrb[0].mxu0 %v856
    %v2202 = vpop.f32.mrb[0].mxu0
    %v2203 = vadd.f32 %v1013, %v2202
    %v2204 = vpop.f32.mrb[0].mxu0
    %v2205 = vadd.f32 %v1017, %v2204
    %v2206 = vpop.f32.mrb[0].mxu0
    %v2207 = vadd.f32 %v1013, %v2206
    %v2208 = vpop.f32.mrb[0].mxu0
    %v2209 = vadd.f32 %v1017, %v2208
    %2210 = vmatprep.mubr.bf16.mxu0 %v861
    %2211 = vmatmul.mubr.bf16.gmra.mrb[0].mxu0 %v860
    %v2212 = vpop.f32.mrb[0].mxu0
    %v2213 = vadd.f32 %v1013, %v2212
    %v2214 = vpop.f32.mrb[0].mxu0
    %v2215 = vadd.f32 %v1017, %v2214
    %v2216 = vpop.f32.mrb[0].mxu0
    %v2217 = vadd.f32 %v1013, %v2216
    %v2218 = vpop.f32.mrb[0].mxu0
    %v2219 = vadd.f32 %v1017, %v2218
    %2220 = vmatprep.mubr.bf16.mxu0 %v865
    %2221 = vmatmul.mubr.bf16.gmra.mrb[0].mxu0 %v864
    %v2222 = vpop.f32.mrb[0].mxu0
    %v2223 = vadd.f32 %v1013, %v2222
    %v2224 = vpop.f32.mrb[0].mxu0
    %v2225 = vadd.f32 %v1017, %v2224
    %v2226 = vpop.f32.mrb[0].mxu0
    %v2227 = vadd.f32 %v1013, %v2226
    %v2228 = vpop.f32.mrb[0].mxu0
    %v2229 = vadd.f32 %v1017, %v2228
    %2230 = vmatprep.mubr.bf16.mxu0 %v869
    %2231 = vmatmul.mubr.bf16.gmra.mrb[0].mxu0 %v868
    %v2232 = vpop.f32.mrb[0].mxu0
    %v2233 = vadd.f32 %v1013, %v2232
    %v2234 = vpop.f32.mrb[0].mxu0
    %v2235 = vadd.f32 %v1017, %v2234
    %v2236 = vpop.f32.mrb[0].mxu0
    %v2237 = vadd.f32 %v1013, %v2236
    %v2238 = vpop.f32.mrb[0].mxu0
    %v2239 = vadd.f32 %v1017, %v2238
    %2240 = vdwg.mxu0
    %2241 = vmatprep.subr.bf16.mxu0 %v1473
    %2242 = vmatpush1.bf16.msra.mxu0 %v1472
    %2243 = vmatprep.subr.bf16.mxu0 %v1477
    %2244 = vmatpush1.bf16.msra.mxu0 %v1476
    %2245 = vmatprep.subr.bf16.mxu0 %v1481
    %2246 = vmatpush1.bf16.msra.mxu0 %v1480
    %2247 = vmatprep.subr.bf16.mxu0 %v1485
    %2248 = vmatpush1.bf16.msra.mxu0 %v1484
    %2249 = vmatprep.subr.bf16.mxu0 %v1489
    %2250 = vmatpush1.bf16.msra.mxu0 %v1488
    %2251 = vmatprep.subr.bf16.mxu0 %v1493
    %2252 = vmatpush1.bf16.msra.mxu0 %v1492
    %2253 = vmatprep.subr.bf16.mxu0 %v1497
    %2254 = vmatpush1.bf16.msra.mxu0 %v1496
    %2255 = vmatprep.subr.bf16.mxu0 %v1501
    %2256 = vmatpush1.bf16.msra.mxu0 %v1500
    %2257 = vmatprep.subr.bf16.mxu0 %v1505
    %2258 = vmatpush1.bf16.msra.mxu0 %v1504
    %2259 = vmatprep.subr.bf16.mxu0 %v1509
    %2260 = vmatpush1.bf16.msra.mxu0 %v1508
    %2261 = vmatprep.subr.bf16.mxu0 %v1513
    %2262 = vmatpush1.bf16.msra.mxu0 %v1512
    %2263 = vmatprep.subr.bf16.mxu0 %v1517
    %2264 = vmatpush1.bf16.msra.mxu0 %v1516
    %2265 = vmatprep.subr.bf16.mxu0 %v1521
    %2266 = vmatpush1.bf16.msra.mxu0 %v1520
    %2267 = vmatprep.subr.bf16.mxu0 %v1525
    %2268 = vmatpush1.bf16.msra.mxu0 %v1524
    %2269 = vmatprep.subr.bf16.mxu0 %v1529
    %2270 = vmatpush1.bf16.msra.mxu0 %v1528
    %2271 = vmatprep.subr.bf16.mxu0 %v1533
    %2272 = vmatpush1.bf16.msra.mxu0 %v1532
    %2273 = vmatprep.mubr.bf16.mxu0 %v811
    %2274 = vmatmul.mubr.bf16.gmra.mrb[0].mxu0 %v810
    %v2275 = vpop.f32.mrb[0].mxu0
    %v2276 = vadd.f32 %v2083, %v2275
    %v2277 = vpop.f32.mrb[0].mxu0
    %v2278 = vadd.f32 %v2085, %v2277
    %v2279 = vpop.f32.mrb[0].mxu0
    %v2280 = vadd.f32 %v2087, %v2279
    %v2281 = vpop.f32.mrb[0].mxu0
    %v2282 = vadd.f32 %v2089, %v2281
    %2283 = vmatprep.mubr.bf16.mxu0 %v815
    %2284 = vmatmul.mubr.bf16.gmra.mrb[0].mxu0 %v814
    %v2285 = vpop.f32.mrb[0].mxu0
    %v2286 = vadd.f32 %v2093, %v2285
    %v2287 = vpop.f32.mrb[0].mxu0
    %v2288 = vadd.f32 %v2095, %v2287
    %v2289 = vpop.f32.mrb[0].mxu0
    %v2290 = vadd.f32 %v2097, %v2289
    %v2291 = vpop.f32.mrb[0].mxu0
    %v2292 = vadd.f32 %v2099, %v2291
    %2293 = vmatprep.mubr.bf16.mxu0 %v819
    %2294 = vmatmul.mubr.bf16.gmra.mrb[0].mxu0 %v818
    %v2295 = vpop.f32.mrb[0].mxu0
    %v2296 = vadd.f32 %v2103, %v2295
    %v2297 = vpop.f32.mrb[0].mxu0
    %v2298 = vadd.f32 %v2105, %v2297
    %v2299 = vpop.f32.mrb[0].mxu0
    %v2300 = vadd.f32 %v2107, %v2299
    %v2301 = vpop.f32.mrb[0].mxu0
    %v2302 = vadd.f32 %v2109, %v2301
    %2303 = vmatprep.mubr.bf16.mxu0 %v823
    %2304 = vmatmul.mubr.bf16.gmra.mrb[0].mxu0 %v822
    %v2305 = vpop.f32.mrb[0].mxu0
    %v2306 = vadd.f32 %v2113, %v2305
    %v2307 = vpop.f32.mrb[0].mxu0
    %v2308 = vadd.f32 %v2115, %v2307
    %v2309 = vpop.f32.mrb[0].mxu0
    %v2310 = vadd.f32 %v2117, %v2309
    %v2311 = vpop.f32.mrb[0].mxu0
    %v2312 = vadd.f32 %v2119, %v2311
    %2313 = vmatprep.mubr.bf16.mxu0 %v827
    %2314 = vmatmul.mubr.bf16.gmra.mrb[0].mxu0 %v826
    %v2315 = vpop.f32.mrb[0].mxu0
    %v2316 = vadd.f32 %v2123, %v2315
    %v2317 = vpop.f32.mrb[0].mxu0
    %v2318 = vadd.f32 %v2125, %v2317
    %v2319 = vpop.f32.mrb[0].mxu0
    %v2320 = vadd.f32 %v2127, %v2319
    %v2321 = vpop.f32.mrb[0].mxu0
    %v2322 = vadd.f32 %v2129, %v2321
    %2323 = vmatprep.mubr.bf16.mxu0 %v831
    %2324 = vmatmul.mubr.bf16.gmra.mrb[0].mxu0 %v830
    %v2325 = vpop.f32.mrb[0].mxu0
    %v2326 = vadd.f32 %v2133, %v2325
    %v2327 = vpop.f32.mrb[0].mxu0
    %v2328 = vadd.f32 %v2135, %v2327
    %v2329 = vpop.f32.mrb[0].mxu0
    %v2330 = vadd.f32 %v2137, %v2329
    %v2331 = vpop.f32.mrb[0].mxu0
    %v2332 = vadd.f32 %v2139, %v2331
    %2333 = vmatprep.mubr.bf16.mxu0 %v835
    %2334 = vmatmul.mubr.bf16.gmra.mrb[0].mxu0 %v834
    %v2335 = vpop.f32.mrb[0].mxu0
    %v2336 = vadd.f32 %v2143, %v2335
    %v2337 = vpop.f32.mrb[0].mxu0
    %v2338 = vadd.f32 %v2145, %v2337
    %v2339 = vpop.f32.mrb[0].mxu0
    %v2340 = vadd.f32 %v2147, %v2339
    %v2341 = vpop.f32.mrb[0].mxu0
    %v2342 = vadd.f32 %v2149, %v2341
    %2343 = vmatprep.mubr.bf16.mxu0 %v839
    %2344 = vmatmul.mubr.bf16.gmra.mrb[0].mxu0 %v838
    %v2345 = vpop.f32.mrb[0].mxu0
    %v2346 = vadd.f32 %v2153, %v2345
    %v2347 = vpop.f32.mrb[0].mxu0
    %v2348 = vadd.f32 %v2155, %v2347
    %v2349 = vpop.f32.mrb[0].mxu0
    %v2350 = vadd.f32 %v2157, %v2349
    %v2351 = vpop.f32.mrb[0].mxu0
    %v2352 = vadd.f32 %v2159, %v2351
    %2353 = vmatprep.mubr.bf16.mxu0 %v843
    %2354 = vmatmul.mubr.bf16.gmra.mrb[0].mxu0 %v842
    %v2355 = vpop.f32.mrb[0].mxu0
    %v2356 = vadd.f32 %v2163, %v2355
    %v2357 = vpop.f32.mrb[0].mxu0
    %v2358 = vadd.f32 %v2165, %v2357
    %v2359 = vpop.f32.mrb[0].mxu0
    %v2360 = vadd.f32 %v2167, %v2359
    %v2361 = vpop.f32.mrb[0].mxu0
    %v2362 = vadd.f32 %v2169, %v2361
    %2363 = vmatprep.mubr.bf16.mxu0 %v847
    %2364 = vmatmul.mubr.bf16.gmra.mrb[0].mxu0 %v846
    %v2365 = vpop.f32.mrb[0].mxu0
    %v2366 = vadd.f32 %v2173, %v2365
    %v2367 = vpop.f32.mrb[0].mxu0
    %v2368 = vadd.f32 %v2175, %v2367
    %v2369 = vpop.f32.mrb[0].mxu0
    %v2370 = vadd.f32 %v2177, %v2369
    %v2371 = vpop.f32.mrb[0].mxu0
    %v2372 = vadd.f32 %v2179, %v2371
    %2373 = vmatprep.mubr.bf16.mxu0 %v851
    %2374 = vmatmul.mubr.bf16.gmra.mrb[0].mxu0 %v850
    %v2375 = vpop.f32.mrb[0].mxu0
    %v2376 = vadd.f32 %v2183, %v2375
    %v2377 = vpop.f32.mrb[0].mxu0
    %v2378 = vadd.f32 %v2185, %v2377
    %v2379 = vpop.f32.mrb[0].mxu0
    %v2380 = vadd.f32 %v2187, %v2379
    %v2381 = vpop.f32.mrb[0].mxu0
    %v2382 = vadd.f32 %v2189, %v2381
    %2383 = vmatprep.mubr.bf16.mxu0 %v855
    %2384 = vmatmul.mubr.bf16.gmra.mrb[0].mxu0 %v854
    %v2385 = vpop.f32.mrb[0].mxu0
    %v2386 = vadd.f32 %v2193, %v2385
    %v2387 = vpop.f32.mrb[0].mxu0
    %v2388 = vadd.f32 %v2195, %v2387
    %v2389 = vpop.f32.mrb[0].mxu0
    %v2390 = vadd.f32 %v2197, %v2389
    %v2391 = vpop.f32.mrb[0].mxu0
    %v2392 = vadd.f32 %v2199, %v2391
    %2393 = vmatprep.mubr.bf16.mxu0 %v859
    %2394 = vmatmul.mubr.bf16.gmra.mrb[0].mxu0 %v858
    %v2395 = vpop.f32.mrb[0].mxu0
    %v2396 = vadd.f32 %v2203, %v2395
    %v2397 = vpop.f32.mrb[0].mxu0
    %v2398 = vadd.f32 %v2205, %v2397
    %v2399 = vpop.f32.mrb[0].mxu0
    %v2400 = vadd.f32 %v2207, %v2399
    %v2401 = vpop.f32.mrb[0].mxu0
    %v2402 = vadd.f32 %v2209, %v2401
    %2403 = vmatprep.mubr.bf16.mxu0 %v863
    %2404 = vmatmul.mubr.bf16.gmra.mrb[0].mxu0 %v862
    %v2405 = vpop.f32.mrb[0].mxu0
    %v2406 = vadd.f32 %v2213, %v2405
    %v2407 = vpop.f32.mrb[0].mxu0
    %v2408 = vadd.f32 %v2215, %v2407
    %v2409 = vpop.f32.mrb[0].mxu0
    %v2410 = vadd.f32 %v2217, %v2409
    %v2411 = vpop.f32.mrb[0].mxu0
    %v2412 = vadd.f32 %v2219, %v2411
    %2413 = vmatprep.mubr.bf16.mxu0 %v867
    %2414 = vmatmul.mubr.bf16.gmra.mrb[0].mxu0 %v866
    %v2415 = vpop.f32.mrb[0].mxu0
    %v2416 = vadd.f32 %v2223, %v2415
    %v2417 = vpop.f32.mrb[0].mxu0
    %v2418 = vadd.f32 %v2225, %v2417
    %v2419 = vpop.f32.mrb[0].mxu0
    %v2420 = vadd.f32 %v2227, %v2419
    %v2421 = vpop.f32.mrb[0].mxu0
    %v2422 = vadd.f32 %v2229, %v2421
    %2423 = vmatprep.mubr.bf16.mxu0 %v871
    %2424 = vmatmul.mubr.bf16.gmra.mrb[0].mxu0 %v870
    %v2425 = vpop.f32.mrb[0].mxu0
    %v2426 = vadd.f32 %v2233, %v2425
    %v2427 = vpop.f32.mrb[0].mxu0
    %v2428 = vadd.f32 %v2235, %v2427
    %v2429 = vpop.f32.mrb[0].mxu0
    %v2430 = vadd.f32 %v2237, %v2429
    %v2431 = vpop.f32.mrb[0].mxu0
    %v2432 = vadd.f32 %v2239, %v2431
    %2433 = vdwg.mxu0
    %v2434 = vmax.f32 %v1890, 0.0
    %v2435 = vmax.f32 %v1892, 0.0
    %v2436 = vmax.f32 %v2276, 0.0
    %v2437 = vmax.f32 %v2278, 0.0
    %v2438 = vmax.f32 %v1894, 0.0
    %v2439 = vmax.f32 %v1896, 0.0
    %v2440 = vmax.f32 %v2280, 0.0
    %v2441 = vmax.f32 %v2282, 0.0
    %v2442 = vmax.f32 %v1900, 0.0
    %v2443 = vmax.f32 %v1902, 0.0
    %v2444 = vmax.f32 %v2286, 0.0
    %v2445 = vmax.f32 %v2288, 0.0
    %v2446 = vmax.f32 %v1904, 0.0
    %v2447 = vmax.f32 %v1906, 0.0
    %v2448 = vmax.f32 %v2290, 0.0
    %v2449 = vmax.f32 %v2292, 0.0
    %v2450 = vmax.f32 %v1910, 0.0
    %v2451 = vmax.f32 %v1912, 0.0
    %v2452 = vmax.f32 %v2296, 0.0
    %v2453 = vmax.f32 %v2298, 0.0
    %v2454 = vmax.f32 %v1914, 0.0
    %v2455 = vmax.f32 %v1916, 0.0
    %v2456 = vmax.f32 %v2300, 0.0
    %v2457 = vmax.f32 %v2302, 0.0
    %v2458 = vmax.f32 %v1920, 0.0
    %v2459 = vmax.f32 %v1922, 0.0
    %v2460 = vmax.f32 %v2306, 0.0
    %v2461 = vmax.f32 %v2308, 0.0
    %v2462 = vmax.f32 %v1924, 0.0
    %v2463 = vmax.f32 %v1926, 0.0
    %v2464 = vmax.f32 %v2310, 0.0
    %v2465 = vmax.f32 %v2312, 0.0
    %v2466 = vmax.f32 %v1930, 0.0
    %v2467 = vmax.f32 %v1932, 0.0
    %v2468 = vmax.f32 %v2316, 0.0
    %v2469 = vmax.f32 %v2318, 0.0
    %v2470 = vmax.f32 %v1934, 0.0
    %v2471 = vmax.f32 %v1936, 0.0
    %v2472 = vmax.f32 %v2320, 0.0
    %v2473 = vmax.f32 %v2322, 0.0
    %v2474 = vmax.f32 %v1940, 0.0
    %v2475 = vmax.f32 %v1942, 0.0
    %v2476 = vmax.f32 %v2326, 0.0
    %v2477 = vmax.f32 %v2328, 0.0
    %v2478 = vmax.f32 %v1944, 0.0
    %v2479 = vmax.f32 %v1946, 0.0
    %v2480 = vmax.f32 %v2330, 0.0
    %v2481 = vmax.f32 %v2332, 0.0
    %v2482 = vmax.f32 %v1950, 0.0
    %v2483 = vmax.f32 %v1952, 0.0
    %v2484 = vmax.f32 %v2336, 0.0
    %v2485 = vmax.f32 %v2338, 0.0
    %v2486 = vmax.f32 %v1954, 0.0
    %v2487 = vmax.f32 %v1956, 0.0
    %v2488 = vmax.f32 %v2340, 0.0
    %v2489 = vmax.f32 %v2342, 0.0
    %v2490 = vmax.f32 %v1960, 0.0
    %v2491 = vmax.f32 %v1962, 0.0
    %v2492 = vmax.f32 %v2346, 0.0
    %v2493 = vmax.f32 %v2348, 0.0
    %v2494 = vmax.f32 %v1964, 0.0
    %v2495 = vmax.f32 %v1966, 0.0
    %v2496 = vmax.f32 %v2350, 0.0
    %v2497 = vmax.f32 %v2352, 0.0
    %v2498 = vmax.f32 %v1970, 0.0
    %v2499 = vmax.f32 %v1972, 0.0
    %v2500 = vmax.f32 %v2356, 0.0
    %v2501 = vmax.f32 %v2358, 0.0
    %v2502 = vmax.f32 %v1974, 0.0
    %v2503 = vmax.f32 %v1976, 0.0
    %v2504 = vmax.f32 %v2360, 0.0
    %v2505 = vmax.f32 %v2362, 0.0
    %v2506 = vmax.f32 %v1980, 0.0
    %v2507 = vmax.f32 %v1982, 0.0
    %v2508 = vmax.f32 %v2366, 0.0
    %v2509 = vmax.f32 %v2368, 0.0
    %v2510 = vmax.f32 %v1984, 0.0
    %v2511 = vmax.f32 %v1986, 0.0
    %v2512 = vmax.f32 %v2370, 0.0
    %v2513 = vmax.f32 %v2372, 0.0
    %v2514 = vmax.f32 %v1990, 0.0
    %v2515 = vmax.f32 %v1992, 0.0
    %v2516 = vmax.f32 %v2376, 0.0
    %v2517 = vmax.f32 %v2378, 0.0
    %v2518 = vmax.f32 %v1994, 0.0
    %v2519 = vmax.f32 %v1996, 0.0
    %v2520 = vmax.f32 %v2380, 0.0
    %v2521 = vmax.f32 %v2382, 0.0
    %v2522 = vmax.f32 %v2000, 0.0
    %v2523 = vmax.f32 %v2002, 0.0
    %v2524 = vmax.f32 %v2386, 0.0
    %v2525 = vmax.f32 %v2388, 0.0
    %v2526 = vmax.f32 %v2004, 0.0
    %v2527 = vmax.f32 %v2006, 0.0
    %v2528 = vmax.f32 %v2390, 0.0
    %v2529 = vmax.f32 %v2392, 0.0
    %v2530 = vmax.f32 %v2010, 0.0
    %v2531 = vmax.f32 %v2012, 0.0
    %v2532 = vmax.f32 %v2396, 0.0
    %v2533 = vmax.f32 %v2398, 0.0
    %v2534 = vmax.f32 %v2014, 0.0
    %v2535 = vmax.f32 %v2016, 0.0
    %v2536 = vmax.f32 %v2400, 0.0
    %v2537 = vmax.f32 %v2402, 0.0
    %v2538 = vmax.f32 %v2020, 0.0
    %v2539 = vmax.f32 %v2022, 0.0
    %v2540 = vmax.f32 %v2406, 0.0
    %v2541 = vmax.f32 %v2408, 0.0
    %v2542 = vmax.f32 %v2024, 0.0
    %v2543 = vmax.f32 %v2026, 0.0
    %v2544 = vmax.f32 %v2410, 0.0
    %v2545 = vmax.f32 %v2412, 0.0
    %v2546 = vmax.f32 %v2030, 0.0
    %v2547 = vmax.f32 %v2032, 0.0
    %v2548 = vmax.f32 %v2416, 0.0
    %v2549 = vmax.f32 %v2418, 0.0
    %v2550 = vmax.f32 %v2034, 0.0
    %v2551 = vmax.f32 %v2036, 0.0
    %v2552 = vmax.f32 %v2420, 0.0
    %v2553 = vmax.f32 %v2422, 0.0
    %v2554 = vmax.f32 %v2040, 0.0
    %v2555 = vmax.f32 %v2042, 0.0
    %v2556 = vmax.f32 %v2426, 0.0
    %v2557 = vmax.f32 %v2428, 0.0
    %v2558 = vmax.f32 %v2044, 0.0
    %v2559 = vmax.f32 %v2046, 0.0
    %v2560 = vmax.f32 %v2430, 0.0
    %v2561 = vmax.f32 %v2432, 0.0
    %v2562 = vpack.c.bf16 %v2438, %v2434
    %v2563 = vpack.c.bf16 %v2439, %v2435
    %v2564 = vpack.c.bf16 %v2440, %v2436
    %v2565 = vpack.c.bf16 %v2441, %v2437
    %v2566 = vpack.c.bf16 %v2446, %v2442
    %v2567 = vpack.c.bf16 %v2447, %v2443
    %v2568 = vpack.c.bf16 %v2448, %v2444
    %v2569 = vpack.c.bf16 %v2449, %v2445
    %v2570 = vpack.c.bf16 %v2454, %v2450
    %v2571 = vpack.c.bf16 %v2455, %v2451
    %v2572 = vpack.c.bf16 %v2456, %v2452
    %v2573 = vpack.c.bf16 %v2457, %v2453
    %v2574 = vpack.c.bf16 %v2462, %v2458
    %v2575 = vpack.c.bf16 %v2463, %v2459
    %v2576 = vpack.c.bf16 %v2464, %v2460
    %v2577 = vpack.c.bf16 %v2465, %v2461
    %v2578 = vpack.c.bf16 %v2470, %v2466
    %v2579 = vpack.c.bf16 %v2471, %v2467
    %v2580 = vpack.c.bf16 %v2472, %v2468
    %v2581 = vpack.c.bf16 %v2473, %v2469
    %v2582 = vpack.c.bf16 %v2478, %v2474
    %v2583 = vpack.c.bf16 %v2479, %v2475
    %v2584 = vpack.c.bf16 %v2480, %v2476
    %v2585 = vpack.c.bf16 %v2481, %v2477
    %v2586 = vpack.c.bf16 %v2486, %v2482
    %v2587 = vpack.c.bf16 %v2487, %v2483
    %v2588 = vpack.c.bf16 %v2488, %v2484
    %v2589 = vpack.c.bf16 %v2489, %v2485
    %v2590 = vpack.c.bf16 %v2494, %v2490
    %v2591 = vpack.c.bf16 %v2495, %v2491
    %v2592 = vpack.c.bf16 %v2496, %v2492
    %v2593 = vpack.c.bf16 %v2497, %v2493
    %v2594 = vpack.c.bf16 %v2502, %v2498
    %v2595 = vpack.c.bf16 %v2503, %v2499
    %v2596 = vpack.c.bf16 %v2504, %v2500
    %v2597 = vpack.c.bf16 %v2505, %v2501
    %v2598 = vpack.c.bf16 %v2510, %v2506
    %v2599 = vpack.c.bf16 %v2511, %v2507
    %v2600 = vpack.c.bf16 %v2512, %v2508
    %v2601 = vpack.c.bf16 %v2513, %v2509
    %v2602 = vpack.c.bf16 %v2518, %v2514
    %v2603 = vpack.c.bf16 %v2519, %v2515
    %v2604 = vpack.c.bf16 %v2520, %v2516
    %v2605 = vpack.c.bf16 %v2521, %v2517
    %v2606 = vpack.c.bf16 %v2526, %v2522
    %v2607 = vpack.c.bf16 %v2527, %v2523
    %v2608 = vpack.c.bf16 %v2528, %v2524
    %v2609 = vpack.c.bf16 %v2529, %v2525
    %v2610 = vpack.c.bf16 %v2534, %v2530
    %v2611 = vpack.c.bf16 %v2535, %v2531
    %v2612 = vpack.c.bf16 %v2536, %v2532
    %v2613 = vpack.c.bf16 %v2537, %v2533
    %v2614 = vpack.c.bf16 %v2542, %v2538
    %v2615 = vpack.c.bf16 %v2543, %v2539
    %v2616 = vpack.c.bf16 %v2544, %v2540
    %v2617 = vpack.c.bf16 %v2545, %v2541
    %v2618 = vpack.c.bf16 %v2550, %v2546
    %v2619 = vpack.c.bf16 %v2551, %v2547
    %v2620 = vpack.c.bf16 %v2552, %v2548
    %v2621 = vpack.c.bf16 %v2553, %v2549
    %v2622 = vpack.c.bf16 %v2558, %v2554
    %v2623 = vpack.c.bf16 %v2559, %v2555
    %v2624 = vpack.c.bf16 %v2560, %v2556
    %v2625 = vpack.c.bf16 %v2561, %v2557
    %v2626 = vld [vmem:[%s5] sm:$0xf]
    %v2627 = vld [vmem:[%s5 + $0x4] sm:$0xf]
    %v2628 = vld [vmem:[%s5 + $0x8] sm:$0xf]
    %v2629 = vld [vmem:[%s5 + $0xc] sm:$0xf]
    %v2630 = vld [vmem:[%s5 + $0x10] sm:$0xf]
    %v2631 = vld [vmem:[%s5 + $0x14] sm:$0xf]
    %v2632 = vld [vmem:[%s5 + $0x18] sm:$0xf]
    %v2633 = vld [vmem:[%s5 + $0x1c] sm:$0xf]
    %v2634 = vld [vmem:[%s5 + $0x20] sm:$0xf]
    %v2635 = vld [vmem:[%s5 + $0x24] sm:$0xf]
    %v2636 = vld [vmem:[%s5 + $0x28] sm:$0xf]
    %v2637 = vld [vmem:[%s5 + $0x2c] sm:$0xf]
    %v2638 = vld [vmem:[%s5 + $0x30] sm:$0xf]
    %v2639 = vld [vmem:[%s5 + $0x34] sm:$0xf]
    %v2640 = vld [vmem:[%s5 + $0x38] sm:$0xf]
    %v2641 = vld [vmem:[%s5 + $0x3c] sm:$0xf]
    %v2642 = vld [vmem:[%s5 + $0x40] sm:$0xf]
    %v2643 = vld [vmem:[%s5 + $0x44] sm:$0xf]
    %v2644 = vld [vmem:[%s5 + $0x48] sm:$0xf]
    %v2645 = vld [vmem:[%s5 + $0x4c] sm:$0xf]
    %v2646 = vld [vmem:[%s5 + $0x50] sm:$0xf]
    %v2647 = vld [vmem:[%s5 + $0x54] sm:$0xf]
    %v2648 = vld [vmem:[%s5 + $0x58] sm:$0xf]
    %v2649 = vld [vmem:[%s5 + $0x5c] sm:$0xf]
    %v2650 = vld [vmem:[%s5 + $0x60] sm:$0xf]
    %v2651 = vld [vmem:[%s5 + $0x64] sm:$0xf]
    %v2652 = vld [vmem:[%s5 + $0x68] sm:$0xf]
    %v2653 = vld [vmem:[%s5 + $0x6c] sm:$0xf]
    %v2654 = vld [vmem:[%s5 + $0x70] sm:$0xf]
    %v2655 = vld [vmem:[%s5 + $0x74] sm:$0xf]
    %v2656 = vld [vmem:[%s5 + $0x78] sm:$0xf]
    %v2657 = vld [vmem:[%s5 + $0x7c] sm:$0xf]
    %v2658 = vld [vmem:[%s5 + $0x80] sm:$0xf]
    %v2659 = vld [vmem:[%s5 + $0x84] sm:$0xf]
    %v2660 = vld [vmem:[%s5 + $0x88] sm:$0xf]
    %v2661 = vld [vmem:[%s5 + $0x8c] sm:$0xf]
    %v2662 = vld [vmem:[%s5 + $0x90] sm:$0xf]
    %v2663 = vld [vmem:[%s5 + $0x94] sm:$0xf]
    %v2664 = vld [vmem:[%s5 + $0x98] sm:$0xf]
    %v2665 = vld [vmem:[%s5 + $0x9c] sm:$0xf]
    %v2666 = vld [vmem:[%s5 + $0xa0] sm:$0xf]
    %v2667 = vld [vmem:[%s5 + $0xa4] sm:$0xf]
    %v2668 = vld [vmem:[%s5 + $0xa8] sm:$0xf]
    %v2669 = vld [vmem:[%s5 + $0xac] sm:$0xf]
    %v2670 = vld [vmem:[%s5 + $0xb0] sm:$0xf]
    %v2671 = vld [vmem:[%s5 + $0xb4] sm:$0xf]
    %v2672 = vld [vmem:[%s5 + $0xb8] sm:$0xf]
    %v2673 = vld [vmem:[%s5 + $0xbc] sm:$0xf]
    %v2674 = vld [vmem:[%s5 + $0xc0] sm:$0xf]
    %v2675 = vld [vmem:[%s5 + $0xc4] sm:$0xf]
    %v2676 = vld [vmem:[%s5 + $0xc8] sm:$0xf]
    %v2677 = vld [vmem:[%s5 + $0xcc] sm:$0xf]
    %v2678 = vld [vmem:[%s5 + $0xd0] sm:$0xf]
    %v2679 = vld [vmem:[%s5 + $0xd4] sm:$0xf]
    %v2680 = vld [vmem:[%s5 + $0xd8] sm:$0xf]
    %v2681 = vld [vmem:[%s5 + $0xdc] sm:$0xf]
    %v2682 = vld [vmem:[%s5 + $0xe0] sm:$0xf]
    %v2683 = vld [vmem:[%s5 + $0xe4] sm:$0xf]
    %v2684 = vld [vmem:[%s5 + $0xe8] sm:$0xf]
    %v2685 = vld [vmem:[%s5 + $0xec] sm:$0xf]
    %v2686 = vld [vmem:[%s5 + $0xf0] sm:$0xf]
    %v2687 = vld [vmem:[%s5 + $0xf4] sm:$0xf]
    %v2688 = vld [vmem:[%s5 + $0xf8] sm:$0xf]
    %v2689 = vld [vmem:[%s5 + $0xfc] sm:$0xf]
    %v2690 = vld [vmem:[%s6] sm:$0x1]
    %v2692 = vlaneseq
    %v2693 = vshrl.u32 %v2692, 7
    %v2694 = vsub.s32 0, %v2693
    %v2695 = vrot.slane %v2690, %v2694
    %v2761 = vunpack.c.l.b16 %v2626
    %v2762 = vunpack.c.l.b16 %v2627
    %v2763 = vunpack.c.l.b16 %v2628
    %v2764 = vunpack.c.l.b16 %v2629
    %v2765 = vunpack.c.l.b16 %v2630
    %v2766 = vunpack.c.l.b16 %v2631
    %v2767 = vunpack.c.l.b16 %v2632
    %v2768 = vunpack.c.l.b16 %v2633
    %v2769 = vunpack.c.l.b16 %v2634
    %v2770 = vunpack.c.l.b16 %v2635
    %v2771 = vunpack.c.l.b16 %v2636
    %v2772 = vunpack.c.l.b16 %v2637
    %v2773 = vunpack.c.l.b16 %v2638
    %v2774 = vunpack.c.l.b16 %v2639
    %v2775 = vunpack.c.l.b16 %v2640
    %v2776 = vunpack.c.l.b16 %v2641
    %v2777 = vunpack.c.l.b16 %v2642
    %v2778 = vunpack.c.l.b16 %v2643
    %v2779 = vunpack.c.l.b16 %v2644
    %v2780 = vunpack.c.l.b16 %v2645
    %v2781 = vunpack.c.l.b16 %v2646
    %v2782 = vunpack.c.l.b16 %v2647
    %v2783 = vunpack.c.l.b16 %v2648
    %v2784 = vunpack.c.l.b16 %v2649
    %v2785 = vunpack.c.l.b16 %v2650
    %v2786 = vunpack.c.l.b16 %v2651
    %v2787 = vunpack.c.l.b16 %v2652
    %v2788 = vunpack.c.l.b16 %v2653
    %v2789 = vunpack.c.l.b16 %v2654
    %v2790 = vunpack.c.l.b16 %v2655
    %v2791 = vunpack.c.l.b16 %v2656
    %v2792 = vunpack.c.l.b16 %v2657
    %v2793 = vunpack.c.l.b16 %v2658
    %v2794 = vunpack.c.l.b16 %v2659
    %v2795 = vunpack.c.l.b16 %v2660
    %v2796 = vunpack.c.l.b16 %v2661
    %v2797 = vunpack.c.l.b16 %v2662
    %v2798 = vunpack.c.l.b16 %v2663
    %v2799 = vunpack.c.l.b16 %v2664
    %v2800 = vunpack.c.l.b16 %v2665
    %v2801 = vunpack.c.l.b16 %v2666
    %v2802 = vunpack.c.l.b16 %v2667
    %v2803 = vunpack.c.l.b16 %v2668
    %v2804 = vunpack.c.l.b16 %v2669
    %v2805 = vunpack.c.l.b16 %v2670
    %v2806 = vunpack.c.l.b16 %v2671
    %v2807 = vunpack.c.l.b16 %v2672
    %v2808 = vunpack.c.l.b16 %v2673
    %v2809 = vunpack.c.l.b16 %v2674
    %v2810 = vunpack.c.l.b16 %v2675
    %v2811 = vunpack.c.l.b16 %v2676
    %v2812 = vunpack.c.l.b16 %v2677
    %v2813 = vunpack.c.l.b16 %v2678
    %v2814 = vunpack.c.l.b16 %v2679
    %v2815 = vunpack.c.l.b16 %v2680
    %v2816 = vunpack.c.l.b16 %v2681
    %v2817 = vunpack.c.l.b16 %v2682
    %v2818 = vunpack.c.l.b16 %v2683
    %v2819 = vunpack.c.l.b16 %v2684
    %v2820 = vunpack.c.l.b16 %v2685
    %v2821 = vunpack.c.l.b16 %v2686
    %v2822 = vunpack.c.l.b16 %v2687
    %v2823 = vunpack.c.l.b16 %v2688
    %v2824 = vunpack.c.l.b16 %v2689
    %v2825 = vpack.c.b16 %v2762, %v2761
    %v2826 = vpack.c.b16 %v2764, %v2763
    %v2827 = vpack.c.b16 %v2766, %v2765
    %v2828 = vpack.c.b16 %v2768, %v2767
    %v2829 = vpack.c.b16 %v2770, %v2769
    %v2830 = vpack.c.b16 %v2772, %v2771
    %v2831 = vpack.c.b16 %v2774, %v2773
    %v2832 = vpack.c.b16 %v2776, %v2775
    %v2833 = vpack.c.b16 %v2778, %v2777
    %v2834 = vpack.c.b16 %v2780, %v2779
    %v2835 = vpack.c.b16 %v2782, %v2781
    %v2836 = vpack.c.b16 %v2784, %v2783
    %v2837 = vpack.c.b16 %v2786, %v2785
    %v2838 = vpack.c.b16 %v2788, %v2787
    %v2839 = vpack.c.b16 %v2790, %v2789
    %v2840 = vpack.c.b16 %v2792, %v2791
    %v2841 = vpack.c.b16 %v2794, %v2793
    %v2842 = vpack.c.b16 %v2796, %v2795
    %v2843 = vpack.c.b16 %v2798, %v2797
    %v2844 = vpack.c.b16 %v2800, %v2799
    %v2845 = vpack.c.b16 %v2802, %v2801
    %v2846 = vpack.c.b16 %v2804, %v2803
    %v2847 = vpack.c.b16 %v2806, %v2805
    %v2848 = vpack.c.b16 %v2808, %v2807
    %v2849 = vpack.c.b16 %v2810, %v2809
    %v2850 = vpack.c.b16 %v2812, %v2811
    %v2851 = vpack.c.b16 %v2814, %v2813
    %v2852 = vpack.c.b16 %v2816, %v2815
    %v2853 = vpack.c.b16 %v2818, %v2817
    %v2854 = vpack.c.b16 %v2820, %v2819
    %v2855 = vpack.c.b16 %v2822, %v2821
    %v2856 = vpack.c.b16 %v2824, %v2823
    %2889 = vmatprep.subr.bf16.mxu0 0
    %2890 = vmatpush1.bf16.msra.mxu0 %v2825
    %2891 = vmatprep.subr.bf16.mxu0 0
    %2892 = vmatpush1.bf16.msra.mxu0 %v2826
    %2893 = vmatprep.subr.bf16.mxu0 0
    %2894 = vmatpush1.bf16.msra.mxu0 %v2827
    %2895 = vmatprep.subr.bf16.mxu0 0
    %2896 = vmatpush1.bf16.msra.mxu0 %v2828
    %2897 = vmatprep.subr.bf16.mxu0 0
    %2898 = vmatpush1.bf16.msra.mxu0 %v2829
    %2899 = vmatprep.subr.bf16.mxu0 0
    %2900 = vmatpush1.bf16.msra.mxu0 %v2830
    %2901 = vmatprep.subr.bf16.mxu0 0
    %2902 = vmatpush1.bf16.msra.mxu0 %v2831
    %2903 = vmatprep.subr.bf16.mxu0 0
    %2904 = vmatpush1.bf16.msra.mxu0 %v2832
    %2905 = vmatprep.subr.bf16.mxu0 0
    %2906 = vmatpush1.bf16.msra.mxu0 %v2833
    %2907 = vmatprep.subr.bf16.mxu0 0
    %2908 = vmatpush1.bf16.msra.mxu0 %v2834
    %2909 = vmatprep.subr.bf16.mxu0 0
    %2910 = vmatpush1.bf16.msra.mxu0 %v2835
    %2911 = vmatprep.subr.bf16.mxu0 0
    %2912 = vmatpush1.bf16.msra.mxu0 %v2836
    %2913 = vmatprep.subr.bf16.mxu0 0
    %2914 = vmatpush1.bf16.msra.mxu0 %v2837
    %2915 = vmatprep.subr.bf16.mxu0 0
    %2916 = vmatpush1.bf16.msra.mxu0 %v2838
    %2917 = vmatprep.subr.bf16.mxu0 0
    %2918 = vmatpush1.bf16.msra.mxu0 %v2839
    %2919 = vmatprep.subr.bf16.mxu0 0
    %2920 = vmatpush1.bf16.msra.mxu0 %v2840
    %2921 = vmatprep.mubr.bf16.mxu0 %v2563
    %2922 = vmatmul.mubr.bf16.gmra.mrb[0].mxu0 %v2562
    %v2923 = vpop.f32.mrb[0].mxu0
    %v2924 = vadd.f32 %v2695, %v2923
    %v2925 = vpop.f32.mrb[0].mxu0
    %v2926 = vpop.f32.mrb[0].mxu0
    %v2927 = vadd.f32 %v2695, %v2926
    %v2928 = vpop.f32.mrb[0].mxu0
    %2929 = vmatprep.mubr.bf16.mxu0 %v2567
    %2930 = vmatmul.mubr.bf16.gmra.mrb[0].mxu0 %v2566
    %v2931 = vpop.f32.mrb[0].mxu0
    %v2932 = vadd.f32 %v2695, %v2931
    %v2933 = vpop.f32.mrb[0].mxu0
    %v2934 = vpop.f32.mrb[0].mxu0
    %v2935 = vadd.f32 %v2695, %v2934
    %v2936 = vpop.f32.mrb[0].mxu0
    %2937 = vmatprep.mubr.bf16.mxu0 %v2571
    %2938 = vmatmul.mubr.bf16.gmra.mrb[0].mxu0 %v2570
    %v2939 = vpop.f32.mrb[0].mxu0
    %v2940 = vadd.f32 %v2695, %v2939
    %v2941 = vpop.f32.mrb[0].mxu0
    %v2942 = vpop.f32.mrb[0].mxu0
    %v2943 = vadd.f32 %v2695, %v2942
    %v2944 = vpop.f32.mrb[0].mxu0
    %2945 = vmatprep.mubr.bf16.mxu0 %v2575
    %2946 = vmatmul.mubr.bf16.gmra.mrb[0].mxu0 %v2574
    %v2947 = vpop.f32.mrb[0].mxu0
    %v2948 = vadd.f32 %v2695, %v2947
    %v2949 = vpop.f32.mrb[0].mxu0
    %v2950 = vpop.f32.mrb[0].mxu0
    %v2951 = vadd.f32 %v2695, %v2950
    %v2952 = vpop.f32.mrb[0].mxu0
    %2953 = vmatprep.mubr.bf16.mxu0 %v2579
    %2954 = vmatmul.mubr.bf16.gmra.mrb[0].mxu0 %v2578
    %v2955 = vpop.f32.mrb[0].mxu0
    %v2956 = vadd.f32 %v2695, %v2955
    %v2957 = vpop.f32.mrb[0].mxu0
    %v2958 = vpop.f32.mrb[0].mxu0
    %v2959 = vadd.f32 %v2695, %v2958
    %v2960 = vpop.f32.mrb[0].mxu0
    %2961 = vmatprep.mubr.bf16.mxu0 %v2583
    %2962 = vmatmul.mubr.bf16.gmra.mrb[0].mxu0 %v2582
    %v2963 = vpop.f32.mrb[0].mxu0
    %v2964 = vadd.f32 %v2695, %v2963
    %v2965 = vpop.f32.mrb[0].mxu0
    %v2966 = vpop.f32.mrb[0].mxu0
    %v2967 = vadd.f32 %v2695, %v2966
    %v2968 = vpop.f32.mrb[0].mxu0
    %2969 = vmatprep.mubr.bf16.mxu0 %v2587
    %2970 = vmatmul.mubr.bf16.gmra.mrb[0].mxu0 %v2586
    %v2971 = vpop.f32.mrb[0].mxu0
    %v2972 = vadd.f32 %v2695, %v2971
    %v2973 = vpop.f32.mrb[0].mxu0
    %v2974 = vpop.f32.mrb[0].mxu0
    %v2975 = vadd.f32 %v2695, %v2974
    %v2976 = vpop.f32.mrb[0].mxu0
    %2977 = vmatprep.mubr.bf16.mxu0 %v2591
    %2978 = vmatmul.mubr.bf16.gmra.mrb[0].mxu0 %v2590
    %v2979 = vpop.f32.mrb[0].mxu0
    %v2980 = vadd.f32 %v2695, %v2979
    %v2981 = vpop.f32.mrb[0].mxu0
    %v2982 = vpop.f32.mrb[0].mxu0
    %v2983 = vadd.f32 %v2695, %v2982
    %v2984 = vpop.f32.mrb[0].mxu0
    %2985 = vmatprep.mubr.bf16.mxu0 %v2595
    %2986 = vmatmul.mubr.bf16.gmra.mrb[0].mxu0 %v2594
    %v2987 = vpop.f32.mrb[0].mxu0
    %v2988 = vadd.f32 %v2695, %v2987
    %v2989 = vpop.f32.mrb[0].mxu0
    %v2990 = vpop.f32.mrb[0].mxu0
    %v2991 = vadd.f32 %v2695, %v2990
    %v2992 = vpop.f32.mrb[0].mxu0
    %2993 = vmatprep.mubr.bf16.mxu0 %v2599
    %2994 = vmatmul.mubr.bf16.gmra.mrb[0].mxu0 %v2598
    %v2995 = vpop.f32.mrb[0].mxu0
    %v2996 = vadd.f32 %v2695, %v2995
    %v2997 = vpop.f32.mrb[0].mxu0
    %v2998 = vpop.f32.mrb[0].mxu0
    %v2999 = vadd.f32 %v2695, %v2998
    %v3000 = vpop.f32.mrb[0].mxu0
    %3001 = vmatprep.mubr.bf16.mxu0 %v2603
    %3002 = vmatmul.mubr.bf16.gmra.mrb[0].mxu0 %v2602
    %v3003 = vpop.f32.mrb[0].mxu0
    %v3004 = vadd.f32 %v2695, %v3003
    %v3005 = vpop.f32.mrb[0].mxu0
    %v3006 = vpop.f32.mrb[0].mxu0
    %v3007 = vadd.f32 %v2695, %v3006
    %v3008 = vpop.f32.mrb[0].mxu0
    %3009 = vmatprep.mubr.bf16.mxu0 %v2607
    %3010 = vmatmul.mubr.bf16.gmra.mrb[0].mxu0 %v2606
    %v3011 = vpop.f32.mrb[0].mxu0
    %v3012 = vadd.f32 %v2695, %v3011
    %v3013 = vpop.f32.mrb[0].mxu0
    %v3014 = vpop.f32.mrb[0].mxu0
    %v3015 = vadd.f32 %v2695, %v3014
    %v3016 = vpop.f32.mrb[0].mxu0
    %3017 = vmatprep.mubr.bf16.mxu0 %v2611
    %3018 = vmatmul.mubr.bf16.gmra.mrb[0].mxu0 %v2610
    %v3019 = vpop.f32.mrb[0].mxu0
    %v3020 = vadd.f32 %v2695, %v3019
    %v3021 = vpop.f32.mrb[0].mxu0
    %v3022 = vpop.f32.mrb[0].mxu0
    %v3023 = vadd.f32 %v2695, %v3022
    %v3024 = vpop.f32.mrb[0].mxu0
    %3025 = vmatprep.mubr.bf16.mxu0 %v2615
    %3026 = vmatmul.mubr.bf16.gmra.mrb[0].mxu0 %v2614
    %v3027 = vpop.f32.mrb[0].mxu0
    %v3028 = vadd.f32 %v2695, %v3027
    %v3029 = vpop.f32.mrb[0].mxu0
    %v3030 = vpop.f32.mrb[0].mxu0
    %v3031 = vadd.f32 %v2695, %v3030
    %v3032 = vpop.f32.mrb[0].mxu0
    %3033 = vmatprep.mubr.bf16.mxu0 %v2619
    %3034 = vmatmul.mubr.bf16.gmra.mrb[0].mxu0 %v2618
    %v3035 = vpop.f32.mrb[0].mxu0
    %v3036 = vadd.f32 %v2695, %v3035
    %v3037 = vpop.f32.mrb[0].mxu0
    %v3038 = vpop.f32.mrb[0].mxu0
    %v3039 = vadd.f32 %v2695, %v3038
    %v3040 = vpop.f32.mrb[0].mxu0
    %3041 = vmatprep.mubr.bf16.mxu0 %v2623
    %3042 = vmatmul.mubr.bf16.gmra.mrb[0].mxu0 %v2622
    %v3043 = vpop.f32.mrb[0].mxu0
    %v3044 = vadd.f32 %v2695, %v3043
    %v3045 = vpop.f32.mrb[0].mxu0
    %v3046 = vpop.f32.mrb[0].mxu0
    %v3047 = vadd.f32 %v2695, %v3046
    %v3048 = vpop.f32.mrb[0].mxu0
    %3049 = vdwg.mxu0
    %3050 = vmatprep.subr.bf16.mxu0 0
    %3051 = vmatpush1.bf16.msra.mxu0 %v2841
    %3052 = vmatprep.subr.bf16.mxu0 0
    %3053 = vmatpush1.bf16.msra.mxu0 %v2842
    %3054 = vmatprep.subr.bf16.mxu0 0
    %3055 = vmatpush1.bf16.msra.mxu0 %v2843
    %3056 = vmatprep.subr.bf16.mxu0 0
    %3057 = vmatpush1.bf16.msra.mxu0 %v2844
    %3058 = vmatprep.subr.bf16.mxu0 0
    %3059 = vmatpush1.bf16.msra.mxu0 %v2845
    %3060 = vmatprep.subr.bf16.mxu0 0
    %3061 = vmatpush1.bf16.msra.mxu0 %v2846
    %3062 = vmatprep.subr.bf16.mxu0 0
    %3063 = vmatpush1.bf16.msra.mxu0 %v2847
    %3064 = vmatprep.subr.bf16.mxu0 0
    %3065 = vmatpush1.bf16.msra.mxu0 %v2848
    %3066 = vmatprep.subr.bf16.mxu0 0
    %3067 = vmatpush1.bf16.msra.mxu0 %v2849
    %3068 = vmatprep.subr.bf16.mxu0 0
    %3069 = vmatpush1.bf16.msra.mxu0 %v2850
    %3070 = vmatprep.subr.bf16.mxu0 0
    %3071 = vmatpush1.bf16.msra.mxu0 %v2851
    %3072 = vmatprep.subr.bf16.mxu0 0
    %3073 = vmatpush1.bf16.msra.mxu0 %v2852
    %3074 = vmatprep.subr.bf16.mxu0 0
    %3075 = vmatpush1.bf16.msra.mxu0 %v2853
    %3076 = vmatprep.subr.bf16.mxu0 0
    %3077 = vmatpush1.bf16.msra.mxu0 %v2854
    %3078 = vmatprep.subr.bf16.mxu0 0
    %3079 = vmatpush1.bf16.msra.mxu0 %v2855
    %3080 = vmatprep.subr.bf16.mxu0 0
    %3081 = vmatpush1.bf16.msra.mxu0 %v2856
    %3082 = vmatprep.mubr.bf16.mxu0 %v2565
    %3083 = vmatmul.mubr.bf16.gmra.mrb[0].mxu0 %v2564
    %v3084 = vpop.f32.mrb[0].mxu0
    %v3085 = vadd.f32 %v2924, %v3084
    %v3086 = vpop.f32.mrb[0].mxu0
    %v3087 = vpop.f32.mrb[0].mxu0
    %v3088 = vadd.f32 %v2927, %v3087
    %v3089 = vpop.f32.mrb[0].mxu0
    %3090 = vmatprep.mubr.bf16.mxu0 %v2569
    %3091 = vmatmul.mubr.bf16.gmra.mrb[0].mxu0 %v2568
    %v3092 = vpop.f32.mrb[0].mxu0
    %v3093 = vadd.f32 %v2932, %v3092
    %v3094 = vpop.f32.mrb[0].mxu0
    %v3095 = vpop.f32.mrb[0].mxu0
    %v3096 = vadd.f32 %v2935, %v3095
    %v3097 = vpop.f32.mrb[0].mxu0
    %3098 = vmatprep.mubr.bf16.mxu0 %v2573
    %3099 = vmatmul.mubr.bf16.gmra.mrb[0].mxu0 %v2572
    %v3100 = vpop.f32.mrb[0].mxu0
    %v3101 = vadd.f32 %v2940, %v3100
    %v3102 = vpop.f32.mrb[0].mxu0
    %v3103 = vpop.f32.mrb[0].mxu0
    %v3104 = vadd.f32 %v2943, %v3103
    %v3105 = vpop.f32.mrb[0].mxu0
    %3106 = vmatprep.mubr.bf16.mxu0 %v2577
    %3107 = vmatmul.mubr.bf16.gmra.mrb[0].mxu0 %v2576
    %v3108 = vpop.f32.mrb[0].mxu0
    %v3109 = vadd.f32 %v2948, %v3108
    %v3110 = vpop.f32.mrb[0].mxu0
    %v3111 = vpop.f32.mrb[0].mxu0
    %v3112 = vadd.f32 %v2951, %v3111
    %v3113 = vpop.f32.mrb[0].mxu0
    %3114 = vmatprep.mubr.bf16.mxu0 %v2581
    %3115 = vmatmul.mubr.bf16.gmra.mrb[0].mxu0 %v2580
    %v3116 = vpop.f32.mrb[0].mxu0
    %v3117 = vadd.f32 %v2956, %v3116
    %v3118 = vpop.f32.mrb[0].mxu0
    %v3119 = vpop.f32.mrb[0].mxu0
    %v3120 = vadd.f32 %v2959, %v3119
    %v3121 = vpop.f32.mrb[0].mxu0
    %3122 = vmatprep.mubr.bf16.mxu0 %v2585
    %3123 = vmatmul.mubr.bf16.gmra.mrb[0].mxu0 %v2584
    %v3124 = vpop.f32.mrb[0].mxu0
    %v3125 = vadd.f32 %v2964, %v3124
    %v3126 = vpop.f32.mrb[0].mxu0
    %v3127 = vpop.f32.mrb[0].mxu0
    %v3128 = vadd.f32 %v2967, %v3127
    %v3129 = vpop.f32.mrb[0].mxu0
    %3130 = vmatprep.mubr.bf16.mxu0 %v2589
    %3131 = vmatmul.mubr.bf16.gmra.mrb[0].mxu0 %v2588
    %v3132 = vpop.f32.mrb[0].mxu0
    %v3133 = vadd.f32 %v2972, %v3132
    %v3134 = vpop.f32.mrb[0].mxu0
    %v3135 = vpop.f32.mrb[0].mxu0
    %v3136 = vadd.f32 %v2975, %v3135
    %v3137 = vpop.f32.mrb[0].mxu0
    %3138 = vmatprep.mubr.bf16.mxu0 %v2593
    %3139 = vmatmul.mubr.bf16.gmra.mrb[0].mxu0 %v2592
    %v3140 = vpop.f32.mrb[0].mxu0
    %v3141 = vadd.f32 %v2980, %v3140
    %v3142 = vpop.f32.mrb[0].mxu0
    %v3143 = vpop.f32.mrb[0].mxu0
    %v3144 = vadd.f32 %v2983, %v3143
    %v3145 = vpop.f32.mrb[0].mxu0
    %3146 = vmatprep.mubr.bf16.mxu0 %v2597
    %3147 = vmatmul.mubr.bf16.gmra.mrb[0].mxu0 %v2596
    %v3148 = vpop.f32.mrb[0].mxu0
    %v3149 = vadd.f32 %v2988, %v3148
    %v3150 = vpop.f32.mrb[0].mxu0
    %v3151 = vpop.f32.mrb[0].mxu0
    %v3152 = vadd.f32 %v2991, %v3151
    %v3153 = vpop.f32.mrb[0].mxu0
    %3154 = vmatprep.mubr.bf16.mxu0 %v2601
    %3155 = vmatmul.mubr.bf16.gmra.mrb[0].mxu0 %v2600
    %v3156 = vpop.f32.mrb[0].mxu0
    %v3157 = vadd.f32 %v2996, %v3156
    %v3158 = vpop.f32.mrb[0].mxu0
    %v3159 = vpop.f32.mrb[0].mxu0
    %v3160 = vadd.f32 %v2999, %v3159
    %v3161 = vpop.f32.mrb[0].mxu0
    %3162 = vmatprep.mubr.bf16.mxu0 %v2605
    %3163 = vmatmul.mubr.bf16.gmra.mrb[0].mxu0 %v2604
    %v3164 = vpop.f32.mrb[0].mxu0
    %v3165 = vadd.f32 %v3004, %v3164
    %v3166 = vpop.f32.mrb[0].mxu0
    %v3167 = vpop.f32.mrb[0].mxu0
    %v3168 = vadd.f32 %v3007, %v3167
    %v3169 = vpop.f32.mrb[0].mxu0
    %3170 = vmatprep.mubr.bf16.mxu0 %v2609
    %3171 = vmatmul.mubr.bf16.gmra.mrb[0].mxu0 %v2608
    %v3172 = vpop.f32.mrb[0].mxu0
    %v3173 = vadd.f32 %v3012, %v3172
    %v3174 = vpop.f32.mrb[0].mxu0
    %v3175 = vpop.f32.mrb[0].mxu0
    %v3176 = vadd.f32 %v3015, %v3175
    %v3177 = vpop.f32.mrb[0].mxu0
    %3178 = vmatprep.mubr.bf16.mxu0 %v2613
    %3179 = vmatmul.mubr.bf16.gmra.mrb[0].mxu0 %v2612
    %v3180 = vpop.f32.mrb[0].mxu0
    %v3181 = vadd.f32 %v3020, %v3180
    %v3182 = vpop.f32.mrb[0].mxu0
    %v3183 = vpop.f32.mrb[0].mxu0
    %v3184 = vadd.f32 %v3023, %v3183
    %v3185 = vpop.f32.mrb[0].mxu0
    %3186 = vmatprep.mubr.bf16.mxu0 %v2617
    %3187 = vmatmul.mubr.bf16.gmra.mrb[0].mxu0 %v2616
    %v3188 = vpop.f32.mrb[0].mxu0
    %v3189 = vadd.f32 %v3028, %v3188
    %v3190 = vpop.f32.mrb[0].mxu0
    %v3191 = vpop.f32.mrb[0].mxu0
    %v3192 = vadd.f32 %v3031, %v3191
    %v3193 = vpop.f32.mrb[0].mxu0
    %3194 = vmatprep.mubr.bf16.mxu0 %v2621
    %3195 = vmatmul.mubr.bf16.gmra.mrb[0].mxu0 %v2620
    %v3196 = vpop.f32.mrb[0].mxu0
    %v3197 = vadd.f32 %v3036, %v3196
    %v3198 = vpop.f32.mrb[0].mxu0
    %v3199 = vpop.f32.mrb[0].mxu0
    %v3200 = vadd.f32 %v3039, %v3199
    %v3201 = vpop.f32.mrb[0].mxu0
    %3202 = vmatprep.mubr.bf16.mxu0 %v2625
    %3203 = vmatmul.mubr.bf16.gmra.mrb[0].mxu0 %v2624
    %v3204 = vpop.f32.mrb[0].mxu0
    %v3205 = vadd.f32 %v3044, %v3204
    %v3206 = vpop.f32.mrb[0].mxu0
    %v3207 = vpop.f32.mrb[0].mxu0
    %v3208 = vadd.f32 %v3047, %v3207
    %v3209 = vpop.f32.mrb[0].mxu0
    %3210 = vdwg.mxu0
    %v3211 = vmax.f32 %v3085, 0.0
    %v3212 = vmax.f32 %v3088, 0.0
    %v3213 = vmax.f32 %v3093, 0.0
    %v3214 = vmax.f32 %v3096, 0.0
    %v3215 = vmax.f32 %v3101, 0.0
    %v3216 = vmax.f32 %v3104, 0.0
    %v3217 = vmax.f32 %v3109, 0.0
    %v3218 = vmax.f32 %v3112, 0.0
    %v3219 = vmax.f32 %v3117, 0.0
    %v3220 = vmax.f32 %v3120, 0.0
    %v3221 = vmax.f32 %v3125, 0.0
    %v3222 = vmax.f32 %v3128, 0.0
    %v3223 = vmax.f32 %v3133, 0.0
    %v3224 = vmax.f32 %v3136, 0.0
    %v3225 = vmax.f32 %v3141, 0.0
    %v3226 = vmax.f32 %v3144, 0.0
    %v3227 = vmax.f32 %v3149, 0.0
    %v3228 = vmax.f32 %v3152, 0.0
    %v3229 = vmax.f32 %v3157, 0.0
    %v3230 = vmax.f32 %v3160, 0.0
    %v3231 = vmax.f32 %v3165, 0.0
    %v3232 = vmax.f32 %v3168, 0.0
    %v3233 = vmax.f32 %v3173, 0.0
    %v3234 = vmax.f32 %v3176, 0.0
    %v3235 = vmax.f32 %v3181, 0.0
    %v3236 = vmax.f32 %v3184, 0.0
    %v3237 = vmax.f32 %v3189, 0.0
    %v3238 = vmax.f32 %v3192, 0.0
    %v3239 = vmax.f32 %v3197, 0.0
    %v3240 = vmax.f32 %v3200, 0.0
    %v3241 = vmax.f32 %v3205, 0.0
    %v3242 = vmax.f32 %v3208, 0.0
    %v3243 = vpack.c.bf16 %v3212, %v3211
    %v3244 = vpack.c.bf16 %v3214, %v3213
    %v3245 = vpack.c.bf16 %v3216, %v3215
    %v3246 = vpack.c.bf16 %v3218, %v3217
    %v3247 = vpack.c.bf16 %v3220, %v3219
    %v3248 = vpack.c.bf16 %v3222, %v3221
    %v3249 = vpack.c.bf16 %v3224, %v3223
    %v3250 = vpack.c.bf16 %v3226, %v3225
    %v3251 = vpack.c.bf16 %v3228, %v3227
    %v3252 = vpack.c.bf16 %v3230, %v3229
    %v3253 = vpack.c.bf16 %v3232, %v3231
    %v3254 = vpack.c.bf16 %v3234, %v3233
    %v3255 = vpack.c.bf16 %v3236, %v3235
    %v3256 = vpack.c.bf16 %v3238, %v3237
    %v3257 = vpack.c.bf16 %v3240, %v3239
    %v3258 = vpack.c.bf16 %v3242, %v3241
    %v3259 = vld [vmem:[%s7] sm:$0xf]
    %v3260 = vld [vmem:[%s7 + $0x4] sm:$0xf]
    %v3261 = vld [vmem:[%s7 + $0x8] sm:$0xf]
    %v3262 = vld [vmem:[%s7 + $0xc] sm:$0xf]
    %v3263 = vld [vmem:[%s7 + $0x10] sm:$0xf]
    %v3264 = vld [vmem:[%s7 + $0x14] sm:$0xf]
    %v3265 = vld [vmem:[%s7 + $0x18] sm:$0xf]
    %v3266 = vld [vmem:[%s7 + $0x1c] sm:$0xf]
    %v3267 = vld [vmem:[%s7 + $0x20] sm:$0xf]
    %v3268 = vld [vmem:[%s7 + $0x24] sm:$0xf]
    %v3269 = vld [vmem:[%s7 + $0x28] sm:$0xf]
    %v3270 = vld [vmem:[%s7 + $0x2c] sm:$0xf]
    %v3271 = vld [vmem:[%s7 + $0x30] sm:$0xf]
    %v3272 = vld [vmem:[%s7 + $0x34] sm:$0xf]
    %v3273 = vld [vmem:[%s7 + $0x38] sm:$0xf]
    %v3274 = vld [vmem:[%s7 + $0x3c] sm:$0xf]
    %v3275 = vld [vmem:[%s8] sm:$0x1]
    %v3277 = vlaneseq
    %v3278 = vshrl.u32 %v3277, 7
    %v3279 = vsub.s32 0, %v3278
    %v3280 = vrot.slane %v3275, %v3279
    %v3298 = vunpack.c.l.b16 %v3259
    %v3299 = vunpack.c.l.b16 %v3260
    %v3300 = vunpack.c.l.b16 %v3261
    %v3301 = vunpack.c.l.b16 %v3262
    %v3302 = vunpack.c.l.b16 %v3263
    %v3303 = vunpack.c.l.b16 %v3264
    %v3304 = vunpack.c.l.b16 %v3265
    %v3305 = vunpack.c.l.b16 %v3266
    %v3306 = vunpack.c.l.b16 %v3267
    %v3307 = vunpack.c.l.b16 %v3268
    %v3308 = vunpack.c.l.b16 %v3269
    %v3309 = vunpack.c.l.b16 %v3270
    %v3310 = vunpack.c.l.b16 %v3271
    %v3311 = vunpack.c.l.b16 %v3272
    %v3312 = vunpack.c.l.b16 %v3273
    %v3313 = vunpack.c.l.b16 %v3274
    %v3314 = vpack.c.b16 %v3299, %v3298
    %v3315 = vpack.c.b16 %v3301, %v3300
    %v3316 = vpack.c.b16 %v3303, %v3302
    %v3317 = vpack.c.b16 %v3305, %v3304
    %v3318 = vpack.c.b16 %v3307, %v3306
    %v3319 = vpack.c.b16 %v3309, %v3308
    %v3320 = vpack.c.b16 %v3311, %v3310
    %v3321 = vpack.c.b16 %v3313, %v3312
    %3330 = vmatprep.subr.bf16.mxu0 0
    %3331 = vmatpush1.bf16.msra.mxu0 %v3314
    %3332 = vmatprep.subr.bf16.mxu0 0
    %3333 = vmatpush1.bf16.msra.mxu0 %v3315
    %3334 = vmatprep.subr.bf16.mxu0 0
    %3335 = vmatpush1.bf16.msra.mxu0 %v3316
    %3336 = vmatprep.subr.bf16.mxu0 0
    %3337 = vmatpush1.bf16.msra.mxu0 %v3317
    %3338 = vmatprep.subr.bf16.mxu0 0
    %3339 = vmatpush1.bf16.msra.mxu0 %v3318
    %3340 = vmatprep.subr.bf16.mxu0 0
    %3341 = vmatpush1.bf16.msra.mxu0 %v3319
    %3342 = vmatprep.subr.bf16.mxu0 0
    %3343 = vmatpush1.bf16.msra.mxu0 %v3320
    %3344 = vmatprep.subr.bf16.mxu0 0
    %3345 = vmatpush1.bf16.msra.mxu0 %v3321
    %3346 = vmatprep.subr.bf16.mxu0 0
    %3347 = vmatpush1.bf16.msra.mxu0 0
    %3348 = vmatprep.subr.bf16.mxu0 0
    %3349 = vmatpush1.bf16.msra.mxu0 0
    %3350 = vmatprep.subr.bf16.mxu0 0
    %3351 = vmatpush1.bf16.msra.mxu0 0
    %3352 = vmatprep.subr.bf16.mxu0 0
    %3353 = vmatpush1.bf16.msra.mxu0 0
    %3354 = vmatprep.subr.bf16.mxu0 0
    %3355 = vmatpush1.bf16.msra.mxu0 0
    %3356 = vmatprep.subr.bf16.mxu0 0
    %3357 = vmatpush1.bf16.msra.mxu0 0
    %3358 = vmatprep.subr.bf16.mxu0 0
    %3359 = vmatpush1.bf16.msra.mxu0 0
    %3360 = vmatprep.subr.bf16.mxu0 0
    %3361 = vmatpush1.bf16.msra.mxu0 0
    %3362 = vmatprep.mubr.bf16.mxu0 0
    %3363 = vmatmul.mubr.bf16.gmra.mrb[0].mxu0 %v3243
    %v3364 = vpop.f32.mrb[0].mxu0
    %v3365 = vadd.f32 %v3280, %v3364
    %v3366 = vpop.f32.mrb[0].mxu0
    %v3367 = vpop.f32.mrb[0].mxu0
    %v3368 = vadd.f32 %v3280, %v3367
    %v3369 = vpop.f32.mrb[0].mxu0
    %3370 = vmatprep.mubr.bf16.mxu0 0
    %3371 = vmatmul.mubr.bf16.gmra.mrb[0].mxu0 %v3244
    %v3372 = vpop.f32.mrb[0].mxu0
    %v3373 = vadd.f32 %v3280, %v3372
    %v3374 = vpop.f32.mrb[0].mxu0
    %v3375 = vpop.f32.mrb[0].mxu0
    %v3376 = vadd.f32 %v3280, %v3375
    %v3377 = vpop.f32.mrb[0].mxu0
    %3378 = vmatprep.mubr.bf16.mxu0 0
    %3379 = vmatmul.mubr.bf16.gmra.mrb[0].mxu0 %v3245
    %v3380 = vpop.f32.mrb[0].mxu0
    %v3381 = vadd.f32 %v3280, %v3380
    %v3382 = vpop.f32.mrb[0].mxu0
    %v3383 = vpop.f32.mrb[0].mxu0
    %v3384 = vadd.f32 %v3280, %v3383
    %v3385 = vpop.f32.mrb[0].mxu0
    %3386 = vmatprep.mubr.bf16.mxu0 0
    %3387 = vmatmul.mubr.bf16.gmra.mrb[0].mxu0 %v3246
    %v3388 = vpop.f32.mrb[0].mxu0
    %v3389 = vadd.f32 %v3280, %v3388
    %v3390 = vpop.f32.mrb[0].mxu0
    %v3391 = vpop.f32.mrb[0].mxu0
    %v3392 = vadd.f32 %v3280, %v3391
    %v3393 = vpop.f32.mrb[0].mxu0
    %3394 = vmatprep.mubr.bf16.mxu0 0
    %3395 = vmatmul.mubr.bf16.gmra.mrb[0].mxu0 %v3247
    %v3396 = vpop.f32.mrb[0].mxu0
    %v3397 = vadd.f32 %v3280, %v3396
    %v3398 = vpop.f32.mrb[0].mxu0
    %v3399 = vpop.f32.mrb[0].mxu0
    %v3400 = vadd.f32 %v3280, %v3399
    %v3401 = vpop.f32.mrb[0].mxu0
    %3402 = vmatprep.mubr.bf16.mxu0 0
    %3403 = vmatmul.mubr.bf16.gmra.mrb[0].mxu0 %v3248
    %v3404 = vpop.f32.mrb[0].mxu0
    %v3405 = vadd.f32 %v3280, %v3404
    %v3406 = vpop.f32.mrb[0].mxu0
    %v3407 = vpop.f32.mrb[0].mxu0
    %v3408 = vadd.f32 %v3280, %v3407
    %v3409 = vpop.f32.mrb[0].mxu0
    %3410 = vmatprep.mubr.bf16.mxu0 0
    %3411 = vmatmul.mubr.bf16.gmra.mrb[0].mxu0 %v3249
    %v3412 = vpop.f32.mrb[0].mxu0
    %v3413 = vadd.f32 %v3280, %v3412
    %v3414 = vpop.f32.mrb[0].mxu0
    %v3415 = vpop.f32.mrb[0].mxu0
    %v3416 = vadd.f32 %v3280, %v3415
    %v3417 = vpop.f32.mrb[0].mxu0
    %3418 = vmatprep.mubr.bf16.mxu0 0
    %3419 = vmatmul.mubr.bf16.gmra.mrb[0].mxu0 %v3250
    %v3420 = vpop.f32.mrb[0].mxu0
    %v3421 = vadd.f32 %v3280, %v3420
    %v3422 = vpop.f32.mrb[0].mxu0
    %v3423 = vpop.f32.mrb[0].mxu0
    %v3424 = vadd.f32 %v3280, %v3423
    %v3425 = vpop.f32.mrb[0].mxu0
    %3426 = vmatprep.mubr.bf16.mxu0 0
    %3427 = vmatmul.mubr.bf16.gmra.mrb[0].mxu0 %v3251
    %v3428 = vpop.f32.mrb[0].mxu0
    %v3429 = vadd.f32 %v3280, %v3428
    %v3430 = vpop.f32.mrb[0].mxu0
    %v3431 = vpop.f32.mrb[0].mxu0
    %v3432 = vadd.f32 %v3280, %v3431
    %v3433 = vpop.f32.mrb[0].mxu0
    %3434 = vmatprep.mubr.bf16.mxu0 0
    %3435 = vmatmul.mubr.bf16.gmra.mrb[0].mxu0 %v3252
    %v3436 = vpop.f32.mrb[0].mxu0
    %v3437 = vadd.f32 %v3280, %v3436
    %v3438 = vpop.f32.mrb[0].mxu0
    %v3439 = vpop.f32.mrb[0].mxu0
    %v3440 = vadd.f32 %v3280, %v3439
    %v3441 = vpop.f32.mrb[0].mxu0
    %3442 = vmatprep.mubr.bf16.mxu0 0
    %3443 = vmatmul.mubr.bf16.gmra.mrb[0].mxu0 %v3253
    %v3444 = vpop.f32.mrb[0].mxu0
    %v3445 = vadd.f32 %v3280, %v3444
    %v3446 = vpop.f32.mrb[0].mxu0
    %v3447 = vpop.f32.mrb[0].mxu0
    %v3448 = vadd.f32 %v3280, %v3447
    %v3449 = vpop.f32.mrb[0].mxu0
    %3450 = vmatprep.mubr.bf16.mxu0 0
    %3451 = vmatmul.mubr.bf16.gmra.mrb[0].mxu0 %v3254
    %v3452 = vpop.f32.mrb[0].mxu0
    %v3453 = vadd.f32 %v3280, %v3452
    %v3454 = vpop.f32.mrb[0].mxu0
    %v3455 = vpop.f32.mrb[0].mxu0
    %v3456 = vadd.f32 %v3280, %v3455
    %v3457 = vpop.f32.mrb[0].mxu0
    %3458 = vmatprep.mubr.bf16.mxu0 0
    %3459 = vmatmul.mubr.bf16.gmra.mrb[0].mxu0 %v3255
    %v3460 = vpop.f32.mrb[0].mxu0
    %v3461 = vadd.f32 %v3280, %v3460
    %v3462 = vpop.f32.mrb[0].mxu0
    %v3463 = vpop.f32.mrb[0].mxu0
    %v3464 = vadd.f32 %v3280, %v3463
    %v3465 = vpop.f32.mrb[0].mxu0
    %3466 = vmatprep.mubr.bf16.mxu0 0
    %3467 = vmatmul.mubr.bf16.gmra.mrb[0].mxu0 %v3256
    %v3468 = vpop.f32.mrb[0].mxu0
    %v3469 = vadd.f32 %v3280, %v3468
    %v3470 = vpop.f32.mrb[0].mxu0
    %v3471 = vpop.f32.mrb[0].mxu0
    %v3472 = vadd.f32 %v3280, %v3471
    %v3473 = vpop.f32.mrb[0].mxu0
    %3474 = vmatprep.mubr.bf16.mxu0 0
    %3475 = vmatmul.mubr.bf16.gmra.mrb[0].mxu0 %v3257
    %v3476 = vpop.f32.mrb[0].mxu0
    %v3477 = vadd.f32 %v3280, %v3476
    %v3478 = vpop.f32.mrb[0].mxu0
    %v3479 = vpop.f32.mrb[0].mxu0
    %v3480 = vadd.f32 %v3280, %v3479
    %v3481 = vpop.f32.mrb[0].mxu0
    %3482 = vmatprep.mubr.bf16.mxu0 0
    %3483 = vmatmul.mubr.bf16.gmra.mrb[0].mxu0 %v3258
    %v3484 = vpop.f32.mrb[0].mxu0
    %v3485 = vadd.f32 %v3280, %v3484
    %v3486 = vpop.f32.mrb[0].mxu0
    %v3487 = vpop.f32.mrb[0].mxu0
    %v3488 = vadd.f32 %v3280, %v3487
    %v3489 = vpop.f32.mrb[0].mxu0
    %3490 = vdwg.mxu0
    %v3491 = vmax.f32 %v3365, 0.0
    %v3492 = vmax.f32 %v3368, 0.0
    %v3493 = vmax.f32 %v3373, 0.0
    %v3494 = vmax.f32 %v3376, 0.0
    %v3495 = vmax.f32 %v3381, 0.0
    %v3496 = vmax.f32 %v3384, 0.0
    %v3497 = vmax.f32 %v3389, 0.0
    %v3498 = vmax.f32 %v3392, 0.0
    %v3499 = vmax.f32 %v3397, 0.0
    %v3500 = vmax.f32 %v3400, 0.0
    %v3501 = vmax.f32 %v3405, 0.0
    %v3502 = vmax.f32 %v3408, 0.0
    %v3503 = vmax.f32 %v3413, 0.0
    %v3504 = vmax.f32 %v3416, 0.0
    %v3505 = vmax.f32 %v3421, 0.0
    %v3506 = vmax.f32 %v3424, 0.0
    %v3507 = vmax.f32 %v3429, 0.0
    %v3508 = vmax.f32 %v3432, 0.0
    %v3509 = vmax.f32 %v3437, 0.0
    %v3510 = vmax.f32 %v3440, 0.0
    %v3511 = vmax.f32 %v3445, 0.0
    %v3512 = vmax.f32 %v3448, 0.0
    %v3513 = vmax.f32 %v3453, 0.0
    %v3514 = vmax.f32 %v3456, 0.0
    %v3515 = vmax.f32 %v3461, 0.0
    %v3516 = vmax.f32 %v3464, 0.0
    %v3517 = vmax.f32 %v3469, 0.0
    %v3518 = vmax.f32 %v3472, 0.0
    %v3519 = vmax.f32 %v3477, 0.0
    %v3520 = vmax.f32 %v3480, 0.0
    %v3521 = vmax.f32 %v3485, 0.0
    %v3522 = vmax.f32 %v3488, 0.0
    %v3523 = vld [vmem:[%s9] sm:$0x1]
    %v3524 = vunpack.c.l.bf16 %v3523
    %v3525 = vlaneseq
    %v3526 = vshrl.u32 %v3525, 7
    %v3527 = vsub.s32 0, %v3526
    %v3528 = vrot.slane %v3524, %v3527
    %v3529 = vmul.f32 %v3491, %v3528
    %v3530 = vmul.f32 %v3492, %v3528
    %v3531 = vmul.f32 %v3493, %v3528
    %v3532 = vmul.f32 %v3494, %v3528
    %v3533 = vmul.f32 %v3495, %v3528
    %v3534 = vmul.f32 %v3496, %v3528
    %v3535 = vmul.f32 %v3497, %v3528
    %v3536 = vmul.f32 %v3498, %v3528
    %v3537 = vmul.f32 %v3499, %v3528
    %v3538 = vmul.f32 %v3500, %v3528
    %v3539 = vmul.f32 %v3501, %v3528
    %v3540 = vmul.f32 %v3502, %v3528
    %v3541 = vmul.f32 %v3503, %v3528
    %v3542 = vmul.f32 %v3504, %v3528
    %v3543 = vmul.f32 %v3505, %v3528
    %v3544 = vmul.f32 %v3506, %v3528
    %v3545 = vmul.f32 %v3507, %v3528
    %v3546 = vmul.f32 %v3508, %v3528
    %v3547 = vmul.f32 %v3509, %v3528
    %v3548 = vmul.f32 %v3510, %v3528
    %v3549 = vmul.f32 %v3511, %v3528
    %v3550 = vmul.f32 %v3512, %v3528
    %v3551 = vmul.f32 %v3513, %v3528
    %v3552 = vmul.f32 %v3514, %v3528
    %v3553 = vmul.f32 %v3515, %v3528
    %v3554 = vmul.f32 %v3516, %v3528
    %v3555 = vmul.f32 %v3517, %v3528
    %v3556 = vmul.f32 %v3518, %v3528
    %v3557 = vmul.f32 %v3519, %v3528
    %v3558 = vmul.f32 %v3520, %v3528
    %v3559 = vmul.f32 %v3521, %v3528
    %v3560 = vmul.f32 %v3522, %v3528
    %vm3561 = vcmask 523264
    %v3562 = vsel %vm3561, %v3529, 0.0
    %3563 = vadd.xlane.f32.xlu0 %v3562
    %v3564 = vpop.xlane.xlu0 %3563
    %v3565 = vsel %vm3561, %v3530, 0.0
    %3566 = vadd.xlane.f32.xlu0 %v3565
    %v3567 = vpop.xlane.xlu0 %3566
    %v3568 = vsel %vm3561, %v3531, 0.0
    %3569 = vadd.xlane.f32.xlu0 %v3568
    %v3570 = vpop.xlane.xlu0 %3569
    %v3571 = vsel %vm3561, %v3532, 0.0
    %3572 = vadd.xlane.f32.xlu0 %v3571
    %v3573 = vpop.xlane.xlu0 %3572
    %v3574 = vsel %vm3561, %v3533, 0.0
    %3575 = vadd.xlane.f32.xlu0 %v3574
    %v3576 = vpop.xlane.xlu0 %3575
    %v3577 = vsel %vm3561, %v3534, 0.0
    %3578 = vadd.xlane.f32.xlu0 %v3577
    %v3579 = vpop.xlane.xlu0 %3578
    %v3580 = vsel %vm3561, %v3535, 0.0
    %3581 = vadd.xlane.f32.xlu0 %v3580
    %v3582 = vpop.xlane.xlu0 %3581
    %v3583 = vsel %vm3561, %v3536, 0.0
    %3584 = vadd.xlane.f32.xlu0 %v3583
    %v3585 = vpop.xlane.xlu0 %3584
    %v3586 = vsel %vm3561, %v3537, 0.0
    %3587 = vadd.xlane.f32.xlu0 %v3586
    %v3588 = vpop.xlane.xlu0 %3587
    %v3589 = vsel %vm3561, %v3538, 0.0
    %3590 = vadd.xlane.f32.xlu0 %v3589
    %v3591 = vpop.xlane.xlu0 %3590
    %v3592 = vsel %vm3561, %v3539, 0.0
    %3593 = vadd.xlane.f32.xlu0 %v3592
    %v3594 = vpop.xlane.xlu0 %3593
    %v3595 = vsel %vm3561, %v3540, 0.0
    %3596 = vadd.xlane.f32.xlu0 %v3595
    %v3597 = vpop.xlane.xlu0 %3596
    %v3598 = vsel %vm3561, %v3541, 0.0
    %3599 = vadd.xlane.f32.xlu0 %v3598
    %v3600 = vpop.xlane.xlu0 %3599
    %v3601 = vsel %vm3561, %v3542, 0.0
    %3602 = vadd.xlane.f32.xlu0 %v3601
    %v3603 = vpop.xlane.xlu0 %3602
    %v3604 = vsel %vm3561, %v3543, 0.0
    %3605 = vadd.xlane.f32.xlu0 %v3604
    %v3606 = vpop.xlane.xlu0 %3605
    %v3607 = vsel %vm3561, %v3544, 0.0
    %3608 = vadd.xlane.f32.xlu0 %v3607
    %v3609 = vpop.xlane.xlu0 %3608
    %v3610 = vsel %vm3561, %v3545, 0.0
    %3611 = vadd.xlane.f32.xlu0 %v3610
    %v3612 = vpop.xlane.xlu0 %3611
    %v3613 = vsel %vm3561, %v3546, 0.0
    %3614 = vadd.xlane.f32.xlu0 %v3613
    %v3615 = vpop.xlane.xlu0 %3614
    %v3616 = vsel %vm3561, %v3547, 0.0
    %3617 = vadd.xlane.f32.xlu0 %v3616
    %v3618 = vpop.xlane.xlu0 %3617
    %v3619 = vsel %vm3561, %v3548, 0.0
    %3620 = vadd.xlane.f32.xlu0 %v3619
    %v3621 = vpop.xlane.xlu0 %3620
    %v3622 = vsel %vm3561, %v3549, 0.0
    %3623 = vadd.xlane.f32.xlu0 %v3622
    %v3624 = vpop.xlane.xlu0 %3623
    %v3625 = vsel %vm3561, %v3550, 0.0
    %3626 = vadd.xlane.f32.xlu0 %v3625
    %v3627 = vpop.xlane.xlu0 %3626
    %v3628 = vsel %vm3561, %v3551, 0.0
    %3629 = vadd.xlane.f32.xlu0 %v3628
    %v3630 = vpop.xlane.xlu0 %3629
    %v3631 = vsel %vm3561, %v3552, 0.0
    %3632 = vadd.xlane.f32.xlu0 %v3631
    %v3633 = vpop.xlane.xlu0 %3632
    %v3634 = vsel %vm3561, %v3553, 0.0
    %3635 = vadd.xlane.f32.xlu0 %v3634
    %v3636 = vpop.xlane.xlu0 %3635
    %v3637 = vsel %vm3561, %v3554, 0.0
    %3638 = vadd.xlane.f32.xlu0 %v3637
    %v3639 = vpop.xlane.xlu0 %3638
    %v3640 = vsel %vm3561, %v3555, 0.0
    %3641 = vadd.xlane.f32.xlu0 %v3640
    %v3642 = vpop.xlane.xlu0 %3641
    %v3643 = vsel %vm3561, %v3556, 0.0
    %3644 = vadd.xlane.f32.xlu0 %v3643
    %v3645 = vpop.xlane.xlu0 %3644
    %v3646 = vsel %vm3561, %v3557, 0.0
    %3647 = vadd.xlane.f32.xlu0 %v3646
    %v3648 = vpop.xlane.xlu0 %3647
    %v3649 = vsel %vm3561, %v3558, 0.0
    %3650 = vadd.xlane.f32.xlu0 %v3649
    %v3651 = vpop.xlane.xlu0 %3650
    %v3652 = vsel %vm3561, %v3559, 0.0
    %3653 = vadd.xlane.f32.xlu0 %v3652
    %v3654 = vpop.xlane.xlu0 %3653
    %v3655 = vsel %vm3561, %v3560, 0.0
    %3656 = vadd.xlane.f32.xlu0 %v3655
    %v3657 = vpop.xlane.xlu0 %3656
    %v3658 = vld [vmem:[#allocation2] sm:$0x1]
    %v3660 = vlaneseq
    %v3661 = vshrl.u32 %v3660, 7
    %v3662 = vsub.s32 0, %v3661
    %v3663 = vrot.slane %v3658, %v3662
    %v3665 = vadd.f32 %v3564, %v3663
    %v3666 = vadd.f32 %v3567, %v3663
    %v3667 = vadd.f32 %v3570, %v3663
    %v3668 = vadd.f32 %v3573, %v3663
    %v3669 = vadd.f32 %v3576, %v3663
    %v3670 = vadd.f32 %v3579, %v3663
    %v3671 = vadd.f32 %v3582, %v3663
    %v3672 = vadd.f32 %v3585, %v3663
    %v3673 = vadd.f32 %v3588, %v3663
    %v3674 = vadd.f32 %v3591, %v3663
    %v3675 = vadd.f32 %v3594, %v3663
    %v3676 = vadd.f32 %v3597, %v3663
    %v3677 = vadd.f32 %v3600, %v3663
    %v3678 = vadd.f32 %v3603, %v3663
    %v3679 = vadd.f32 %v3606, %v3663
    %v3680 = vadd.f32 %v3609, %v3663
    %v3681 = vadd.f32 %v3612, %v3663
    %v3682 = vadd.f32 %v3615, %v3663
    %v3683 = vadd.f32 %v3618, %v3663
    %v3684 = vadd.f32 %v3621, %v3663
    %v3685 = vadd.f32 %v3624, %v3663
    %v3686 = vadd.f32 %v3627, %v3663
    %v3687 = vadd.f32 %v3630, %v3663
    %v3688 = vadd.f32 %v3633, %v3663
    %v3689 = vadd.f32 %v3636, %v3663
    %v3690 = vadd.f32 %v3639, %v3663
    %v3691 = vadd.f32 %v3642, %v3663
    %v3692 = vadd.f32 %v3645, %v3663
    %v3693 = vadd.f32 %v3648, %v3663
    %v3694 = vadd.f32 %v3651, %v3663
    %v3695 = vadd.f32 %v3654, %v3663
    %v3696 = vadd.f32 %v3657, %v3663
    %vm3697 = vcmask 7168
    %3698 = vst.msk [vmem:[%s11] sm:$0xff] %vm3697, %v3665
    %3699 = vst.msk [vmem:[%s11 + $0x8] sm:$0xff] %vm3697, %v3666
    %3700 = vst.msk [vmem:[%s11 + $0x10] sm:$0xff] %vm3697, %v3667
    %3701 = vst.msk [vmem:[%s11 + $0x18] sm:$0xff] %vm3697, %v3668
    %3702 = vst.msk [vmem:[%s11 + $0x20] sm:$0xff] %vm3697, %v3669
    %3703 = vst.msk [vmem:[%s11 + $0x28] sm:$0xff] %vm3697, %v3670
    %3704 = vst.msk [vmem:[%s11 + $0x30] sm:$0xff] %vm3697, %v3671
    %3705 = vst.msk [vmem:[%s11 + $0x38] sm:$0xff] %vm3697, %v3672
    %3706 = vst.msk [vmem:[%s11 + $0x40] sm:$0xff] %vm3697, %v3673
    %3707 = vst.msk [vmem:[%s11 + $0x48] sm:$0xff] %vm3697, %v3674
    %3708 = vst.msk [vmem:[%s11 + $0x50] sm:$0xff] %vm3697, %v3675
    %3709 = vst.msk [vmem:[%s11 + $0x58] sm:$0xff] %vm3697, %v3676
    %3710 = vst.msk [vmem:[%s11 + $0x60] sm:$0xff] %vm3697, %v3677
    %3711 = vst.msk [vmem:[%s11 + $0x68] sm:$0xff] %vm3697, %v3678
    %3712 = vst.msk [vmem:[%s11 + $0x70] sm:$0xff] %vm3697, %v3679
    %3713 = vst.msk [vmem:[%s11 + $0x78] sm:$0xff] %vm3697, %v3680
    %3714 = vst.msk [vmem:[%s11 + $0x80] sm:$0xff] %vm3697, %v3681
    %3715 = vst.msk [vmem:[%s11 + $0x88] sm:$0xff] %vm3697, %v3682
    %3716 = vst.msk [vmem:[%s11 + $0x90] sm:$0xff] %vm3697, %v3683
    %3717 = vst.msk [vmem:[%s11 + $0x98] sm:$0xff] %vm3697, %v3684
    %3718 = vst.msk [vmem:[%s11 + $0xa0] sm:$0xff] %vm3697, %v3685
    %3719 = vst.msk [vmem:[%s11 + $0xa8] sm:$0xff] %vm3697, %v3686
    %3720 = vst.msk [vmem:[%s11 + $0xb0] sm:$0xff] %vm3697, %v3687
    %3721 = vst.msk [vmem:[%s11 + $0xb8] sm:$0xff] %vm3697, %v3688
    %3722 = vst.msk [vmem:[%s11 + $0xc0] sm:$0xff] %vm3697, %v3689
    %3723 = vst.msk [vmem:[%s11 + $0xc8] sm:$0xff] %vm3697, %v3690
    %3724 = vst.msk [vmem:[%s11 + $0xd0] sm:$0xff] %vm3697, %v3691
    %3725 = vst.msk [vmem:[%s11 + $0xd8] sm:$0xff] %vm3697, %v3692
    %3726 = vst.msk [vmem:[%s11 + $0xe0] sm:$0xff] %vm3697, %v3693
    %3727 = vst.msk [vmem:[%s11 + $0xe8] sm:$0xff] %vm3697, %v3694
    %3728 = vst.msk [vmem:[%s11 + $0xf0] sm:$0xff] %vm3697, %v3695
    %3729 = vst.msk [vmem:[%s11 + $0xf8] sm:$0xff] %vm3697, %v3696
    // Predicated region
    $region50: #{tpu_custom_call.1} parent=1 // pred_check
      _
    $region51: #{tpu_custom_call.1} parent=1 // pred_check_branch
      %3731 = sbr.rel (0) target = $region53
    $region52: #{tpu_custom_call.1} parent=1 // pred_region
      _
    $region53: #{tpu_custom_call.1} parent=1 // pred_fallthru
      _
    // Predicated region
    $region54: #{tpu_custom_call.1} parent=1 // pred_check
      _
    $region55: #{tpu_custom_call.1} parent=1 // pred_check_branch
      %3733 = sbr.rel (0) target = $region57
    $region56: #{tpu_custom_call.1} parent=1 // pred_region
      _
    $region57: #{tpu_custom_call.1} parent=1 // pred_fallthru
      _
    %3734 = vsyncpa [#allocation4], 1

</llo_original>
